<compile_context>
chip_gen: v6e
topology: v6e:2x2x1
jax: 0.10.0
libtpu: 0.0.40
codegen_flags: <defaults>
</compile_context>

<pallas_src>
import functools

import jax
import jax.numpy as jnp
import numpy as np
from jax import lax
from jax.experimental import pallas as pl
from jax.experimental.pallas import tpu as pltpu

EPS = 1e-5                       # nn.BatchNorm2d default
LANE = 128                       # channel padding granularity (vreg lane width)
TILE_M = 256                     # row tile for matmul stages
MAX_TILE_K = 512                 # K tile cap
VMEM_LIMIT = 48 * 1024 * 1024    # fits v7x's 64 MiB per-core VMEM with headroom


# --------------------------------------------------------------------------
# small helpers
# --------------------------------------------------------------------------
def _round_up(x, m):
    return (x + m - 1) // m * m


def _pad_axis(x, target, axis):
    if x.shape[axis] == target:
        return x
    pad = [(0, 0)] * x.ndim
    pad[axis] = (0, target - x.shape[axis])
    return jnp.pad(x, pad)


def _pick_tile_m(m):
    return TILE_M if m >= TILE_M else _round_up(m, 8)


def _pick_tile_k(kp):
    for t in (MAX_TILE_K, 256, LANE):
        if kp % t == 0:
            return min(t, kp)
    return LANE


# --------------------------------------------------------------------------
# Kernel 1: tiled matmul + optional fused input BN/ReLU + BN partial stats
# --------------------------------------------------------------------------
def _mm_bn_kernel(*refs, fuse_act, m_true, tile_m):
    if fuse_act:
        a_ref, sc_ref, sh_ref, w_ref, y_ref, stat_ref, acc_ref = refs
    else:
        a_ref, w_ref, y_ref, stat_ref, acc_ref = refs
        sc_ref = sh_ref = None
    k = pl.program_id(1)

    @pl.when(k == 0)
    def _():
        acc_ref[...] = jnp.zeros_like(acc_ref)

    a = a_ref[...]
    if fuse_act:
        # BN + ReLU of the previous stage applied on the fly to raw (pre-BN)
        # activations; mask zero-padded M rows so they stay exactly zero and
        # do not pollute this stage's batch statistics.
        a = jnp.maximum(a * sc_ref[...] + sh_ref[...], 0.0)
        rows = (lax.broadcasted_iota(jnp.int32, a.shape, 0)
                + pl.program_id(0) * tile_m)
        a = jnp.where(rows < m_true, a, 0.0)
    acc_ref[...] += jnp.dot(a.astype(jnp.bfloat16), w_ref[...],
                            preferred_element_type=jnp.float32)

    @pl.when(k == pl.num_programs(1) - 1)
    def _():
        y = acc_ref[...]
        y_ref[...] = y
        s1 = jnp.sum(y, axis=0, keepdims=True)
        s2 = jnp.sum(y * y, axis=0, keepdims=True)
        z = jnp.zeros_like(s1)
        stat_ref[...] = jnp.concatenate([s1, s2, z, z, z, z, z, z], axis=0)[None]


def _matmul_bn_stats(a, w, *, in_scale=None, in_shift=None, m_true=0):
    """a: (Mp, Kp), w: (Kp, Cp) bf16 -> (y_raw (Mp, Cp) f32, stats (nm, 8, Cp))."""
    mp, kp = a.shape
    cp = w.shape[1]
    tile_m = _pick_tile_m(mp)
    tile_k = _pick_tile_k(kp)
    nm, nk = mp // tile_m, kp // tile_k
    fuse = in_scale is not None

    inputs = [a]
    in_specs = [pl.BlockSpec((tile_m, tile_k), lambda i, k: (i, k))]
    if fuse:
        inputs += [in_scale, in_shift]
        in_specs += [pl.BlockSpec((1, tile_k), lambda i, k: (0, k)),
                     pl.BlockSpec((1, tile_k), lambda i, k: (0, k))]
    inputs.append(w)
    in_specs.append(pl.BlockSpec((tile_k, cp), lambda i, k: (k, 0)))

    kernel = functools.partial(_mm_bn_kernel, fuse_act=fuse,
                               m_true=m_true, tile_m=tile_m)
    flops = 2 * mp * kp * cp
    bytes_accessed = (a.size * a.dtype.itemsize + w.size * 2
                      + mp * cp * 4 + nm * 8 * cp * 4)
    return pl.pallas_call(
        kernel,
        grid=(nm, nk),
        in_specs=in_specs,
        out_specs=(pl.BlockSpec((tile_m, cp), lambda i, k: (i, 0)),
                   pl.BlockSpec((1, 8, cp), lambda i, k: (i, 0, 0))),
        out_shape=(jax.ShapeDtypeStruct((mp, cp), jnp.float32),
                   jax.ShapeDtypeStruct((nm, 8, cp), jnp.float32)),
        scratch_shapes=[pltpu.VMEM((tile_m, cp), jnp.float32)],
        compiler_params=pltpu.CompilerParams(
            dimension_semantics=("parallel", "arbitrary"),
            vmem_limit_bytes=VMEM_LIMIT),
        cost_estimate=pl.CostEstimate(flops=flops, transcendentals=0,
                                      bytes_accessed=bytes_accessed),
    )(*inputs)


# --------------------------------------------------------------------------
# Kernel 2: 3x3 conv via in-kernel accumulation over the 9 taps (no im2col)
# --------------------------------------------------------------------------
def _conv3x3_kernel(ph_ref, w_ref, y_ref, stat_ref, acc_ref, *, stride, ho, wo_p):
    acc_ref[...] = jnp.zeros_like(acc_ref)
    for ki in range(3):
        for kj in range(3):
            a, oi = ki % stride, ki // stride
            b, oj = kj % stride, kj // stride
            x_tap = ph_ref[a * stride + b, 0, oi:oi + ho, oj:oj + wo_p, :]
            x_tap = x_tap.reshape(ho * wo_p, x_tap.shape[-1])
            acc_ref[...] += jnp.dot(x_tap, w_ref[ki * 3 + kj],
                                    preferred_element_type=jnp.float32)
    y = acc_ref[...]
    y_ref[...] = y[None]
    s1 = jnp.sum(y, axis=0, keepdims=True)
    s2 = jnp.sum(y * y, axis=0, keepdims=True)
    z = jnp.zeros_like(s1)
    stat_ref[...] = jnp.concatenate([s1, s2, z, z, z, z, z, z], axis=0)[None]


def _conv3x3_bn_stats(phases, w2, stride, ho, wo_p):
    ss, n, hp, wp, cp = phases.shape
    coutp = w2.shape[-1]
    mblk = ho * wo_p
    kernel = functools.partial(_conv3x3_kernel, stride=stride, ho=ho, wo_p=wo_p)
    return pl.pallas_call(
        kernel,
        grid=(n,),
        in_specs=[pl.BlockSpec((ss, 1, hp, wp, cp), lambda i: (0, i, 0, 0, 0)),
                  pl.BlockSpec((9, cp, coutp), lambda i: (0, 0, 0))],
        out_specs=(pl.BlockSpec((1, mblk, coutp), lambda i: (i, 0, 0)),
                   pl.BlockSpec((1, 8, coutp), lambda i: (i, 0, 0))),
        out_shape=(jax.ShapeDtypeStruct((n, mblk, coutp), jnp.float32),
                   jax.ShapeDtypeStruct((n, 8, coutp), jnp.float32)),
        scratch_shapes=[pltpu.VMEM((mblk, coutp), jnp.float32)],
        compiler_params=pltpu.CompilerParams(
            dimension_semantics=("parallel",), vmem_limit_bytes=VMEM_LIMIT),
    )(phases, w2)


# --------------------------------------------------------------------------
# Kernel 3: per-channel affine (BN) + ReLU
# --------------------------------------------------------------------------
def _affine_kernel(y_ref, sc_ref, sh_ref, o_ref, *, relu):
    y = y_ref[...] * sc_ref[...] + sh_ref[...]
    if relu:
        y = jnp.maximum(y, 0.0)
    o_ref[...] = y.astype(o_ref.dtype)


def _affine_act(y, scale, shift, out_dtype, relu=True):
    mp, cp = y.shape
    tile_m = _pick_tile_m(mp)
    nm = mp // tile_m
    return pl.pallas_call(
        functools.partial(_affine_kernel, relu=relu),
        grid=(nm,),
        in_specs=[pl.BlockSpec((tile_m, cp), lambda i: (i, 0)),
                  pl.BlockSpec((1, cp), lambda i: (0, 0)),
                  pl.BlockSpec((1, cp), lambda i: (0, 0))],
        out_specs=pl.BlockSpec((tile_m, cp), lambda i: (i, 0)),
        out_shape=jax.ShapeDtypeStruct((mp, cp), out_dtype),
        compiler_params=pltpu.CompilerParams(
            dimension_semantics=("parallel",), vmem_limit_bytes=VMEM_LIMIT),
    )(y, scale, shift)


# --------------------------------------------------------------------------
# Kernel 4: fused bn3 + shortcut-bn + residual add + final ReLU
# --------------------------------------------------------------------------
def _residual_kernel(y_ref, sc3_ref, sh3_ref, s_ref, scs_ref, shs_ref, o_ref):
    y = y_ref[...] * sc3_ref[...] + sh3_ref[...]
    s = s_ref[...] * scs_ref[...] + shs_ref[...]
    o_ref[...] = jnp.maximum(y + s, 0.0)


def _residual_bn_relu(y3, sc3, sh3, s, scs, shs):
    mp, cp = y3.shape
    tile_m = _pick_tile_m(mp)
    nm = mp // tile_m
    return pl.pallas_call(
        _residual_kernel,
        grid=(nm,),
        in_specs=[pl.BlockSpec((tile_m, cp), lambda i: (i, 0)),
                  pl.BlockSpec((1, cp), lambda i: (0, 0)),
                  pl.BlockSpec((1, cp), lambda i: (0, 0)),
                  pl.BlockSpec((tile_m, cp), lambda i: (i, 0)),
                  pl.BlockSpec((1, cp), lambda i: (0, 0)),
                  pl.BlockSpec((1, cp), lambda i: (0, 0))],
        out_specs=pl.BlockSpec((tile_m, cp), lambda i: (i, 0)),
        out_shape=jax.ShapeDtypeStruct((mp, cp), jnp.float32),
        compiler_params=pltpu.CompilerParams(
            dimension_semantics=("parallel",), vmem_limit_bytes=VMEM_LIMIT),
    )(y3, sc3, sh3, s, scs, shs)


# --------------------------------------------------------------------------
# JAX glue
# --------------------------------------------------------------------------
def _bn_scale_shift(stats, count, gamma, beta, cp):
    """Reduce per-tile partial sums -> per-channel BN scale/shift (batch stats)."""
    s1 = jnp.sum(stats[:, 0, :], axis=0)
    s2 = jnp.sum(stats[:, 1, :], axis=0)
    mu = s1 / count
    var = jnp.maximum(s2 / count - mu * mu, 0.0)
    g = _pad_axis(gamma.astype(jnp.float32), cp, 0)
    b = _pad_axis(beta.astype(jnp.float32), cp, 0)
    scale = g * lax.rsqrt(var + EPS)
    shift = b - mu * scale
    return scale.reshape(1, cp), shift.reshape(1, cp)


def _build_phases(xn, stride, ho, wo_p):
    """Decompose the zero-padded NHWC activation into stride^2 contiguous
    phase planes so the 3x3 taps become static, unit-stride windows."""
    n, h, w, c = xn.shape
    xpad = jnp.pad(xn, ((0, 0), (1, 1), (1, 1), (0, 0)))
    hp, wp = ho + 2, wo_p + 2
    phases = []
    for a in range(stride):
        for b in range(stride):
            ph = xpad[:, a::stride, b::stride, :]
            ph = ph[:, :hp, :wp, :]
            ph = jnp.pad(ph, ((0, 0), (0, hp - ph.shape[1]),
                              (0, wp - ph.shape[2]), (0, 0)))
            phases.append(ph)
    return jnp.stack(phases, axis=0)  # (stride^2, N, hp, wp, C)


def bottleneck_forward(x_nchw, params, stride):
    """Pallas implementation of Bottleneck.forward (training-mode BN).
    Input/output layout is NCHW, matching the PyTorch module."""
    x = jnp.transpose(x_nchw, (0, 2, 3, 1)).astype(jnp.float32)  # NHWC
    n, h, w, cin = x.shape
    planes = params["w1"].shape[0]
    cexp = params["w3"].shape[0]

    cin_p = _round_up(cin, LANE)
    pla_p = _round_up(planes, LANE)
    c4_p = _round_up(cexp, LANE)

    # ---- conv1 (1x1) + bn1 + relu --------------------------------------
    m1 = n * h * w
    m1_p = _round_up(m1, _pick_tile_m(m1))
    a1 = _pad_axis(_pad_axis(x.reshape(m1, cin), cin_p, 1), m1_p, 0)
    w1 = _pad_axis(_pad_axis(params["w1"][:, :, 0, 0].T, cin_p, 0), pla_p, 1)
    y1_raw, st1 = _matmul_bn_stats(a1.astype(jnp.bfloat16),
                                   w1.astype(jnp.bfloat16))
    sc1, sh1 = _bn_scale_shift(st1, m1, params["g1"], params["b1"], pla_p)
    y1n = _affine_act(y1_raw, sc1, sh1, jnp.bfloat16, relu=True)
    y1n = y1n[:m1].reshape(n, h, w, pla_p)

    # ---- conv2 (3x3, stride, pad=1); its bn2+relu is fused into conv3 ---
    ho = (h - 1) // stride + 1
    wo = (w - 1) // stride + 1
    wo_p = _round_up(wo, 8)
    phases = _build_phases(y1n, stride, ho, wo_p)
    w2 = jnp.transpose(params["w2"], (2, 3, 1, 0)).reshape(9, planes, planes)
    w2 = _pad_axis(_pad_axis(w2, pla_p, 1), pla_p, 2).astype(jnp.bfloat16)
    y2_raw, st2 = _conv3x3_bn_stats(phases, w2, stride, ho, wo_p)
    m3 = n * ho * wo
    sc2, sh2 = _bn_scale_shift(st2, m3, params["g2"], params["b2"], pla_p)

    # ---- conv3 (1x1) + bn3 (input bn2+relu fused in-kernel) -------------
    m3_p = _round_up(m3, _pick_tile_m(m3))
    a3 = y2_raw.reshape(n, ho, wo_p, pla_p)[:, :, :wo, :].reshape(m3, pla_p)
    a3 = _pad_axis(a3, m3_p, 0)
    w3 = _pad_axis(_pad_axis(params["w3"][:, :, 0, 0].T, pla_p, 0), c4_p, 1)
    y3_raw, st3 = _matmul_bn_stats(a3, w3.astype(jnp.bfloat16),
                                   in_scale=sc2, in_shift=sh2, m_true=m3)
    sc3, sh3 = _bn_scale_shift(st3, m3, params["g3"], params["b3"], c4_p)

    # ---- shortcut --------------------------------------------------------
    if stride != 1 or cin != cexp:
        # TODO(synk): the stride-s subsampling of x is a wrapper-side JAX slice;
        # expressing it in the kernel's index_map would avoid one gathered copy.
        xs = x[:, ::stride, ::stride, :].reshape(m3, cin)
        xs = _pad_axis(_pad_axis(xs, cin_p, 1), m3_p, 0)
        ws = _pad_axis(_pad_axis(params["ws"][:, :, 0, 0].T, cin_p, 0), c4_p, 1)
        s_raw, sts = _matmul_bn_stats(xs.astype(jnp.bfloat16),
                                      ws.astype(jnp.bfloat16))
        scs, shs = _bn_scale_shift(sts, m3, params["gs"], params["bs"], c4_p)
    else:
        s_raw = _pad_axis(_pad_axis(x.reshape(m1, cin), c4_p, 1), m3_p, 0)
        scs = jnp.ones((1, c4_p), jnp.float32)
        shs = jnp.zeros((1, c4_p), jnp.float32)

    # ---- bn3 + shortcut-bn + residual add + relu (one fused kernel) -----
    out = _residual_bn_relu(y3_raw, sc3, sh3, s_raw, scs, shs)
    out = out[:m3, :cexp].reshape(n, ho, wo, cexp)
    return jnp.transpose(out, (0, 3, 1, 2))              # back to NCHW


# --------------------------------------------------------------------------
# Pure-JAX reference (mirrors the PyTorch forward, NCHW) for validation
# --------------------------------------------------------------------------
def bottleneck_reference(x, params, stride):
    def conv(x, w, s=1, pad="VALID"):
        return lax.conv_general_dilated(
            x, w, (s, s), pad,
            dimension_numbers=("NCHW", "OIHW", "NCHW"),
            precision=lax.Precision.HIGHEST)

    def bn(y, g, b):
        mu = jnp.mean(y, axis=(0, 2, 3), keepdims=True)
        var = jnp.mean(jnp.square(y - mu), axis=(0, 2, 3), keepdims=True)
        return ((y - mu) * lax.rsqrt(var + EPS)
                * g.reshape(1, -1, 1, 1) + b.reshape(1, -1, 1, 1))

    out = jax.nn.relu(bn(conv(x, params["w1"]), params["g1"], params["b1"]))
    out = jax.nn.relu(bn(conv(out, params["w2"], stride, [(1, 1), (1, 1)]),
                         params["g2"], params["b2"]))
    out = bn(conv(out, params["w3"]), params["g3"], params["b3"])
    if "ws" in params:
        sc = bn(conv(x, params["ws"], stride), params["gs"], params["bs"])
    else:
        sc = x
    return jax.nn.relu(out + sc)


# --------------------------------------------------------------------------
if __name__ == "__main__":
    key = jax.random.PRNGKey(0)

    def make_params(key, in_planes, planes, stride):
        cexp = 4 * planes
        ks = jax.random.split(key, 13)
        p = {
            "w1": 0.1 * jax.random.normal(ks[0], (planes, in_planes, 1, 1), jnp.float32),
            "g1": 1.0 + 0.1 * jax.random.normal(ks[1], (planes,), jnp.float32),
            "b1": 0.1 * jax.random.normal(ks[2], (planes,), jnp.float32),
            "w2": 0.1 * jax.random.normal(ks[3], (planes, planes, 3, 3), jnp.float32),
            "g2": 1.0 + 0.1 * jax.random.normal(ks[4], (planes,), jnp.float32),
            "b2": 0.1 * jax.random.normal(ks[5], (planes,), jnp.float32),
            "w3": 0.1 * jax.random.normal(ks[6], (cexp, planes, 1, 1), jnp.float32),
            "g3": 1.0 + 0.1 * jax.random.normal(ks[7], (cexp,), jnp.float32),
            "b3": 0.1 * jax.random.normal(ks[8], (cexp,), jnp.float32),
        }
        if stride != 1 or in_planes != cexp:
            p["ws"] = 0.1 * jax.random.normal(ks[9], (cexp, in_planes, 1, 1), jnp.float32)
            p["gs"] = 1.0 + 0.1 * jax.random.normal(ks[10], (cexp,), jnp.float32)
            p["bs"] = 0.1 * jax.random.normal(ks[11], (cexp,), jnp.float32)
        return p, ks[12]

    configs = [
        # (N, in_planes, H, W, planes, stride)
        (2, 16, 16, 16, 8, 2),    # projection shortcut (stride 2)
        (2, 32, 16, 16, 8, 1),    # identity shortcut
    ]
    for (N, cin, H, W, planes, stride) in configs:
        key, sub = jax.random.split(key)
        params, xkey = make_params(sub, cin, planes, stride)
        x = jax.random.normal(xkey, (N, cin, H, W), jnp.float32)

        fwd = jax.jit(lambda xx, p=params, s=stride: bottleneck_forward(xx, p, s))
        out = jax.block_until_ready(fwd(x))

        ho = (H - 1) // stride + 1
        wo = (W - 1) // stride + 1
        assert out.shape == (N, 4 * planes, ho, wo), out.shape

        ref = jax.block_until_ready(bottleneck_reference(x, params, stride))
        np.testing.assert_allclose(np.asarray(out), np.asarray(ref),
                                   rtol=3e-2, atol=3e-2)

    print("KERNEL_OK")
</pallas_src>

<mosaic_0001>
module attributes {stable_mosaic.version = 11 : i64} {
  func.func @_mm_bn_kernel(%arg0: i32, %arg1: i32, %arg2: memref<128x128xbf16, #tpu.memory_space<vmem>>, %arg3: memref<128x128xbf16, #tpu.memory_space<vmem>>, %arg4: memref<128x128xf32, #tpu.memory_space<vmem>>, %arg5: memref<1x8x128xf32, #tpu.memory_space<vmem>>, %arg6: memref<128x128xf32, #tpu.memory_space<vmem>>) attributes {dimension_semantics = [#tpu.dimension_semantics<parallel>, #tpu.dimension_semantics<arbitrary>], iteration_bounds = array<i64: 1, 1>, scalar_prefetch = 0 : i64, scratch_operands = 1 : i64, tpu.core_type = #tpu.core_type<tc>, window_params = [{transform_indices = @transform_0, window_bounds = array<i64: 128, 128>}, {transform_indices = @transform_1, window_bounds = array<i64: 128, 128>}, {transform_indices = @transform_2, window_bounds = array<i64: 128, 128>}, {transform_indices = @transform_3, window_bounds = array<i64: 1, 8, 128>}]} {
    %c0_i32 = arith.constant 0 : i32
    %0 = arith.cmpi eq, %arg1, %c0_i32 : i32
    %1 = arith.extui %0 : i1 to i32
    %c0_i32_0 = arith.constant 0 : i32
    %2 = arith.cmpi ne, %1, %c0_i32_0 : i32
    scf.if %2 {
      %cst_10 = arith.constant 0.000000e+00 : f32
      %12 = vector.broadcast %cst_10 : f32 to vector<128x128xf32>
      %c0_11 = arith.constant 0 : index
      %c0_12 = arith.constant 0 : index
      %13 = vector.load %arg6[%c0_11, %c0_12] : memref<128x128xf32, #tpu.memory_space<vmem>>, vector<128x128xf32>
      tpu.vector_store %arg6[%c0_11, %c0_12], %12 {strides = array<i32>} : memref<128x128xf32, #tpu.memory_space<vmem>>, vector<128x128xf32>,
    } else {
    }
    %c0 = arith.constant 0 : index
    %c0_1 = arith.constant 0 : index
    %3 = vector.load %arg2[%c0, %c0_1] : memref<128x128xbf16, #tpu.memory_space<vmem>>, vector<128x128xbf16>
    %c0_2 = arith.constant 0 : index
    %c0_3 = arith.constant 0 : index
    %4 = vector.load %arg6[%c0_2, %c0_3] : memref<128x128xf32, #tpu.memory_space<vmem>>, vector<128x128xf32>
    %c0_4 = arith.constant 0 : index
    %c0_5 = arith.constant 0 : index
    %5 = vector.load %arg3[%c0_4, %c0_5] : memref<128x128xbf16, #tpu.memory_space<vmem>>, vector<128x128xbf16>
    %cst = arith.constant dense<0.000000e+00> : vector<128x128xf32>
    %6 = tpu.matmul %3, %5, %cst {dimension_numbers = #tpu.dot_dimension_numbers<[1], [0], [0], [1], [0, 0, 1, 1], [], []>} : vector<128x128xbf16>, vector<128x128xbf16>, vector<128x128xf32> -> vector<128x128xf32>
    %7 = arith.addf %4, %6 : vector<128x128xf32>
    %c0_6 = arith.constant 0 : index
    %c0_7 = arith.constant 0 : index
    %8 = vector.load %arg6[%c0_6, %c0_7] : memref<128x128xf32, #tpu.memory_space<vmem>>, vector<128x128xf32>
    tpu.vector_store %arg6[%c0_6, %c0_7], %7 {strides = array<i32>} : memref<128x128xf32, #tpu.memory_space<vmem>>, vector<128x128xf32>,
    %c0_i32_8 = arith.constant 0 : i32
    %9 = arith.cmpi eq, %arg1, %c0_i32_8 : i32
    %10 = arith.extui %9 : i1 to i32
    %c0_i32_9 = arith.constant 0 : i32
    %11 = arith.cmpi ne, %10, %c0_i32_9 : i32
    scf.if %11 {
      %c0_10 = arith.constant 0 : index
      %c0_11 = arith.constant 0 : index
      %12 = vector.load %arg6[%c0_10, %c0_11] : memref<128x128xf32, #tpu.memory_space<vmem>>, vector<128x128xf32>
      %c0_12 = arith.constant 0 : index
      %c0_13 = arith.constant 0 : index
      %13 = vector.load %arg4[%c0_12, %c0_13] : memref<128x128xf32, #tpu.memory_space<vmem>>, vector<128x128xf32>
      tpu.vector_store %arg4[%c0_12, %c0_13], %12 {strides = array<i32>} : memref<128x128xf32, #tpu.memory_space<vmem>>, vector<128x128xf32>,
      %cst_14 = arith.constant dense<0.000000e+00> : vector<128xf32>
      %14 = vector.multi_reduction <add>, %12, %cst_14 [0] : vector<128x128xf32> to vector<128xf32>
      %15 = vector.shape_cast %14 : vector<128xf32> to vector<1x128xf32>
      %16 = arith.mulf %12, %12 : vector<128x128xf32>
      %cst_15 = arith.constant dense<0.000000e+00> : vector<128xf32>
      %17 = vector.multi_reduction <add>, %16, %cst_15 [0] : vector<128x128xf32> to vector<128xf32>
      %18 = vector.shape_cast %17 : vector<128xf32> to vector<1x128xf32>
      %cst_16 = arith.constant 0.000000e+00 : f32
      %19 = vector.broadcast %cst_16 : f32 to vector<1x128xf32>
      %20 = tpu.concatenate %15, %18, %19, %19, %19, %19, %19, %19 in 0 : vector<1x128xf32>, vector<1x128xf32>, vector<1x128xf32>, vector<1x128xf32>, vector<1x128xf32>, vector<1x128xf32>, vector<1x128xf32>, vector<1x128xf32> -> vector<8x128xf32>
      %21 = vector.shape_cast %20 : vector<8x128xf32> to vector<1x8x128xf32>
      %c0_17 = arith.constant 0 : index
      %c0_18 = arith.constant 0 : index
      %c0_19 = arith.constant 0 : index
      %22 = vector.load %arg5[%c0_17, %c0_18, %c0_19] : memref<1x8x128xf32, #tpu.memory_space<vmem>>, vector<1x8x128xf32>
      tpu.vector_store %arg5[%c0_17, %c0_18, %c0_19], %21 {strides = array<i32>} : memref<1x8x128xf32, #tpu.memory_space<vmem>>, vector<1x8x128xf32>,
    } else {
    }
    return
  }
  func.func @transform_0(%arg0: i32, %arg1: i32) -> (i32, i32) {
    %c0_i32 = arith.constant 0 : i32
    return %arg0, %arg1 : i32, i32
  }
  func.func @transform_1(%arg0: i32, %arg1: i32) -> (i32, i32) {
    %c0_i32 = arith.constant 0 : i32
    %c0_i32_0 = arith.constant 0 : i32
    return %arg1, %c0_i32 : i32, i32
  }
  func.func @transform_2(%arg0: i32, %arg1: i32) -> (i32, i32) {
    %c0_i32 = arith.constant 0 : i32
    %c0_i32_0 = arith.constant 0 : i32
    return %arg0, %c0_i32 : i32, i32
  }
  func.func @transform_3(%arg0: i32, %arg1: i32) -> (i32, i32, i32) {
    %c0_i32 = arith.constant 0 : i32
    %c0_i32_0 = arith.constant 0 : i32
    %c0_i32_1 = arith.constant 0 : i32
    return %arg0, %c0_i32, %c0_i32_0 : i32, i32, i32
  }
}

module attributes {stable_mosaic.version = 11 : i64} {
  func.func @_mm_bn_kernel(%arg0: i32, %arg1: i32, %arg2: memref<256x128xbf16, #tpu.memory_space<vmem>>, %arg3: memref<128x128xbf16, #tpu.memory_space<vmem>>, %arg4: memref<256x128xf32, #tpu.memory_space<vmem>>, %arg5: memref<1x8x128xf32, #tpu.memory_space<vmem>>, %arg6: memref<256x128xf32, #tpu.memory_space<vmem>>) attributes {dimension_semantics = [#tpu.dimension_semantics<parallel>, #tpu.dimension_semantics<arbitrary>], iteration_bounds = array<i64: 2, 1>, scalar_prefetch = 0 : i64, scratch_operands = 1 : i64, tpu.core_type = #tpu.core_type<tc>, window_params = [{transform_indices = @transform_0, window_bounds = array<i64: 256, 128>}, {transform_indices = @transform_1, window_bounds = array<i64: 128, 128>}, {transform_indices = @transform_2, window_bounds = array<i64: 256, 128>}, {transform_indices = @transform_3, window_bounds = array<i64: 1, 8, 128>}]} {
    %c0_i32 = arith.constant 0 : i32
    %0 = arith.cmpi eq, %arg1, %c0_i32 : i32
    %1 = arith.extui %0 : i1 to i32
    %c0_i32_0 = arith.constant 0 : i32
    %2 = arith.cmpi ne, %1, %c0_i32_0 : i32
    scf.if %2 {
      %cst_10 = arith.constant 0.000000e+00 : f32
      %12 = vector.broadcast %cst_10 : f32 to vector<256x128xf32>
      %c0_11 = arith.constant 0 : index
      %c0_12 = arith.constant 0 : index
      %13 = vector.load %arg6[%c0_11, %c0_12] : memref<256x128xf32, #tpu.memory_space<vmem>>, vector<256x128xf32>
      tpu.vector_store %arg6[%c0_11, %c0_12], %12 {strides = array<i32>} : memref<256x128xf32, #tpu.memory_space<vmem>>, vector<256x128xf32>,
    } else {
    }
    %c0 = arith.constant 0 : index
    %c0_1 = arith.constant 0 : index
    %3 = vector.load %arg2[%c0, %c0_1] : memref<256x128xbf16, #tpu.memory_space<vmem>>, vector<256x128xbf16>
    %c0_2 = arith.constant 0 : index
    %c0_3 = arith.constant 0 : index
    %4 = vector.load %arg6[%c0_2, %c0_3] : memref<256x128xf32, #tpu.memory_space<vmem>>, vector<256x128xf32>
    %c0_4 = arith.constant 0 : index
    %c0_5 = arith.constant 0 : index
    %5 = vector.load %arg3[%c0_4, %c0_5] : memref<128x128xbf16, #tpu.memory_space<vmem>>, vector<128x128xbf16>
    %cst = arith.constant dense<0.000000e+00> : vector<256x128xf32>
    %6 = tpu.matmul %3, %5, %cst {dimension_numbers = #tpu.dot_dimension_numbers<[1], [0], [0], [1], [0, 0, 1, 1], [], []>} : vector<256x128xbf16>, vector<128x128xbf16>, vector<256x128xf32> -> vector<256x128xf32>
    %7 = arith.addf %4, %6 : vector<256x128xf32>
    %c0_6 = arith.constant 0 : index
    %c0_7 = arith.constant 0 : index
    %8 = vector.load %arg6[%c0_6, %c0_7] : memref<256x128xf32, #tpu.memory_space<vmem>>, vector<256x128xf32>
    tpu.vector_store %arg6[%c0_6, %c0_7], %7 {strides = array<i32>} : memref<256x128xf32, #tpu.memory_space<vmem>>, vector<256x128xf32>,
    %c0_i32_8 = arith.constant 0 : i32
    %9 = arith.cmpi eq, %arg1, %c0_i32_8 : i32
    %10 = arith.extui %9 : i1 to i32
    %c0_i32_9 = arith.constant 0 : i32
    %11 = arith.cmpi ne, %10, %c0_i32_9 : i32
    scf.if %11 {
      %c0_10 = arith.constant 0 : index
      %c0_11 = arith.constant 0 : index
      %12 = vector.load %arg6[%c0_10, %c0_11] : memref<256x128xf32, #tpu.memory_space<vmem>>, vector<256x128xf32>
      %c0_12 = arith.constant 0 : index
      %c0_13 = arith.constant 0 : index
      %13 = vector.load %arg4[%c0_12, %c0_13] : memref<256x128xf32, #tpu.memory_space<vmem>>, vector<256x128xf32>
      tpu.vector_store %arg4[%c0_12, %c0_13], %12 {strides = array<i32>} : memref<256x128xf32, #tpu.memory_space<vmem>>, vector<256x128xf32>,
      %cst_14 = arith.constant dense<0.000000e+00> : vector<128xf32>
      %14 = vector.multi_reduction <add>, %12, %cst_14 [0] : vector<256x128xf32> to vector<128xf32>
      %15 = vector.shape_cast %14 : vector<128xf32> to vector<1x128xf32>
      %16 = arith.mulf %12, %12 : vector<256x128xf32>
      %cst_15 = arith.constant dense<0.000000e+00> : vector<128xf32>
      %17 = vector.multi_reduction <add>, %16, %cst_15 [0] : vector<256x128xf32> to vector<128xf32>
      %18 = vector.shape_cast %17 : vector<128xf32> to vector<1x128xf32>
      %cst_16 = arith.constant 0.000000e+00 : f32
      %19 = vector.broadcast %cst_16 : f32 to vector<1x128xf32>
      %20 = tpu.concatenate %15, %18, %19, %19, %19, %19, %19, %19 in 0 : vector<1x128xf32>, vector<1x128xf32>, vector<1x128xf32>, vector<1x128xf32>, vector<1x128xf32>, vector<1x128xf32>, vector<1x128xf32>, vector<1x128xf32> -> vector<8x128xf32>
      %21 = vector.shape_cast %20 : vector<8x128xf32> to vector<1x8x128xf32>
      %c0_17 = arith.constant 0 : index
      %c0_18 = arith.constant 0 : index
      %c0_19 = arith.constant 0 : index
      %22 = vector.load %arg5[%c0_17, %c0_18, %c0_19] : memref<1x8x128xf32, #tpu.memory_space<vmem>>, vector<1x8x128xf32>
      tpu.vector_store %arg5[%c0_17, %c0_18, %c0_19], %21 {strides = array<i32>} : memref<1x8x128xf32, #tpu.memory_space<vmem>>, vector<1x8x128xf32>,
    } else {
    }
    return
  }
  func.func @transform_0(%arg0: i32, %arg1: i32) -> (i32, i32) {
    %c0_i32 = arith.constant 0 : i32
    return %arg0, %arg1 : i32, i32
  }
  func.func @transform_1(%arg0: i32, %arg1: i32) -> (i32, i32) {
    %c0_i32 = arith.constant 0 : i32
    %c0_i32_0 = arith.constant 0 : i32
    return %arg1, %c0_i32 : i32, i32
  }
  func.func @transform_2(%arg0: i32, %arg1: i32) -> (i32, i32) {
    %c0_i32 = arith.constant 0 : i32
    %c0_i32_0 = arith.constant 0 : i32
    return %arg0, %c0_i32 : i32, i32
  }
  func.func @transform_3(%arg0: i32, %arg1: i32) -> (i32, i32, i32) {
    %c0_i32 = arith.constant 0 : i32
    %c0_i32_0 = arith.constant 0 : i32
    %c0_i32_1 = arith.constant 0 : i32
    return %arg0, %c0_i32, %c0_i32_0 : i32, i32, i32
  }
}

module attributes {stable_mosaic.version = 11 : i64} {
  func.func @_affine_kernel(%arg0: i32, %arg1: memref<256x128xf32, #tpu.memory_space<vmem>>, %arg2: memref<1x128xf32, #tpu.memory_space<vmem>>, %arg3: memref<1x128xf32, #tpu.memory_space<vmem>>, %arg4: memref<256x128xbf16, #tpu.memory_space<vmem>>) attributes {dimension_semantics = [#tpu.dimension_semantics<parallel>], iteration_bounds = array<i64: 2>, scalar_prefetch = 0 : i64, scratch_operands = 0 : i64, tpu.core_type = #tpu.core_type<tc>, window_params = [{transform_indices = @transform_0, window_bounds = array<i64: 256, 128>}, {pipeline_mode = #tpu.pipeline_mode<synchronous>, transform_indices = @transform_1, window_bounds = array<i64: 1, 128>}, {pipeline_mode = #tpu.pipeline_mode<synchronous>, transform_indices = @transform_2, window_bounds = array<i64: 1, 128>}, {transform_indices = @transform_3, window_bounds = array<i64: 256, 128>}]} {
    %c0 = arith.constant 0 : index
    %c0_0 = arith.constant 0 : index
    %0 = vector.load %arg1[%c0, %c0_0] : memref<256x128xf32, #tpu.memory_space<vmem>>, vector<256x128xf32>
    %c0_1 = arith.constant 0 : index
    %c0_2 = arith.constant 0 : index
    %1 = vector.load %arg2[%c0_1, %c0_2] : memref<1x128xf32, #tpu.memory_space<vmem>>, vector<1x128xf32>
    %2 = vector.broadcast %1 : vector<1x128xf32> to vector<256x128xf32>
    %3 = arith.mulf %0, %2 : vector<256x128xf32>
    %c0_3 = arith.constant 0 : index
    %c0_4 = arith.constant 0 : index
    %4 = vector.load %arg3[%c0_3, %c0_4] : memref<1x128xf32, #tpu.memory_space<vmem>>, vector<1x128xf32>
    %5 = vector.broadcast %4 : vector<1x128xf32> to vector<256x128xf32>
    %6 = arith.addf %3, %5 : vector<256x128xf32>
    %cst = arith.constant 0.000000e+00 : f32
    %7 = vector.broadcast %cst : f32 to vector<256x128xf32>
    %8 = arith.maximumf %6, %7 : vector<256x128xf32>
    %9 = arith.truncf %8 : vector<256x128xf32> to vector<256x128xbf16>
    %c0_5 = arith.constant 0 : index
    %c0_6 = arith.constant 0 : index
    %10 = vector.load %arg4[%c0_5, %c0_6] : memref<256x128xbf16, #tpu.memory_space<vmem>>, vector<256x128xbf16>
    tpu.vector_store %arg4[%c0_5, %c0_6], %9 {strides = array<i32>} : memref<256x128xbf16, #tpu.memory_space<vmem>>, vector<256x128xbf16>,
    return
  }
  func.func @transform_0(%arg0: i32) -> (i32, i32) {
    %c0_i32 = arith.constant 0 : i32
    %c0_i32_0 = arith.constant 0 : i32
    return %arg0, %c0_i32 : i32, i32
  }
  func.func @transform_1(%arg0: i32) -> (i32, i32) {
    %c0_i32 = arith.constant 0 : i32
    %c0_i32_0 = arith.constant 0 : i32
    %c0_i32_1 = arith.constant 0 : i32
    return %c0_i32, %c0_i32_0 : i32, i32
  }
  func.func @transform_2(%arg0: i32) -> (i32, i32) {
    %c0_i32 = arith.constant 0 : i32
    %c0_i32_0 = arith.constant 0 : i32
    %c0_i32_1 = arith.constant 0 : i32
    return %c0_i32, %c0_i32_0 : i32, i32
  }
  func.func @transform_3(%arg0: i32) -> (i32, i32) {
    %c0_i32 = arith.constant 0 : i32
    %c0_i32_0 = arith.constant 0 : i32
    return %arg0, %c0_i32 : i32, i32
  }
}

module attributes {stable_mosaic.version = 11 : i64} {
  func.func @_mm_bn_kernel(%arg0: i32, %arg1: i32, %arg2: memref<128x128xf32, #tpu.memory_space<vmem>>, %arg3: memref<1x128xf32, #tpu.memory_space<vmem>>, %arg4: memref<1x128xf32, #tpu.memory_space<vmem>>, %arg5: memref<128x128xbf16, #tpu.memory_space<vmem>>, %arg6: memref<128x128xf32, #tpu.memory_space<vmem>>, %arg7: memref<1x8x128xf32, #tpu.memory_space<vmem>>, %arg8: memref<128x128xf32, #tpu.memory_space<vmem>>) attributes {dimension_semantics = [#tpu.dimension_semantics<parallel>, #tpu.dimension_semantics<arbitrary>], iteration_bounds = array<i64: 1, 1>, scalar_prefetch = 0 : i64, scratch_operands = 1 : i64, tpu.core_type = #tpu.core_type<tc>, window_params = [{transform_indices = @transform_0, window_bounds = array<i64: 128, 128>}, {transform_indices = @transform_1, window_bounds = array<i64: 1, 128>}, {transform_indices = @transform_2, window_bounds = array<i64: 1, 128>}, {transform_indices = @transform_3, window_bounds = array<i64: 128, 128>}, {transform_indices = @transform_4, window_bounds = array<i64: 128, 128>}, {transform_indices = @transform_5, window_bounds = array<i64: 1, 8, 128>}]} {
    %c0_i32 = arith.constant 0 : i32
    %0 = arith.cmpi eq, %arg1, %c0_i32 : i32
    %1 = arith.extui %0 : i1 to i32
    %c0_i32_0 = arith.constant 0 : i32
    %2 = arith.cmpi ne, %1, %c0_i32_0 : i32
    scf.if %2 {
      %cst_17 = arith.constant 0.000000e+00 : f32
      %29 = vector.broadcast %cst_17 : f32 to vector<128x128xf32>
      %c0_18 = arith.constant 0 : index
      %c0_19 = arith.constant 0 : index
      %30 = vector.load %arg8[%c0_18, %c0_19] : memref<128x128xf32, #tpu.memory_space<vmem>>, vector<128x128xf32>
      tpu.vector_store %arg8[%c0_18, %c0_19], %29 {strides = array<i32>} : memref<128x128xf32, #tpu.memory_space<vmem>>, vector<128x128xf32>,
    } else {
    }
    %c0 = arith.constant 0 : index
    %c0_1 = arith.constant 0 : index
    %3 = vector.load %arg2[%c0, %c0_1] : memref<128x128xf32, #tpu.memory_space<vmem>>, vector<128x128xf32>
    %c0_2 = arith.constant 0 : index
    %c0_3 = arith.constant 0 : index
    %4 = vector.load %arg3[%c0_2, %c0_3] : memref<1x128xf32, #tpu.memory_space<vmem>>, vector<1x128xf32>
    %5 = vector.broadcast %4 : vector<1x128xf32> to vector<128x128xf32>
    %6 = arith.mulf %3, %5 : vector<128x128xf32>
    %c0_4 = arith.constant 0 : index
    %c0_5 = arith.constant 0 : index
    %7 = vector.load %arg4[%c0_4, %c0_5] : memref<1x128xf32, #tpu.memory_space<vmem>>, vector<1x128xf32>
    %8 = vector.broadcast %7 : vector<1x128xf32> to vector<128x128xf32>
    %9 = arith.addf %6, %8 : vector<128x128xf32>
    %cst = arith.constant 0.000000e+00 : f32
    %10 = vector.broadcast %cst : f32 to vector<128x128xf32>
    %11 = arith.maximumf %9, %10 : vector<128x128xf32>
    %12 = tpu.iota {dimensions = array<i32: 0>} : vector<128x128xi32>
    %c128_i32 = arith.constant 128 : i32
    %13 = arith.muli %arg0, %c128_i32 : i32
    %14 = vector.broadcast %13 : i32 to vector<128x128xi32>
    %15 = arith.addi %12, %14 : vector<128x128xi32>
    %c128_i32_6 = arith.constant 128 : i32
    %16 = vector.broadcast %c128_i32_6 : i32 to vector<128x128xi32>
    %17 = arith.cmpi slt, %15, %16 : vector<128x128xi32>
    %cst_7 = arith.constant 0.000000e+00 : f32
    %18 = vector.broadcast %cst_7 : f32 to vector<128x128xf32>
    %19 = arith.select %17, %11, %18 : vector<128x128xi1>, vector<128x128xf32>
    %c0_8 = arith.constant 0 : index
    %c0_9 = arith.constant 0 : index
    %20 = vector.load %arg8[%c0_8, %c0_9] : memref<128x128xf32, #tpu.memory_space<vmem>>, vector<128x128xf32>
    %21 = arith.truncf %19 : vector<128x128xf32> to vector<128x128xbf16>
    %c0_10 = arith.constant 0 : index
    %c0_11 = arith.constant 0 : index
    %22 = vector.load %arg5[%c0_10, %c0_11] : memref<128x128xbf16, #tpu.memory_space<vmem>>, vector<128x128xbf16>
    %cst_12 = arith.constant dense<0.000000e+00> : vector<128x128xf32>
    %23 = tpu.matmul %21, %22, %cst_12 {dimension_numbers = #tpu.dot_dimension_numbers<[1], [0], [0], [1], [0, 0, 1, 1], [], []>} : vector<128x128xbf16>, vector<128x128xbf16>, vector<128x128xf32> -> vector<128x128xf32>
    %24 = arith.addf %20, %23 : vector<128x128xf32>
    %c0_13 = arith.constant 0 : index
    %c0_14 = arith.constant 0 : index
    %25 = vector.load %arg8[%c0_13, %c0_14] : memref<128x128xf32, #tpu.memory_space<vmem>>, vector<128x128xf32>
    tpu.vector_store %arg8[%c0_13, %c0_14], %24 {strides = array<i32>} : memref<128x128xf32, #tpu.memory_space<vmem>>, vector<128x128xf32>,
    %c0_i32_15 = arith.constant 0 : i32
    %26 = arith.cmpi eq, %arg1, %c0_i32_15 : i32
    %27 = arith.extui %26 : i1 to i32
    %c0_i32_16 = arith.constant 0 : i32
    %28 = arith.cmpi ne, %27, %c0_i32_16 : i32
    scf.if %28 {
      %c0_17 = arith.constant 0 : index
      %c0_18 = arith.constant 0 : index
      %29 = vector.load %arg8[%c0_17, %c0_18] : memref<128x128xf32, #tpu.memory_space<vmem>>, vector<128x128xf32>
      %c0_19 = arith.constant 0 : index
      %c0_20 = arith.constant 0 : index
      %30 = vector.load %arg6[%c0_19, %c0_20] : memref<128x128xf32, #tpu.memory_space<vmem>>, vector<128x128xf32>
      tpu.vector_store %arg6[%c0_19, %c0_20], %29 {strides = array<i32>} : memref<128x128xf32, #tpu.memory_space<vmem>>, vector<128x128xf32>,
      %cst_21 = arith.constant dense<0.000000e+00> : vector<128xf32>
      %31 = vector.multi_reduction <add>, %29, %cst_21 [0] : vector<128x128xf32> to vector<128xf32>
      %32 = vector.shape_cast %31 : vector<128xf32> to vector<1x128xf32>
      %33 = arith.mulf %29, %29 : vector<128x128xf32>
      %cst_22 = arith.constant dense<0.000000e+00> : vector<128xf32>
      %34 = vector.multi_reduction <add>, %33, %cst_22 [0] : vector<128x128xf32> to vector<128xf32>
      %35 = vector.shape_cast %34 : vector<128xf32> to vector<1x128xf32>
      %cst_23 = arith.constant 0.000000e+00 : f32
      %36 = vector.broadcast %cst_23 : f32 to vector<1x128xf32>
      %37 = tpu.concatenate %32, %35, %36, %36, %36, %36, %36, %36 in 0 : vector<1x128xf32>, vector<1x128xf32>, vector<1x128xf32>, vector<1x128xf32>, vector<1x128xf32>, vector<1x128xf32>, vector<1x128xf32>, vector<1x128xf32> -> vector<8x128xf32>
      %38 = vector.shape_cast %37 : vector<8x128xf32> to vector<1x8x128xf32>
      %c0_24 = arith.constant 0 : index
      %c0_25 = arith.constant 0 : index
      %c0_26 = arith.constant 0 : index
      %39 = vector.load %arg7[%c0_24, %c0_25, %c0_26] : memref<1x8x128xf32, #tpu.memory_space<vmem>>, vector<1x8x128xf32>
      tpu.vector_store %arg7[%c0_24, %c0_25, %c0_26], %38 {strides = array<i32>} : memref<1x8x128xf32, #tpu.memory_space<vmem>>, vector<1x8x128xf32>,
    } else {
    }
    return
  }
  func.func @transform_0(%arg0: i32, %arg1: i32) -> (i32, i32) {
    %c0_i32 = arith.constant 0 : i32
    return %arg0, %arg1 : i32, i32
  }
  func.func @transform_1(%arg0: i32, %arg1: i32) -> (i32, i32) {
    %c0_i32 = arith.constant 0 : i32
    %c0_i32_0 = arith.constant 0 : i32
    return %c0_i32, %arg1 : i32, i32
  }
  func.func @transform_2(%arg0: i32, %arg1: i32) -> (i32, i32) {
    %c0_i32 = arith.constant 0 : i32
    %c0_i32_0 = arith.constant 0 : i32
    return %c0_i32, %arg1 : i32, i32
  }
  func.func @transform_3(%arg0: i32, %arg1: i32) -> (i32, i32) {
    %c0_i32 = arith.constant 0 : i32
    %c0_i32_0 = arith.constant 0 : i32
    return %arg1, %c0_i32 : i32, i32
  }
  func.func @transform_4(%arg0: i32, %arg1: i32) -> (i32, i32) {
    %c0_i32 = arith.constant 0 : i32
    %c0_i32_0 = arith.constant 0 : i32
    return %arg0, %c0_i32 : i32, i32
  }
  func.func @transform_5(%arg0: i32, %arg1: i32) -> (i32, i32, i32) {
    %c0_i32 = arith.constant 0 : i32
    %c0_i32_0 = arith.constant 0 : i32
    %c0_i32_1 = arith.constant 0 : i32
    return %arg0, %c0_i32, %c0_i32_0 : i32, i32, i32
  }
}

module attributes {stable_mosaic.version = 11 : i64} {
  func.func @_residual_kernel(%arg0: i32, %arg1: memref<128x128xf32, #tpu.memory_space<vmem>>, %arg2: memref<1x128xf32, #tpu.memory_space<vmem>>, %arg3: memref<1x128xf32, #tpu.memory_space<vmem>>, %arg4: memref<128x128xf32, #tpu.memory_space<vmem>>, %arg5: memref<1x128xf32, #tpu.memory_space<vmem>>, %arg6: memref<1x128xf32, #tpu.memory_space<vmem>>, %arg7: memref<128x128xf32, #tpu.memory_space<vmem>>) attributes {dimension_semantics = [#tpu.dimension_semantics<parallel>], iteration_bounds = array<i64: 1>, scalar_prefetch = 0 : i64, scratch_operands = 0 : i64, tpu.core_type = #tpu.core_type<tc>, window_params = [{transform_indices = @transform_0, window_bounds = array<i64: 128, 128>}, {pipeline_mode = #tpu.pipeline_mode<synchronous>, transform_indices = @transform_1, window_bounds = array<i64: 1, 128>}, {pipeline_mode = #tpu.pipeline_mode<synchronous>, transform_indices = @transform_2, window_bounds = array<i64: 1, 128>}, {transform_indices = @transform_3, window_bounds = array<i64: 128, 128>}, {pipeline_mode = #tpu.pipeline_mode<synchronous>, transform_indices = @transform_4, window_bounds = array<i64: 1, 128>}, {pipeline_mode = #tpu.pipeline_mode<synchronous>, transform_indices = @transform_5, window_bounds = array<i64: 1, 128>}, {transform_indices = @transform_6, window_bounds = array<i64: 128, 128>}]} {
    %c0 = arith.constant 0 : index
    %c0_0 = arith.constant 0 : index
    %0 = vector.load %arg1[%c0, %c0_0] : memref<128x128xf32, #tpu.memory_space<vmem>>, vector<128x128xf32>
    %c0_1 = arith.constant 0 : index
    %c0_2 = arith.constant 0 : index
    %1 = vector.load %arg2[%c0_1, %c0_2] : memref<1x128xf32, #tpu.memory_space<vmem>>, vector<1x128xf32>
    %2 = vector.broadcast %1 : vector<1x128xf32> to vector<128x128xf32>
    %3 = arith.mulf %0, %2 : vector<128x128xf32>
    %c0_3 = arith.constant 0 : index
    %c0_4 = arith.constant 0 : index
    %4 = vector.load %arg3[%c0_3, %c0_4] : memref<1x128xf32, #tpu.memory_space<vmem>>, vector<1x128xf32>
    %5 = vector.broadcast %4 : vector<1x128xf32> to vector<128x128xf32>
    %6 = arith.addf %3, %5 : vector<128x128xf32>
    %c0_5 = arith.constant 0 : index
    %c0_6 = arith.constant 0 : index
    %7 = vector.load %arg4[%c0_5, %c0_6] : memref<128x128xf32, #tpu.memory_space<vmem>>, vector<128x128xf32>
    %c0_7 = arith.constant 0 : index
    %c0_8 = arith.constant 0 : index
    %8 = vector.load %arg5[%c0_7, %c0_8] : memref<1x128xf32, #tpu.memory_space<vmem>>, vector<1x128xf32>
    %9 = vector.broadcast %8 : vector<1x128xf32> to vector<128x128xf32>
    %10 = arith.mulf %7, %9 : vector<128x128xf32>
    %c0_9 = arith.constant 0 : index
    %c0_10 = arith.constant 0 : index
    %11 = vector.load %arg6[%c0_9, %c0_10] : memref<1x128xf32, #tpu.memory_space<vmem>>, vector<1x128xf32>
    %12 = vector.broadcast %11 : vector<1x128xf32> to vector<128x128xf32>
    %13 = arith.addf %10, %12 : vector<128x128xf32>
    %14 = arith.addf %6, %13 : vector<128x128xf32>
    %cst = arith.constant 0.000000e+00 : f32
    %15 = vector.broadcast %cst : f32 to vector<128x128xf32>
    %16 = arith.maximumf %14, %15 : vector<128x128xf32>
    %c0_11 = arith.constant 0 : index
    %c0_12 = arith.constant 0 : index
    %17 = vector.load %arg7[%c0_11, %c0_12] : memref<128x128xf32, #tpu.memory_space<vmem>>, vector<128x128xf32>
    tpu.vector_store %arg7[%c0_11, %c0_12], %16 {strides = array<i32>} : memref<128x128xf32, #tpu.memory_space<vmem>>, vector<128x128xf32>,
    return
  }
  func.func @transform_0(%arg0: i32) -> (i32, i32) {
    %c0_i32 = arith.constant 0 : i32
    %c0_i32_0 = arith.constant 0 : i32
    return %arg0, %c0_i32 : i32, i32
  }
  func.func @transform_1(%arg0: i32) -> (i32, i32) {
    %c0_i32 = arith.constant 0 : i32
    %c0_i32_0 = arith.constant 0 : i32
    %c0_i32_1 = arith.constant 0 : i32
    return %c0_i32, %c0_i32_0 : i32, i32
  }
  func.func @transform_2(%arg0: i32) -> (i32, i32) {
    %c0_i32 = arith.constant 0 : i32
    %c0_i32_0 = arith.constant 0 : i32
    %c0_i32_1 = arith.constant 0 : i32
    return %c0_i32, %c0_i32_0 : i32, i32
  }
  func.func @transform_3(%arg0: i32) -> (i32, i32) {
    %c0_i32 = arith.constant 0 : i32
    %c0_i32_0 = arith.constant 0 : i32
    return %arg0, %c0_i32 : i32, i32
  }
  func.func @transform_4(%arg0: i32) -> (i32, i32) {
    %c0_i32 = arith.constant 0 : i32
    %c0_i32_0 = arith.constant 0 : i32
    %c0_i32_1 = arith.constant 0 : i32
    return %c0_i32, %c0_i32_0 : i32, i32
  }
  func.func @transform_5(%arg0: i32) -> (i32, i32) {
    %c0_i32 = arith.constant 0 : i32
    %c0_i32_0 = arith.constant 0 : i32
    %c0_i32_1 = arith.constant 0 : i32
    return %c0_i32, %c0_i32_0 : i32, i32
  }
  func.func @transform_6(%arg0: i32) -> (i32, i32) {
    %c0_i32 = arith.constant 0 : i32
    %c0_i32_0 = arith.constant 0 : i32
    return %arg0, %c0_i32 : i32, i32
  }
}

module attributes {stable_mosaic.version = 11 : i64} {
  func.func @_conv3x3_kernel(%arg0: i32, %arg1: memref<4x1x10x10x128xbf16, #tpu.memory_space<vmem>>, %arg2: memref<9x128x128xbf16, #tpu.memory_space<vmem>>, %arg3: memref<1x64x128xf32, #tpu.memory_space<vmem>>, %arg4: memref<1x8x128xf32, #tpu.memory_space<vmem>>, %arg5: memref<64x128xf32, #tpu.memory_space<vmem>>) attributes {dimension_semantics = [#tpu.dimension_semantics<parallel>], iteration_bounds = array<i64: 2>, scalar_prefetch = 0 : i64, scratch_operands = 1 : i64, tpu.core_type = #tpu.core_type<tc>, window_params = [{transform_indices = @transform_0, window_bounds = array<i64: 4, 1, 10, 10, 128>}, {pipeline_mode = #tpu.pipeline_mode<synchronous>, transform_indices = @transform_1, window_bounds = array<i64: 9, 128, 128>}, {transform_indices = @transform_2, window_bounds = array<i64: 1, 64, 128>}, {transform_indices = @transform_3, window_bounds = array<i64: 1, 8, 128>}]} {
    %cst = arith.constant 0.000000e+00 : f32
    %0 = vector.broadcast %cst : f32 to vector<64x128xf32>
    %c0 = arith.constant 0 : index
    %c0_0 = arith.constant 0 : index
    %1 = vector.load %arg5[%c0, %c0_0] : memref<64x128xf32, #tpu.memory_space<vmem>>, vector<64x128xf32>
    tpu.vector_store %arg5[%c0, %c0_0], %0 {strides = array<i32>} : memref<64x128xf32, #tpu.memory_space<vmem>>, vector<64x128xf32>,
    %c0_1 = arith.constant 0 : index
    %c0_2 = arith.constant 0 : index
    %c0_3 = arith.constant 0 : index
    %c0_4 = arith.constant 0 : index
    %c0_5 = arith.constant 0 : index
    %2 = vector.load %arg1[%c0_1, %c0_2, %c0_3, %c0_4, %c0_5] : memref<4x1x10x10x128xbf16, #tpu.memory_space<vmem>>, vector<1x1x8x8x128xbf16>
    %3 = vector.shape_cast %2 : vector<1x1x8x8x128xbf16> to vector<8x8x128xbf16>
    %4 = vector.shape_cast %3 : vector<8x8x128xbf16> to vector<64x128xbf16>
    %c0_6 = arith.constant 0 : index
    %c0_7 = arith.constant 0 : index
    %5 = vector.load %arg5[%c0_6, %c0_7] : memref<64x128xf32, #tpu.memory_space<vmem>>, vector<64x128xf32>
    %c0_8 = arith.constant 0 : index
    %c0_9 = arith.constant 0 : index
    %c0_10 = arith.constant 0 : index
    %6 = vector.load %arg2[%c0_8, %c0_9, %c0_10] : memref<9x128x128xbf16, #tpu.memory_space<vmem>>, vector<1x128x128xbf16>
    %7 = vector.shape_cast %6 : vector<1x128x128xbf16> to vector<128x128xbf16>
    %cst_11 = arith.constant dense<0.000000e+00> : vector<64x128xf32>
    %8 = tpu.matmul %4, %7, %cst_11 {dimension_numbers = #tpu.dot_dimension_numbers<[1], [0], [0], [1], [0, 0, 1, 1], [], []>} : vector<64x128xbf16>, vector<128x128xbf16>, vector<64x128xf32> -> vector<64x128xf32>
    %9 = arith.addf %5, %8 : vector<64x128xf32>
    %c0_12 = arith.constant 0 : index
    %c0_13 = arith.constant 0 : index
    %10 = vector.load %arg5[%c0_12, %c0_13] : memref<64x128xf32, #tpu.memory_space<vmem>>, vector<64x128xf32>
    tpu.vector_store %arg5[%c0_12, %c0_13], %9 {strides = array<i32>} : memref<64x128xf32, #tpu.memory_space<vmem>>, vector<64x128xf32>,
    %c1 = arith.constant 1 : index
    %c0_14 = arith.constant 0 : index
    %c0_15 = arith.constant 0 : index
    %c0_16 = arith.constant 0 : index
    %c0_17 = arith.constant 0 : index
    %11 = vector.load %arg1[%c1, %c0_14, %c0_15, %c0_16, %c0_17] : memref<4x1x10x10x128xbf16, #tpu.memory_space<vmem>>, vector<1x1x8x8x128xbf16>
    %12 = vector.shape_cast %11 : vector<1x1x8x8x128xbf16> to vector<8x8x128xbf16>
    %13 = vector.shape_cast %12 : vector<8x8x128xbf16> to vector<64x128xbf16>
    %c0_18 = arith.constant 0 : index
    %c0_19 = arith.constant 0 : index
    %14 = vector.load %arg5[%c0_18, %c0_19] : memref<64x128xf32, #tpu.memory_space<vmem>>, vector<64x128xf32>
    %c1_20 = arith.constant 1 : index
    %c0_21 = arith.constant 0 : index
    %c0_22 = arith.constant 0 : index
    %15 = vector.load %arg2[%c1_20, %c0_21, %c0_22] : memref<9x128x128xbf16, #tpu.memory_space<vmem>>, vector<1x128x128xbf16>
    %16 = vector.shape_cast %15 : vector<1x128x128xbf16> to vector<128x128xbf16>
    %cst_23 = arith.constant dense<0.000000e+00> : vector<64x128xf32>
    %17 = tpu.matmul %13, %16, %cst_23 {dimension_numbers = #tpu.dot_dimension_numbers<[1], [0], [0], [1], [0, 0, 1, 1], [], []>} : vector<64x128xbf16>, vector<128x128xbf16>, vector<64x128xf32> -> vector<64x128xf32>
    %18 = arith.addf %14, %17 : vector<64x128xf32>
    %c0_24 = arith.constant 0 : index
    %c0_25 = arith.constant 0 : index
    %19 = vector.load %arg5[%c0_24, %c0_25] : memref<64x128xf32, #tpu.memory_space<vmem>>, vector<64x128xf32>
    tpu.vector_store %arg5[%c0_24, %c0_25], %18 {strides = array<i32>} : memref<64x128xf32, #tpu.memory_space<vmem>>, vector<64x128xf32>,
    %c0_26 = arith.constant 0 : index
    %c0_27 = arith.constant 0 : index
    %c0_28 = arith.constant 0 : index
    %c1_29 = arith.constant 1 : index
    %c0_30 = arith.constant 0 : index
    %20 = vector.load %arg1[%c0_26, %c0_27, %c0_28, %c1_29, %c0_30] : memref<4x1x10x10x128xbf16, #tpu.memory_space<vmem>>, vector<1x1x8x8x128xbf16>
    %21 = vector.shape_cast %20 : vector<1x1x8x8x128xbf16> to vector<8x8x128xbf16>
    %22 = vector.shape_cast %21 : vector<8x8x128xbf16> to vector<64x128xbf16>
    %c0_31 = arith.constant 0 : index
    %c0_32 = arith.constant 0 : index
    %23 = vector.load %arg5[%c0_31, %c0_32] : memref<64x128xf32, #tpu.memory_space<vmem>>, vector<64x128xf32>
    %c2 = arith.constant 2 : index
    %c0_33 = arith.constant 0 : index
    %c0_34 = arith.constant 0 : index
    %24 = vector.load %arg2[%c2, %c0_33, %c0_34] : memref<9x128x128xbf16, #tpu.memory_space<vmem>>, vector<1x128x128xbf16>
    %25 = vector.shape_cast %24 : vector<1x128x128xbf16> to vector<128x128xbf16>
    %cst_35 = arith.constant dense<0.000000e+00> : vector<64x128xf32>
    %26 = tpu.matmul %22, %25, %cst_35 {dimension_numbers = #tpu.dot_dimension_numbers<[1], [0], [0], [1], [0, 0, 1, 1], [], []>} : vector<64x128xbf16>, vector<128x128xbf16>, vector<64x128xf32> -> vector<64x128xf32>
    %27 = arith.addf %23, %26 : vector<64x128xf32>
    %c0_36 = arith.constant 0 : index
    %c0_37 = arith.constant 0 : index
    %28 = vector.load %arg5[%c0_36, %c0_37] : memref<64x128xf32, #tpu.memory_space<vmem>>, vector<64x128xf32>
    tpu.vector_store %arg5[%c0_36, %c0_37], %27 {strides = array<i32>} : memref<64x128xf32, #tpu.memory_space<vmem>>, vector<64x128xf32>,
    %c2_38 = arith.constant 2 : index
    %c0_39 = arith.constant 0 : index
    %c0_40 = arith.constant 0 : index
    %c0_41 = arith.constant 0 : index
    %c0_42 = arith.constant 0 : index
    %29 = vector.load %arg1[%c2_38, %c0_39, %c0_40, %c0_41, %c0_42] : memref<4x1x10x10x128xbf16, #tpu.memory_space<vmem>>, vector<1x1x8x8x128xbf16>
    %30 = vector.shape_cast %29 : vector<1x1x8x8x128xbf16> to vector<8x8x128xbf16>
    %31 = vector.shape_cast %30 : vector<8x8x128xbf16> to vector<64x128xbf16>
    %c0_43 = arith.constant 0 : index
    %c0_44 = arith.constant 0 : index
    %32 = vector.load %arg5[%c0_43, %c0_44] : memref<64x128xf32, #tpu.memory_space<vmem>>, vector<64x128xf32>
    %c3 = arith.constant 3 : index
    %c0_45 = arith.constant 0 : index
    %c0_46 = arith.constant 0 : index
    %33 = vector.load %arg2[%c3, %c0_45, %c0_46] : memref<9x128x128xbf16, #tpu.memory_space<vmem>>, vector<1x128x128xbf16>
    %34 = vector.shape_cast %33 : vector<1x128x128xbf16> to vector<128x128xbf16>
    %cst_47 = arith.constant dense<0.000000e+00> : vector<64x128xf32>
    %35 = tpu.matmul %31, %34, %cst_47 {dimension_numbers = #tpu.dot_dimension_numbers<[1], [0], [0], [1], [0, 0, 1, 1], [], []>} : vector<64x128xbf16>, vector<128x128xbf16>, vector<64x128xf32> -> vector<64x128xf32>
    %36 = arith.addf %32, %35 : vector<64x128xf32>
    %c0_48 = arith.constant 0 : index
    %c0_49 = arith.constant 0 : index
    %37 = vector.load %arg5[%c0_48, %c0_49] : memref<64x128xf32, #tpu.memory_space<vmem>>, vector<64x128xf32>
    tpu.vector_store %arg5[%c0_48, %c0_49], %36 {strides = array<i32>} : memref<64x128xf32, #tpu.memory_space<vmem>>, vector<64x128xf32>,
    %c3_50 = arith.constant 3 : index
    %c0_51 = arith.constant 0 : index
    %c0_52 = arith.constant 0 : index
    %c0_53 = arith.constant 0 : index
    %c0_54 = arith.constant 0 : index
    %38 = vector.load %arg1[%c3_50, %c0_51, %c0_52, %c0_53, %c0_54] : memref<4x1x10x10x128xbf16, #tpu.memory_space<vmem>>, vector<1x1x8x8x128xbf16>
    %39 = vector.shape_cast %38 : vector<1x1x8x8x128xbf16> to vector<8x8x128xbf16>
    %40 = vector.shape_cast %39 : vector<8x8x128xbf16> to vector<64x128xbf16>
    %c0_55 = arith.constant 0 : index
    %c0_56 = arith.constant 0 : index
    %41 = vector.load %arg5[%c0_55, %c0_56] : memref<64x128xf32, #tpu.memory_space<vmem>>, vector<64x128xf32>
    %c4 = arith.constant 4 : index
    %c0_57 = arith.constant 0 : index
    %c0_58 = arith.constant 0 : index
    %42 = vector.load %arg2[%c4, %c0_57, %c0_58] : memref<9x128x128xbf16, #tpu.memory_space<vmem>>, vector<1x128x128xbf16>
    %43 = vector.shape_cast %42 : vector<1x128x128xbf16> to vector<128x128xbf16>
    %cst_59 = arith.constant dense<0.000000e+00> : vector<64x128xf32>
    %44 = tpu.matmul %40, %43, %cst_59 {dimension_numbers = #tpu.dot_dimension_numbers<[1], [0], [0], [1], [0, 0, 1, 1], [], []>} : vector<64x128xbf16>, vector<128x128xbf16>, vector<64x128xf32> -> vector<64x128xf32>
    %45 = arith.addf %41, %44 : vector<64x128xf32>
    %c0_60 = arith.constant 0 : index
    %c0_61 = arith.constant 0 : index
    %46 = vector.load %arg5[%c0_60, %c0_61] : memref<64x128xf32, #tpu.memory_space<vmem>>, vector<64x128xf32>
    tpu.vector_store %arg5[%c0_60, %c0_61], %45 {strides = array<i32>} : memref<64x128xf32, #tpu.memory_space<vmem>>, vector<64x128xf32>,
    %c2_62 = arith.constant 2 : index
    %c0_63 = arith.constant 0 : index
    %c0_64 = arith.constant 0 : index
    %c1_65 = arith.constant 1 : index
    %c0_66 = arith.constant 0 : index
    %47 = vector.load %arg1[%c2_62, %c0_63, %c0_64, %c1_65, %c0_66] : memref<4x1x10x10x128xbf16, #tpu.memory_space<vmem>>, vector<1x1x8x8x128xbf16>
    %48 = vector.shape_cast %47 : vector<1x1x8x8x128xbf16> to vector<8x8x128xbf16>
    %49 = vector.shape_cast %48 : vector<8x8x128xbf16> to vector<64x128xbf16>
    %c0_67 = arith.constant 0 : index
    %c0_68 = arith.constant 0 : index
    %50 = vector.load %arg5[%c0_67, %c0_68] : memref<64x128xf32, #tpu.memory_space<vmem>>, vector<64x128xf32>
    %c5 = arith.constant 5 : index
    %c0_69 = arith.constant 0 : index
    %c0_70 = arith.constant 0 : index
    %51 = vector.load %arg2[%c5, %c0_69, %c0_70] : memref<9x128x128xbf16, #tpu.memory_space<vmem>>, vector<1x128x128xbf16>
    %52 = vector.shape_cast %51 : vector<1x128x128xbf16> to vector<128x128xbf16>
    %cst_71 = arith.constant dense<0.000000e+00> : vector<64x128xf32>
    %53 = tpu.matmul %49, %52, %cst_71 {dimension_numbers = #tpu.dot_dimension_numbers<[1], [0], [0], [1], [0, 0, 1, 1], [], []>} : vector<64x128xbf16>, vector<128x128xbf16>, vector<64x128xf32> -> vector<64x128xf32>
    %54 = arith.addf %50, %53 : vector<64x128xf32>
    %c0_72 = arith.constant 0 : index
    %c0_73 = arith.constant 0 : index
    %55 = vector.load %arg5[%c0_72, %c0_73] : memref<64x128xf32, #tpu.memory_space<vmem>>, vector<64x128xf32>
    tpu.vector_store %arg5[%c0_72, %c0_73], %54 {strides = array<i32>} : memref<64x128xf32, #tpu.memory_space<vmem>>, vector<64x128xf32>,
    %c0_74 = arith.constant 0 : index
    %c0_75 = arith.constant 0 : index
    %c1_76 = arith.constant 1 : index
    %c0_77 = arith.constant 0 : index
    %c0_78 = arith.constant 0 : index
    %56 = vector.load %arg1[%c0_74, %c0_75, %c1_76, %c0_77, %c0_78] : memref<4x1x10x10x128xbf16, #tpu.memory_space<vmem>>, vector<1x1x8x8x128xbf16>
    %57 = vector.shape_cast %56 : vector<1x1x8x8x128xbf16> to vector<8x8x128xbf16>
    %58 = vector.shape_cast %57 : vector<8x8x128xbf16> to vector<64x128xbf16>
    %c0_79 = arith.constant 0 : index
    %c0_80 = arith.constant 0 : index
    %59 = vector.load %arg5[%c0_79, %c0_80] : memref<64x128xf32, #tpu.memory_space<vmem>>, vector<64x128xf32>
    %c6 = arith.constant 6 : index
    %c0_81 = arith.constant 0 : index
    %c0_82 = arith.constant 0 : index
    %60 = vector.load %arg2[%c6, %c0_81, %c0_82] : memref<9x128x128xbf16, #tpu.memory_space<vmem>>, vector<1x128x128xbf16>
    %61 = vector.shape_cast %60 : vector<1x128x128xbf16> to vector<128x128xbf16>
    %cst_83 = arith.constant dense<0.000000e+00> : vector<64x128xf32>
    %62 = tpu.matmul %58, %61, %cst_83 {dimension_numbers = #tpu.dot_dimension_numbers<[1], [0], [0], [1], [0, 0, 1, 1], [], []>} : vector<64x128xbf16>, vector<128x128xbf16>, vector<64x128xf32> -> vector<64x128xf32>
    %63 = arith.addf %59, %62 : vector<64x128xf32>
    %c0_84 = arith.constant 0 : index
    %c0_85 = arith.constant 0 : index
    %64 = vector.load %arg5[%c0_84, %c0_85] : memref<64x128xf32, #tpu.memory_space<vmem>>, vector<64x128xf32>
    tpu.vector_store %arg5[%c0_84, %c0_85], %63 {strides = array<i32>} : memref<64x128xf32, #tpu.memory_space<vmem>>, vector<64x128xf32>,
    %c1_86 = arith.constant 1 : index
    %c0_87 = arith.constant 0 : index
    %c1_88 = arith.constant 1 : index
    %c0_89 = arith.constant 0 : index
    %c0_90 = arith.constant 0 : index
    %65 = vector.load %arg1[%c1_86, %c0_87, %c1_88, %c0_89, %c0_90] : memref<4x1x10x10x128xbf16, #tpu.memory_space<vmem>>, vector<1x1x8x8x128xbf16>
    %66 = vector.shape_cast %65 : vector<1x1x8x8x128xbf16> to vector<8x8x128xbf16>
    %67 = vector.shape_cast %66 : vector<8x8x128xbf16> to vector<64x128xbf16>
    %c0_91 = arith.constant 0 : index
    %c0_92 = arith.constant 0 : index
    %68 = vector.load %arg5[%c0_91, %c0_92] : memref<64x128xf32, #tpu.memory_space<vmem>>, vector<64x128xf32>
    %c7 = arith.constant 7 : index
    %c0_93 = arith.constant 0 : index
    %c0_94 = arith.constant 0 : index
    %69 = vector.load %arg2[%c7, %c0_93, %c0_94] : memref<9x128x128xbf16, #tpu.memory_space<vmem>>, vector<1x128x128xbf16>
    %70 = vector.shape_cast %69 : vector<1x128x128xbf16> to vector<128x128xbf16>
    %cst_95 = arith.constant dense<0.000000e+00> : vector<64x128xf32>
    %71 = tpu.matmul %67, %70, %cst_95 {dimension_numbers = #tpu.dot_dimension_numbers<[1], [0], [0], [1], [0, 0, 1, 1], [], []>} : vector<64x128xbf16>, vector<128x128xbf16>, vector<64x128xf32> -> vector<64x128xf32>
    %72 = arith.addf %68, %71 : vector<64x128xf32>
    %c0_96 = arith.constant 0 : index
    %c0_97 = arith.constant 0 : index
    %73 = vector.load %arg5[%c0_96, %c0_97] : memref<64x128xf32, #tpu.memory_space<vmem>>, vector<64x128xf32>
    tpu.vector_store %arg5[%c0_96, %c0_97], %72 {strides = array<i32>} : memref<64x128xf32, #tpu.memory_space<vmem>>, vector<64x128xf32>,
    %c0_98 = arith.constant 0 : index
    %c0_99 = arith.constant 0 : index
    %c1_100 = arith.constant 1 : index
    %c1_101 = arith.constant 1 : index
    %c0_102 = arith.constant 0 : index
    %74 = vector.load %arg1[%c0_98, %c0_99, %c1_100, %c1_101, %c0_102] : memref<4x1x10x10x128xbf16, #tpu.memory_space<vmem>>, vector<1x1x8x8x128xbf16>
    %75 = vector.shape_cast %74 : vector<1x1x8x8x128xbf16> to vector<8x8x128xbf16>
    %76 = vector.shape_cast %75 : vector<8x8x128xbf16> to vector<64x128xbf16>
    %c0_103 = arith.constant 0 : index
    %c0_104 = arith.constant 0 : index
    %77 = vector.load %arg5[%c0_103, %c0_104] : memref<64x128xf32, #tpu.memory_space<vmem>>, vector<64x128xf32>
    %c8 = arith.constant 8 : index
    %c0_105 = arith.constant 0 : index
    %c0_106 = arith.constant 0 : index
    %78 = vector.load %arg2[%c8, %c0_105, %c0_106] : memref<9x128x128xbf16, #tpu.memory_space<vmem>>, vector<1x128x128xbf16>
    %79 = vector.shape_cast %78 : vector<1x128x128xbf16> to vector<128x128xbf16>
    %cst_107 = arith.constant dense<0.000000e+00> : vector<64x128xf32>
    %80 = tpu.matmul %76, %79, %cst_107 {dimension_numbers = #tpu.dot_dimension_numbers<[1], [0], [0], [1], [0, 0, 1, 1], [], []>} : vector<64x128xbf16>, vector<128x128xbf16>, vector<64x128xf32> -> vector<64x128xf32>
    %81 = arith.addf %77, %80 : vector<64x128xf32>
    %c0_108 = arith.constant 0 : index
    %c0_109 = arith.constant 0 : index
    %82 = vector.load %arg5[%c0_108, %c0_109] : memref<64x128xf32, #tpu.memory_space<vmem>>, vector<64x128xf32>
    tpu.vector_store %arg5[%c0_108, %c0_109], %81 {strides = array<i32>} : memref<64x128xf32, #tpu.memory_space<vmem>>, vector<64x128xf32>,
    %c0_110 = arith.constant 0 : index
    %c0_111 = arith.constant 0 : index
    %83 = vector.load %arg5[%c0_110, %c0_111] : memref<64x128xf32, #tpu.memory_space<vmem>>, vector<64x128xf32>
    %84 = vector.shape_cast %83 : vector<64x128xf32> to vector<1x64x128xf32>
    %c0_112 = arith.constant 0 : index
    %c0_113 = arith.constant 0 : index
    %c0_114 = arith.constant 0 : index
    %85 = vector.load %arg3[%c0_112, %c0_113, %c0_114] : memref<1x64x128xf32, #tpu.memory_space<vmem>>, vector<1x64x128xf32>
    tpu.vector_store %arg3[%c0_112, %c0_113, %c0_114], %84 {strides = array<i32>} : memref<1x64x128xf32, #tpu.memory_space<vmem>>, vector<1x64x128xf32>,
    %cst_115 = arith.constant dense<0.000000e+00> : vector<128xf32>
    %86 = vector.multi_reduction <add>, %83, %cst_115 [0] : vector<64x128xf32> to vector<128xf32>
    %87 = vector.shape_cast %86 : vector<128xf32> to vector<1x128xf32>
    %88 = arith.mulf %83, %83 : vector<64x128xf32>
    %cst_116 = arith.constant dense<0.000000e+00> : vector<128xf32>
    %89 = vector.multi_reduction <add>, %88, %cst_116 [0] : vector<64x128xf32> to vector<128xf32>
    %90 = vector.shape_cast %89 : vector<128xf32> to vector<1x128xf32>
    %cst_117 = arith.constant 0.000000e+00 : f32
    %91 = vector.broadcast %cst_117 : f32 to vector<1x128xf32>
    %92 = tpu.concatenate %87, %90, %91, %91, %91, %91, %91, %91 in 0 : vector<1x128xf32>, vector<1x128xf32>, vector<1x128xf32>, vector<1x128xf32>, vector<1x128xf32>, vector<1x128xf32>, vector<1x128xf32>, vector<1x128xf32> -> vector<8x128xf32>
    %93 = vector.shape_cast %92 : vector<8x128xf32> to vector<1x8x128xf32>
    %c0_118 = arith.constant 0 : index
    %c0_119 = arith.constant 0 : index
    %c0_120 = arith.constant 0 : index
    %94 = vector.load %arg4[%c0_118, %c0_119, %c0_120] : memref<1x8x128xf32, #tpu.memory_space<vmem>>, vector<1x8x128xf32>
    tpu.vector_store %arg4[%c0_118, %c0_119, %c0_120], %93 {strides = array<i32>} : memref<1x8x128xf32, #tpu.memory_space<vmem>>, vector<1x8x128xf32>,
    return
  }
  func.func @transform_0(%arg0: i32) -> (i32, i32, i32, i32, i32) {
    %c0_i32 = arith.constant 0 : i32
    %c0_i32_0 = arith.constant 0 : i32
    %c0_i32_1 = arith.constant 0 : i32
    %c0_i32_2 = arith.constant 0 : i32
    %c0_i32_3 = arith.constant 0 : i32
    return %c0_i32, %arg0, %c0_i32_0, %c0_i32_1, %c0_i32_2 : i32, i32, i32, i32, i32
  }
  func.func @transform_1(%arg0: i32) -> (i32, i32, i32) {
    %c0_i32 = arith.constant 0 : i32
    %c0_i32_0 = arith.constant 0 : i32
    %c0_i32_1 = arith.constant 0 : i32
    %c0_i32_2 = arith.constant 0 : i32
    return %c0_i32, %c0_i32_0, %c0_i32_1 : i32, i32, i32
  }
  func.func @transform_2(%arg0: i32) -> (i32, i32, i32) {
    %c0_i32 = arith.constant 0 : i32
    %c0_i32_0 = arith.constant 0 : i32
    %c0_i32_1 = arith.constant 0 : i32
    return %arg0, %c0_i32, %c0_i32_0 : i32, i32, i32
  }
  func.func @transform_3(%arg0: i32) -> (i32, i32, i32) {
    %c0_i32 = arith.constant 0 : i32
    %c0_i32_0 = arith.constant 0 : i32
    %c0_i32_1 = arith.constant 0 : i32
    return %arg0, %c0_i32, %c0_i32_0 : i32, i32, i32
  }
}

</mosaic_0001>

<llo_original>
// kernel: _lambda_.7
$region0: #{_lambda_.7}
  #allocation0 [shape = 'u32[]', space=smem, size = 0x4, offset = 0x4, fixed_abs, tag = 'smem constant byte address 0x4 - core index']
  #allocation1 [shape = 'u32[144,128]{1,0:T(1,128)}', space=vmem, size = 0x12000, scoped, tag = 'internal scratch']
  %s0 = inlined_call_operand.vmem [shape: f32[512,128], index: 0, kind: input, shape index: {}]
  %s1 = inlined_call_operand.vmem [shape: f32[1,128], index: 1, kind: input, shape index: {}]
  %s2 = inlined_call_operand.vmem [shape: f32[1,128], index: 2, kind: input, shape index: {}]
  %s3 = inlined_call_operand.vmem [shape: bf16[512,128], index: 3, kind: output, shape index: {}]
  %s4 = sld [smem:[#allocation0]]
  $region45: #{_lambda_.7} parent=0
    _
  %s6 = ssub.s32 1, %s4
  %s7 = scalar_select 0, %s6, %s4
  loop: start=0, step=1, limit=4
  $region2: #{_lambda_.7} parent=0 // loop_pre_header
    _
  $region3: #{_lambda_.7} parent=0 // loop_header
    %s9 = sphi 0, %s13
    %p10 = scmp.ge.s32.totalorder %s9, 4
    %s19 = sphi 0, %s21
    %s22 = sphi 0, %s19
    %s23 = sphi 0, %s22
    %s39 = sphi 0, %s23
    %s43 = sphi 0, %s43
    %s45 = sphi 0, %s43
    %s46 = sphi 0, %s45
    %s60 = sphi 0, %s46
    %s64 = sphi 0, %s64
    %s66 = sphi 0, %s64
    %s67 = sphi 0, %s66
    %s81 = sphi 0, %s67
    %s87 = sphi 0, %s89
    %s90 = sphi 0, %s87
    %s91 = sphi 0, %s90
    %s107 = sphi 0, %s91
  $region4: #{_lambda_.7} parent=0 // loop_header_branch
    %12 = sbr.rel (%p10) target = $region8
  $region5: #{_lambda_.7} parent=0 // loop_body
    %s14 = ssub.s32 %s9, 1
    %s15 = ssub.s32 %s9, 2
    %s16 = sadd.s32 %s9, 1
    %s17 = ssub.s32 %s9, %s16
    %p18 = scmp.eq.s32.totalorder %s17, 0
    %s20 = sadd.s32 %s19, 1
    %s21 = scalar_select %p18, %s19, %s20
    %p24 = pneg %p18
    %p25 = scmp.eq.s32.totalorder %s9, 1
    %p26 = por %p24, %p25
    %p27 = scmp.ne.s32.totalorder %s19, %s22
    %p28 = scmp.eq.s32.totalorder %s9, 0
    %p29 = por %p27, %p28
    %p30 = scmp.ne.s32.totalorder %s19, %s22
    %p31 = scmp.eq.s32.totalorder %s14, 1
    %p32 = por %p30, %p31
    %p33 = scmp.ne.s32.totalorder %s22, %s23
    %p34 = scmp.eq.s32.totalorder %s14, 0
    %p35 = por %p33, %p34
    %p36 = scmp.ne.s32.totalorder %s22, %s23
    %p37 = scmp.eq.s32.totalorder %s15, 1
    %p38 = por %p36, %p37
    %p40 = scmp.ne.s32.totalorder %s23, %s39
    %p41 = scmp.eq.s32.totalorder %s15, 0
    %p42 = por %p40, %p41
    %s44 = sadd.s32 %s43, 1
    %p47 = scmp.eq.s32.totalorder %s9, 1
    %p48 = scmp.ne.s32.totalorder %s43, %s45
    %p49 = scmp.eq.s32.totalorder %s9, 0
    %p50 = por %p48, %p49
    %p51 = scmp.ne.s32.totalorder %s43, %s45
    %p52 = scmp.eq.s32.totalorder %s14, 1
    %p53 = por %p51, %p52
    %p54 = scmp.ne.s32.totalorder %s45, %s46
    %p55 = scmp.eq.s32.totalorder %s14, 0
    %p56 = por %p54, %p55
    %p57 = scmp.ne.s32.totalorder %s45, %s46
    %p58 = scmp.eq.s32.totalorder %s15, 1
    %p59 = por %p57, %p58
    %p61 = scmp.ne.s32.totalorder %s46, %s60
    %p62 = scmp.eq.s32.totalorder %s15, 0
    %p63 = por %p61, %p62
    %s65 = sadd.s32 %s64, 1
    %p68 = scmp.eq.s32.totalorder %s9, 1
    %p69 = scmp.ne.s32.totalorder %s64, %s66
    %p70 = scmp.eq.s32.totalorder %s9, 0
    %p71 = por %p69, %p70
    %p72 = scmp.ne.s32.totalorder %s64, %s66
    %p73 = scmp.eq.s32.totalorder %s14, 1
    %p74 = por %p72, %p73
    %p75 = scmp.ne.s32.totalorder %s66, %s67
    %p76 = scmp.eq.s32.totalorder %s14, 0
    %p77 = por %p75, %p76
    %p78 = scmp.ne.s32.totalorder %s66, %s67
    %p79 = scmp.eq.s32.totalorder %s15, 1
    %p80 = por %p78, %p79
    %p82 = scmp.ne.s32.totalorder %s67, %s81
    %p83 = scmp.eq.s32.totalorder %s15, 0
    %p84 = por %p82, %p83
    %s85 = ssub.s32 %s9, %s16
    %p86 = scmp.eq.s32.totalorder %s85, 0
    %s88 = sadd.s32 %s87, 1
    %s89 = scalar_select %p86, %s87, %s88
    %p92 = pneg %p86
    %p93 = scmp.eq.s32.totalorder %s9, 1
    %p94 = por %p92, %p93
    %p95 = scmp.ne.s32.totalorder %s87, %s90
    %p96 = scmp.eq.s32.totalorder %s9, 0
    %p97 = por %p95, %p96
    %p98 = scmp.ne.s32.totalorder %s87, %s90
    %p99 = scmp.eq.s32.totalorder %s14, 1
    %p100 = por %p98, %p99
    %p101 = scmp.ne.s32.totalorder %s90, %s91
    %p102 = scmp.eq.s32.totalorder %s14, 0
    %p103 = por %p101, %p102
    %p104 = scmp.ne.s32.totalorder %s90, %s91
    %p105 = scmp.eq.s32.totalorder %s15, 1
    %p106 = por %p104, %p105
    %p108 = scmp.ne.s32.totalorder %s91, %s107
    %p109 = scmp.eq.s32.totalorder %s15, 0
    %p110 = por %p108, %p109
    %p111 = scmp.le.s32.totalorder 1, %s9
    %p112 = scmp.lt.s32.totalorder %s9, 3
    %p113 = pnand %p111, %p112
    %p114 = pneg %p113
    // Predicated region
    $region9: #{_lambda_.7} parent=5 // pred_check
      _
    $region10: #{_lambda_.7} parent=5 // pred_check_branch
      %116 = sbr.rel (%p113) target = $region12
    $region11: #{_lambda_.7} parent=5 // pred_region
      %s117 = ssub.s32 %s9, 1
      // Predicated region
      $region13: #{_lambda_.7} parent=11 // pred_check
        %p118 = pneg %p56
      $region14: #{_lambda_.7} parent=11 // pred_check_branch
        %120 = sbr.rel (%p118) target = $region16
      $region15: #{_lambda_.7} parent=11 // pred_region
        _
      $region16: #{_lambda_.7} parent=11 // pred_fallthru
        _
      // Predicated region
      $region17: #{_lambda_.7} parent=11 // pred_check
        %p121 = pneg %p77
      $region18: #{_lambda_.7} parent=11 // pred_check_branch
        %123 = sbr.rel (%p121) target = $region20
      $region19: #{_lambda_.7} parent=11 // pred_region
        _
      $region20: #{_lambda_.7} parent=11 // pred_fallthru
        _
    $region12: #{_lambda_.7} parent=5 // pred_fallthru
      _
    %p124 = scmp.lt.s32.totalorder %s9, 2
    // Predicated region
    $region21: #{_lambda_.7} parent=5 // pred_check
      %p125 = pneg %p124
    $region22: #{_lambda_.7} parent=5 // pred_check_branch
      %127 = sbr.rel (%p125) target = $region24
    $region23: #{_lambda_.7} parent=5 // pred_region
      // Predicated region
      $region25: #{_lambda_.7} parent=23 // pred_check
        %p128 = pneg %p29
      $region26: #{_lambda_.7} parent=23 // pred_check_branch
        %130 = sbr.rel (%p128) target = $region28
      $region27: #{_lambda_.7} parent=23 // pred_region
        %s131 = smul.u32 32, %s9
        %p132 = scmp.lt.s32.totalorder %s131, 63
        %s133 = scalar_select %p132, %s131, 63
        %s134 = smul.addr %s133, 8
        %s135 = scalar_lea.vmem %s0, %s134
        %s136 = smul.u32 32, %s9
      $region28: #{_lambda_.7} parent=23 // pred_fallthru
        _
    $region24: #{_lambda_.7} parent=5 // pred_fallthru
      _
    %p137 = scmp.le.s32.totalorder 1, %s9
    %p138 = scmp.lt.s32.totalorder %s9, 3
    %p139 = pnand %p137, %p138
    %p140 = pneg %p139
    // Predicated region
    $region29: #{_lambda_.7} parent=5 // pred_check
      _
    $region30: #{_lambda_.7} parent=5 // pred_check_branch
      %142 = sbr.rel (%p139) target = $region32
    $region31: #{_lambda_.7} parent=5 // pred_region
      %s143 = ssub.s32 %s9, 1
      %s144 = smul.u32 32, %s14
      %p145 = scmp.lt.s32.totalorder %s144, 63
      %s146 = scalar_select %p145, %s144, 63
      %s147 = smul.addr %s146, 8
      %s148 = scalar_lea.vmem %s0, %s147
      %p149 = pneg %p35
      %p150 = pneg %p32
      %p151 = pneg %p56
      %p152 = pneg %p53
      %p153 = pneg %p77
      %p154 = pneg %p74
      %p155 = pneg %p103
      %p156 = pneg %p100
      %s157 = smul.u32 32, %s14
      %p158 = scmp.lt.s32.totalorder %s157, 63
      %s159 = scalar_select %p158, %s157, 63
      %s160 = smul.addr %s159, 4
      %s161 = scalar_lea.vmem %s3, %s160
      %s162 = smul.u32 32, %s14
      %p163 = scmp.lt.s32.totalorder %s162, 63
      %s164 = scalar_select %p163, %s162, 63
      %s165 = smul.addr %s164, 8
      %s166 = scalar_lea.vmem %s0, %s165
      %s167 = smul.u32 32, %s14
      %s168 = smul.u32 32, %s14
      %p169 = scmp.lt.s32.totalorder %s168, 63
      %s170 = scalar_select %p169, %s168, 63
      %s171 = smul.addr %s170, 4
      %s172 = scalar_lea.vmem %s3, %s171
      %s173 = smul.u32 32, %s14
      %v174 = vld [vmem:[%s166] sm:$0xff]
      %v175 = vld [vmem:[%s166 + $0x8] sm:$0xff]
      %v176 = vld [vmem:[%s166 + $0x10] sm:$0xff]
      %v177 = vld [vmem:[%s166 + $0x18] sm:$0xff]
      %v178 = vld [vmem:[%s166 + $0x20] sm:$0xff]
      %v179 = vld [vmem:[%s166 + $0x28] sm:$0xff]
      %v180 = vld [vmem:[%s166 + $0x30] sm:$0xff]
      %v181 = vld [vmem:[%s166 + $0x38] sm:$0xff]
      %v182 = vld [vmem:[%s166 + $0x40] sm:$0xff]
      %v183 = vld [vmem:[%s166 + $0x48] sm:$0xff]
      %v184 = vld [vmem:[%s166 + $0x50] sm:$0xff]
      %v185 = vld [vmem:[%s166 + $0x58] sm:$0xff]
      %v186 = vld [vmem:[%s166 + $0x60] sm:$0xff]
      %v187 = vld [vmem:[%s166 + $0x68] sm:$0xff]
      %v188 = vld [vmem:[%s166 + $0x70] sm:$0xff]
      %v189 = vld [vmem:[%s166 + $0x78] sm:$0xff]
      %v190 = vld [vmem:[%s166 + $0x80] sm:$0xff]
      %v191 = vld [vmem:[%s166 + $0x88] sm:$0xff]
      %v192 = vld [vmem:[%s166 + $0x90] sm:$0xff]
      %v193 = vld [vmem:[%s166 + $0x98] sm:$0xff]
      %v194 = vld [vmem:[%s166 + $0xa0] sm:$0xff]
      %v195 = vld [vmem:[%s166 + $0xa8] sm:$0xff]
      %v196 = vld [vmem:[%s166 + $0xb0] sm:$0xff]
      %v197 = vld [vmem:[%s166 + $0xb8] sm:$0xff]
      %v198 = vld [vmem:[%s166 + $0xc0] sm:$0xff]
      %v199 = vld [vmem:[%s166 + $0xc8] sm:$0xff]
      %v200 = vld [vmem:[%s166 + $0xd0] sm:$0xff]
      %v201 = vld [vmem:[%s166 + $0xd8] sm:$0xff]
      %v202 = vld [vmem:[%s166 + $0xe0] sm:$0xff]
      %v203 = vld [vmem:[%s166 + $0xe8] sm:$0xff]
      %v204 = vld [vmem:[%s166 + $0xf0] sm:$0xff]
      %v205 = vld [vmem:[%s166 + $0xf8] sm:$0xff]
      %v206 = vld [vmem:[%s1] sm:$0x1]
      %v208 = vlaneseq
      %v209 = vshrl.u32 %v208, 7
      %v210 = vsub.s32 0, %v209
      %v211 = vrot.slane %v206, %v210
      %v213 = vmul.f32 %v174, %v211
      %v214 = vmul.f32 %v175, %v211
      %v215 = vmul.f32 %v176, %v211
      %v216 = vmul.f32 %v177, %v211
      %v217 = vmul.f32 %v178, %v211
      %v218 = vmul.f32 %v179, %v211
      %v219 = vmul.f32 %v180, %v211
      %v220 = vmul.f32 %v181, %v211
      %v221 = vmul.f32 %v182, %v211
      %v222 = vmul.f32 %v183, %v211
      %v223 = vmul.f32 %v184, %v211
      %v224 = vmul.f32 %v185, %v211
      %v225 = vmul.f32 %v186, %v211
      %v226 = vmul.f32 %v187, %v211
      %v227 = vmul.f32 %v188, %v211
      %v228 = vmul.f32 %v189, %v211
      %v229 = vmul.f32 %v190, %v211
      %v230 = vmul.f32 %v191, %v211
      %v231 = vmul.f32 %v192, %v211
      %v232 = vmul.f32 %v193, %v211
      %v233 = vmul.f32 %v194, %v211
      %v234 = vmul.f32 %v195, %v211
      %v235 = vmul.f32 %v196, %v211
      %v236 = vmul.f32 %v197, %v211
      %v237 = vmul.f32 %v198, %v211
      %v238 = vmul.f32 %v199, %v211
      %v239 = vmul.f32 %v200, %v211
      %v240 = vmul.f32 %v201, %v211
      %v241 = vmul.f32 %v202, %v211
      %v242 = vmul.f32 %v203, %v211
      %v243 = vmul.f32 %v204, %v211
      %v244 = vmul.f32 %v205, %v211
      %v245 = vld [vmem:[%s2] sm:$0x1]
      %v247 = vlaneseq
      %v248 = vshrl.u32 %v247, 7
      %v249 = vsub.s32 0, %v248
      %v250 = vrot.slane %v245, %v249
      %v252 = vadd.f32 %v213, %v250
      %v253 = vadd.f32 %v214, %v250
      %v254 = vadd.f32 %v215, %v250
      %v255 = vadd.f32 %v216, %v250
      %v256 = vadd.f32 %v217, %v250
      %v257 = vadd.f32 %v218, %v250
      %v258 = vadd.f32 %v219, %v250
      %v259 = vadd.f32 %v220, %v250
      %v260 = vadd.f32 %v221, %v250
      %v261 = vadd.f32 %v222, %v250
      %v262 = vadd.f32 %v223, %v250
      %v263 = vadd.f32 %v224, %v250
      %v264 = vadd.f32 %v225, %v250
      %v265 = vadd.f32 %v226, %v250
      %v266 = vadd.f32 %v227, %v250
      %v267 = vadd.f32 %v228, %v250
      %v268 = vadd.f32 %v229, %v250
      %v269 = vadd.f32 %v230, %v250
      %v270 = vadd.f32 %v231, %v250
      %v271 = vadd.f32 %v232, %v250
      %v272 = vadd.f32 %v233, %v250
      %v273 = vadd.f32 %v234, %v250
      %v274 = vadd.f32 %v235, %v250
      %v275 = vadd.f32 %v236, %v250
      %v276 = vadd.f32 %v237, %v250
      %v277 = vadd.f32 %v238, %v250
      %v278 = vadd.f32 %v239, %v250
      %v279 = vadd.f32 %v240, %v250
      %v280 = vadd.f32 %v241, %v250
      %v281 = vadd.f32 %v242, %v250
      %v282 = vadd.f32 %v243, %v250
      %v283 = vadd.f32 %v244, %v250
      %v284 = vmax.f32 %v252, 0.0
      %v285 = vmax.f32 %v253, 0.0
      %v286 = vmax.f32 %v254, 0.0
      %v287 = vmax.f32 %v255, 0.0
      %v288 = vmax.f32 %v256, 0.0
      %v289 = vmax.f32 %v257, 0.0
      %v290 = vmax.f32 %v258, 0.0
      %v291 = vmax.f32 %v259, 0.0
      %v292 = vmax.f32 %v260, 0.0
      %v293 = vmax.f32 %v261, 0.0
      %v294 = vmax.f32 %v262, 0.0
      %v295 = vmax.f32 %v263, 0.0
      %v296 = vmax.f32 %v264, 0.0
      %v297 = vmax.f32 %v265, 0.0
      %v298 = vmax.f32 %v266, 0.0
      %v299 = vmax.f32 %v267, 0.0
      %v300 = vmax.f32 %v268, 0.0
      %v301 = vmax.f32 %v269, 0.0
      %v302 = vmax.f32 %v270, 0.0
      %v303 = vmax.f32 %v271, 0.0
      %v304 = vmax.f32 %v272, 0.0
      %v305 = vmax.f32 %v273, 0.0
      %v306 = vmax.f32 %v274, 0.0
      %v307 = vmax.f32 %v275, 0.0
      %v308 = vmax.f32 %v276, 0.0
      %v309 = vmax.f32 %v277, 0.0
      %v310 = vmax.f32 %v278, 0.0
      %v311 = vmax.f32 %v279, 0.0
      %v312 = vmax.f32 %v280, 0.0
      %v313 = vmax.f32 %v281, 0.0
      %v314 = vmax.f32 %v282, 0.0
      %v315 = vmax.f32 %v283, 0.0
      %v316 = vpack.c.bf16 %v285, %v284
      %v317 = vpack.c.bf16 %v287, %v286
      %v318 = vpack.c.bf16 %v289, %v288
      %v319 = vpack.c.bf16 %v291, %v290
      %v320 = vpack.c.bf16 %v293, %v292
      %v321 = vpack.c.bf16 %v295, %v294
      %v322 = vpack.c.bf16 %v297, %v296
      %v323 = vpack.c.bf16 %v299, %v298
      %v324 = vpack.c.bf16 %v301, %v300
      %v325 = vpack.c.bf16 %v303, %v302
      %v326 = vpack.c.bf16 %v305, %v304
      %v327 = vpack.c.bf16 %v307, %v306
      %v328 = vpack.c.bf16 %v309, %v308
      %v329 = vpack.c.bf16 %v311, %v310
      %v330 = vpack.c.bf16 %v313, %v312
      %v331 = vpack.c.bf16 %v315, %v314
      %v348 = vunpack.c.l.b16 %v316
      %v349 = vunpack.c.h.b16 %v316
      %v350 = vunpack.c.l.b16 %v317
      %v351 = vunpack.c.h.b16 %v317
      %v352 = vunpack.c.l.b16 %v318
      %v353 = vunpack.c.h.b16 %v318
      %v354 = vunpack.c.l.b16 %v319
      %v355 = vunpack.c.h.b16 %v319
      %v356 = vunpack.c.l.b16 %v320
      %v357 = vunpack.c.h.b16 %v320
      %v358 = vunpack.c.l.b16 %v321
      %v359 = vunpack.c.h.b16 %v321
      %v360 = vunpack.c.l.b16 %v322
      %v361 = vunpack.c.h.b16 %v322
      %v362 = vunpack.c.l.b16 %v323
      %v363 = vunpack.c.h.b16 %v323
      %v364 = vunpack.c.l.b16 %v324
      %v365 = vunpack.c.h.b16 %v324
      %v366 = vunpack.c.l.b16 %v325
      %v367 = vunpack.c.h.b16 %v325
      %v368 = vunpack.c.l.b16 %v326
      %v369 = vunpack.c.h.b16 %v326
      %v370 = vunpack.c.l.b16 %v327
      %v371 = vunpack.c.h.b16 %v327
      %v372 = vunpack.c.l.b16 %v328
      %v373 = vunpack.c.h.b16 %v328
      %v374 = vunpack.c.l.b16 %v329
      %v375 = vunpack.c.h.b16 %v329
      %v376 = vunpack.c.l.b16 %v330
      %v377 = vunpack.c.h.b16 %v330
      %v378 = vunpack.c.l.b16 %v331
      %v379 = vunpack.c.h.b16 %v331
      %v380 = vpack.c.b16 %v348, %v348
      %v381 = vpack.c.b16 %v349, %v349
      %v382 = vpack.c.b16 %v350, %v350
      %v383 = vpack.c.b16 %v351, %v351
      %v384 = vpack.c.b16 %v352, %v352
      %v385 = vpack.c.b16 %v353, %v353
      %v386 = vpack.c.b16 %v354, %v354
      %v387 = vpack.c.b16 %v355, %v355
      %v388 = vpack.c.b16 %v356, %v356
      %v389 = vpack.c.b16 %v357, %v357
      %v390 = vpack.c.b16 %v358, %v358
      %v391 = vpack.c.b16 %v359, %v359
      %v392 = vpack.c.b16 %v360, %v360
      %v393 = vpack.c.b16 %v361, %v361
      %v394 = vpack.c.b16 %v362, %v362
      %v395 = vpack.c.b16 %v363, %v363
      %v396 = vpack.c.b16 %v364, %v364
      %v397 = vpack.c.b16 %v365, %v365
      %v398 = vpack.c.b16 %v366, %v366
      %v399 = vpack.c.b16 %v367, %v367
      %v400 = vpack.c.b16 %v368, %v368
      %v401 = vpack.c.b16 %v369, %v369
      %v402 = vpack.c.b16 %v370, %v370
      %v403 = vpack.c.b16 %v371, %v371
      %v404 = vpack.c.b16 %v372, %v372
      %v405 = vpack.c.b16 %v373, %v373
      %v406 = vpack.c.b16 %v374, %v374
      %v407 = vpack.c.b16 %v375, %v375
      %v408 = vpack.c.b16 %v376, %v376
      %v409 = vpack.c.b16 %v377, %v377
      %v410 = vpack.c.b16 %v378, %v378
      %v411 = vpack.c.b16 %v379, %v379
      %444 = vst [vmem:[%s172] sm:$0xf] %v380
      %445 = vst [vmem:[%s172 + $0x4] sm:$0xf] %v381
      %446 = vst [vmem:[%s172 + $0x8] sm:$0xf] %v382
      %447 = vst [vmem:[%s172 + $0xc] sm:$0xf] %v383
      %448 = vst [vmem:[%s172 + $0x10] sm:$0xf] %v384
      %449 = vst [vmem:[%s172 + $0x14] sm:$0xf] %v385
      %450 = vst [vmem:[%s172 + $0x18] sm:$0xf] %v386
      %451 = vst [vmem:[%s172 + $0x1c] sm:$0xf] %v387
      %452 = vst [vmem:[%s172 + $0x20] sm:$0xf] %v388
      %453 = vst [vmem:[%s172 + $0x24] sm:$0xf] %v389
      %454 = vst [vmem:[%s172 + $0x28] sm:$0xf] %v390
      %455 = vst [vmem:[%s172 + $0x2c] sm:$0xf] %v391
      %456 = vst [vmem:[%s172 + $0x30] sm:$0xf] %v392
      %457 = vst [vmem:[%s172 + $0x34] sm:$0xf] %v393
      %458 = vst [vmem:[%s172 + $0x38] sm:$0xf] %v394
      %459 = vst [vmem:[%s172 + $0x3c] sm:$0xf] %v395
      %460 = vst [vmem:[%s172 + $0x40] sm:$0xf] %v396
      %461 = vst [vmem:[%s172 + $0x44] sm:$0xf] %v397
      %462 = vst [vmem:[%s172 + $0x48] sm:$0xf] %v398
      %463 = vst [vmem:[%s172 + $0x4c] sm:$0xf] %v399
      %464 = vst [vmem:[%s172 + $0x50] sm:$0xf] %v400
      %465 = vst [vmem:[%s172 + $0x54] sm:$0xf] %v401
      %466 = vst [vmem:[%s172 + $0x58] sm:$0xf] %v402
      %467 = vst [vmem:[%s172 + $0x5c] sm:$0xf] %v403
      %468 = vst [vmem:[%s172 + $0x60] sm:$0xf] %v404
      %469 = vst [vmem:[%s172 + $0x64] sm:$0xf] %v405
      %470 = vst [vmem:[%s172 + $0x68] sm:$0xf] %v406
      %471 = vst [vmem:[%s172 + $0x6c] sm:$0xf] %v407
      %472 = vst [vmem:[%s172 + $0x70] sm:$0xf] %v408
      %473 = vst [vmem:[%s172 + $0x74] sm:$0xf] %v409
      %474 = vst [vmem:[%s172 + $0x78] sm:$0xf] %v410
      %475 = vst [vmem:[%s172 + $0x7c] sm:$0xf] %v411
      %s476 = smul.u32 32, %s14
      %p477 = scmp.lt.s32.totalorder %s476, 63
      %s478 = scalar_select %p477, %s476, 63
      %s479 = smul.addr %s478, 4
      %s480 = scalar_lea.vmem %s3, %s479
      // Predicated region
      $region33: #{_lambda_.7} parent=31 // pred_check
        %p481 = pneg %p100
      $region34: #{_lambda_.7} parent=31 // pred_check_branch
        %483 = sbr.rel (%p481) target = $region36
      $region35: #{_lambda_.7} parent=31 // pred_region
        %s484 = smul.u32 32, %s14
      $region36: #{_lambda_.7} parent=31 // pred_fallthru
        _
    $region32: #{_lambda_.7} parent=5 // pred_fallthru
      _
    %p485 = scmp.le.s32.totalorder 2, %s9
    // Predicated region
    $region37: #{_lambda_.7} parent=5 // pred_check
      %p486 = pneg %p485
    $region38: #{_lambda_.7} parent=5 // pred_check_branch
      %488 = sbr.rel (%p486) target = $region40
    $region39: #{_lambda_.7} parent=5 // pred_region
      %s489 = ssub.s32 %s9, 2
      // Predicated region
      $region41: #{_lambda_.7} parent=39 // pred_check
        %p490 = pneg %p106
      $region42: #{_lambda_.7} parent=39 // pred_check_branch
        %492 = sbr.rel (%p490) target = $region44
      $region43: #{_lambda_.7} parent=39 // pred_region
        %s493 = smul.u32 32, %s15
        %p494 = scmp.lt.s32.totalorder %s493, 63
        %s495 = scalar_select %p494, %s493, 63
        %s496 = smul.addr %s495, 4
        %s497 = scalar_lea.vmem %s3, %s496
      $region44: #{_lambda_.7} parent=39 // pred_fallthru
        _
    $region40: #{_lambda_.7} parent=5 // pred_fallthru
      _
  $region6: #{_lambda_.7} parent=0 // loop_footer
    %s13 = sadd.s32 1, %s9
  $region7: #{_lambda_.7} parent=0 // loop_footer_branch
    %8 = sbr.rel target = $region3
  $region8: #{_lambda_.7} parent=0 // loop_exit
    _

// kernel: _lambda_.6
$region0: #{_lambda_.6}
  #allocation0 [shape = 'u32[]', space=smem, size = 0x4, offset = 0x4, fixed_abs, tag = 'smem constant byte address 0x4 - core index']
  #allocation1 [shape = 'u32[144,128]{1,0:T(1,128)}', space=vmem, size = 0x12000, scoped, tag = 'internal scratch']
  #allocation2 [shape = 'f32[256,128]{1,0:T(8,128)}', space=vmem, size = 0x20000, scoped, tag = 'scratch operand']
  %s0 = inlined_call_operand.vmem [shape: bf16[512,128], index: 0, kind: input, shape index: {}]
  %s1 = inlined_call_operand.vmem [shape: bf16[128,128], index: 1, kind: input, shape index: {}]
  %s2 = inlined_call_operand.vmem [shape: f32[512,128], index: 2, kind: output, shape index: {0}]
  %s3 = inlined_call_operand.vmem [shape: f32[2,8,128], index: 3, kind: output, shape index: {1}]
  %4 = xla_tuple %s2, %s3
  %s5 = sld [smem:[#allocation0]]
  $region57: #{_lambda_.6} parent=0
    _
  %s7 = ssub.s32 1, %s5
  %s8 = scalar_select 0, %s7, %s5
  loop: start=0, step=1, limit=4
  $region2: #{_lambda_.6} parent=0 // loop_pre_header
    _
  $region3: #{_lambda_.6} parent=0 // loop_header
    %s10 = sphi 0, %s14
    %p11 = scmp.ge.s32.totalorder %s10, 4
    %s17 = sphi 0, %s29
    %s18 = sphi 0, %s25
    %s19 = sphi 0, %s17
    %s20 = sphi 0, %s18
    %s21 = sphi 0, %s19
    %s22 = sphi 0, %s20
    %s34 = sphi 0, %s36
    %s37 = sphi 0, %s34
    %s38 = sphi 0, %s37
    %s54 = sphi 0, %s38
    %s60 = sphi 0, %s62
    %s63 = sphi 0, %s60
    %s64 = sphi 0, %s63
    %s80 = sphi 0, %s64
    %s86 = sphi 0, %s88
    %s89 = sphi 0, %s86
    %s90 = sphi 0, %s89
    %s106 = sphi 0, %s90
    %s112 = sphi 0, %s114
    %s115 = sphi 0, %s112
    %s116 = sphi 0, %s115
    %s132 = sphi 0, %s116
  $region4: #{_lambda_.6} parent=0 // loop_header_branch
    %13 = sbr.rel (%p11) target = $region8
  $region5: #{_lambda_.6} parent=0 // loop_body
    %s15 = ssub.s32 %s10, 1
    %s16 = ssub.s32 %s10, 2
    %s23 = sadd.s32 1, %s18
    %p24 = scmp.ge.s32.totalorder %s23, 1
    %s25 = scalar_select %p24, 0, %s23
    %s26 = sadd.s32 1, %s17
    %s27 = scalar_select %p24, %s26, %s17
    %p28 = scmp.ge.s32.totalorder %s27, 2
    %s29 = scalar_select %p28, 0, %s27
    %s30 = ssub.s32 %s17, %s29
    %s31 = ssub.s32 %s18, %s25
    %s32 = sor.u32 %s30, %s31
    %p33 = scmp.eq.s32.totalorder %s32, 0
    %s35 = sadd.s32 %s34, 1
    %s36 = scalar_select %p33, %s34, %s35
    %p39 = pneg %p33
    %p40 = scmp.eq.s32.totalorder %s10, 1
    %p41 = por %p39, %p40
    %p42 = scmp.ne.s32.totalorder %s34, %s37
    %p43 = scmp.eq.s32.totalorder %s10, 0
    %p44 = por %p42, %p43
    %p45 = scmp.ne.s32.totalorder %s34, %s37
    %p46 = scmp.eq.s32.totalorder %s15, 1
    %p47 = por %p45, %p46
    %p48 = scmp.ne.s32.totalorder %s37, %s38
    %p49 = scmp.eq.s32.totalorder %s15, 0
    %p50 = por %p48, %p49
    %p51 = scmp.ne.s32.totalorder %s37, %s38
    %p52 = scmp.eq.s32.totalorder %s16, 1
    %p53 = por %p51, %p52
    %p55 = scmp.ne.s32.totalorder %s38, %s54
    %p56 = scmp.eq.s32.totalorder %s16, 0
    %p57 = por %p55, %p56
    %s58 = ssub.s32 %s18, %s25
    %p59 = scmp.eq.s32.totalorder %s58, 0
    %s61 = sadd.s32 %s60, 1
    %s62 = scalar_select %p59, %s60, %s61
    %p65 = pneg %p59
    %p66 = scmp.eq.s32.totalorder %s10, 1
    %p67 = por %p65, %p66
    %p68 = scmp.ne.s32.totalorder %s60, %s63
    %p69 = scmp.eq.s32.totalorder %s10, 0
    %p70 = por %p68, %p69
    %p71 = scmp.ne.s32.totalorder %s60, %s63
    %p72 = scmp.eq.s32.totalorder %s15, 1
    %p73 = por %p71, %p72
    %p74 = scmp.ne.s32.totalorder %s63, %s64
    %p75 = scmp.eq.s32.totalorder %s15, 0
    %p76 = por %p74, %p75
    %p77 = scmp.ne.s32.totalorder %s63, %s64
    %p78 = scmp.eq.s32.totalorder %s16, 1
    %p79 = por %p77, %p78
    %p81 = scmp.ne.s32.totalorder %s64, %s80
    %p82 = scmp.eq.s32.totalorder %s16, 0
    %p83 = por %p81, %p82
    %s84 = ssub.s32 %s17, %s29
    %p85 = scmp.eq.s32.totalorder %s84, 0
    %s87 = sadd.s32 %s86, 1
    %s88 = scalar_select %p85, %s86, %s87
    %p91 = pneg %p85
    %p92 = scmp.eq.s32.totalorder %s10, 1
    %p93 = por %p91, %p92
    %p94 = scmp.ne.s32.totalorder %s86, %s89
    %p95 = scmp.eq.s32.totalorder %s10, 0
    %p96 = por %p94, %p95
    %p97 = scmp.ne.s32.totalorder %s86, %s89
    %p98 = scmp.eq.s32.totalorder %s15, 1
    %p99 = por %p97, %p98
    %p100 = scmp.ne.s32.totalorder %s89, %s90
    %p101 = scmp.eq.s32.totalorder %s15, 0
    %p102 = por %p100, %p101
    %p103 = scmp.ne.s32.totalorder %s89, %s90
    %p104 = scmp.eq.s32.totalorder %s16, 1
    %p105 = por %p103, %p104
    %p107 = scmp.ne.s32.totalorder %s90, %s106
    %p108 = scmp.eq.s32.totalorder %s16, 0
    %p109 = por %p107, %p108
    %s110 = ssub.s32 %s17, %s29
    %p111 = scmp.eq.s32.totalorder %s110, 0
    %s113 = sadd.s32 %s112, 1
    %s114 = scalar_select %p111, %s112, %s113
    %p117 = pneg %p111
    %p118 = scmp.eq.s32.totalorder %s10, 1
    %p119 = por %p117, %p118
    %p120 = scmp.ne.s32.totalorder %s112, %s115
    %p121 = scmp.eq.s32.totalorder %s10, 0
    %p122 = por %p120, %p121
    %p123 = scmp.ne.s32.totalorder %s112, %s115
    %p124 = scmp.eq.s32.totalorder %s15, 1
    %p125 = por %p123, %p124
    %p126 = scmp.ne.s32.totalorder %s115, %s116
    %p127 = scmp.eq.s32.totalorder %s15, 0
    %p128 = por %p126, %p127
    %p129 = scmp.ne.s32.totalorder %s115, %s116
    %p130 = scmp.eq.s32.totalorder %s16, 1
    %p131 = por %p129, %p130
    %p133 = scmp.ne.s32.totalorder %s116, %s132
    %p134 = scmp.eq.s32.totalorder %s16, 0
    %p135 = por %p133, %p134
    %p136 = scmp.le.s32.totalorder 1, %s10
    %p137 = scmp.lt.s32.totalorder %s10, 3
    %p138 = pnand %p136, %p137
    %p139 = pneg %p138
    // Predicated region
    $region9: #{_lambda_.6} parent=5 // pred_check
      _
    $region10: #{_lambda_.6} parent=5 // pred_check_branch
      %141 = sbr.rel (%p138) target = $region12
    $region11: #{_lambda_.6} parent=5 // pred_region
      %s142 = ssub.s32 %s10, 1
      // Predicated region
      $region13: #{_lambda_.6} parent=11 // pred_check
        %p143 = pneg %p76
      $region14: #{_lambda_.6} parent=11 // pred_check_branch
        %145 = sbr.rel (%p143) target = $region16
      $region15: #{_lambda_.6} parent=11 // pred_region
        %s146 = smul.u32 16, %s20
        %p147 = scmp.lt.s32.totalorder %s146, 15
        %s148 = scalar_select %p147, %s146, 15
        %s149 = smul.addr %s148, 4
        %s150 = scalar_lea.vmem %s1, %s149
        %s151 = smul.u32 16, %s20
      $region16: #{_lambda_.6} parent=11 // pred_fallthru
        _
    $region12: #{_lambda_.6} parent=5 // pred_fallthru
      _
    %p152 = scmp.lt.s32.totalorder %s10, 2
    // Predicated region
    $region17: #{_lambda_.6} parent=5 // pred_check
      %p153 = pneg %p152
    $region18: #{_lambda_.6} parent=5 // pred_check_branch
      %155 = sbr.rel (%p153) target = $region20
    $region19: #{_lambda_.6} parent=5 // pred_region
      // Predicated region
      $region21: #{_lambda_.6} parent=19 // pred_check
        %p156 = pneg %p44
      $region22: #{_lambda_.6} parent=19 // pred_check_branch
        %158 = sbr.rel (%p156) target = $region24
      $region23: #{_lambda_.6} parent=19 // pred_region
        %s159 = smul.u32 32, %s17
        %p160 = scmp.lt.s32.totalorder %s159, 63
        %s161 = scalar_select %p160, %s159, 63
        %p162 = scmp.lt.s32.totalorder %s18, 0
        %s163 = scalar_select %p162, %s18, 0
        %s164 = sadd.s32 %s163, %s161
        %s165 = smul.addr %s164, 4
        %s166 = scalar_lea.vmem %s0, %s165
        %s167 = smul.u32 32, %s17
      $region24: #{_lambda_.6} parent=19 // pred_fallthru
        _
    $region20: #{_lambda_.6} parent=5 // pred_fallthru
      _
    %p168 = scmp.le.s32.totalorder 1, %s10
    %p169 = scmp.lt.s32.totalorder %s10, 3
    %p170 = pnand %p168, %p169
    %p171 = pneg %p170
    // Predicated region
    $region25: #{_lambda_.6} parent=5 // pred_check
      _
    $region26: #{_lambda_.6} parent=5 // pred_check_branch
      %173 = sbr.rel (%p170) target = $region28
    $region27: #{_lambda_.6} parent=5 // pred_region
      %s174 = ssub.s32 %s10, 1
      %s175 = smul.u32 32, %s19
      %p176 = scmp.lt.s32.totalorder %s175, 63
      %s177 = scalar_select %p176, %s175, 63
      %p178 = scmp.lt.s32.totalorder %s20, 0
      %s179 = scalar_select %p178, %s20, 0
      %s180 = sadd.s32 %s179, %s177
      %s181 = smul.addr %s180, 4
      %s182 = scalar_lea.vmem %s0, %s181
      %p183 = pneg %p50
      %p184 = pneg %p47
      %s185 = smul.u32 16, %s20
      %p186 = scmp.lt.s32.totalorder %s185, 15
      %s187 = scalar_select %p186, %s185, 15
      %s188 = smul.addr %s187, 4
      %s189 = scalar_lea.vmem %s1, %s188
      %p190 = pneg %p76
      %p191 = pneg %p73
      %p192 = pneg %p102
      %p193 = pneg %p99
      %s194 = smul.u32 32, %s19
      %p195 = scmp.lt.s32.totalorder %s194, 63
      %s196 = scalar_select %p195, %s194, 63
      %s197 = smul.addr %s196, 8
      %s198 = scalar_lea.vmem %s2, %s197
      %p199 = pneg %p128
      %p200 = pneg %p125
      %p201 = scmp.lt.s32.totalorder %s19, 1
      %s202 = scalar_select %p201, %s19, 1
      %s203 = smul.addr %s202, 8
      %s204 = scalar_lea.vmem %s3, %s203
      %s205 = smul.u32 32, %s19
      %p206 = scmp.lt.s32.totalorder %s205, 63
      %s207 = scalar_select %p206, %s205, 63
      %p208 = scmp.lt.s32.totalorder %s20, 0
      %s209 = scalar_select %p208, %s20, 0
      %s210 = sadd.s32 %s209, %s207
      %s211 = smul.addr %s210, 4
      %s212 = scalar_lea.vmem %s0, %s211
      %s213 = smul.u32 32, %s19
      %s214 = smul.u32 16, %s20
      %p215 = scmp.lt.s32.totalorder %s214, 15
      %s216 = scalar_select %p215, %s214, 15
      %s217 = smul.addr %s216, 4
      %s218 = scalar_lea.vmem %s1, %s217
      %s219 = smul.u32 16, %s20
      %s220 = smul.u32 32, %s19
      %p221 = scmp.lt.s32.totalorder %s220, 63
      %s222 = scalar_select %p221, %s220, 63
      %s223 = smul.addr %s222, 8
      %s224 = scalar_lea.vmem %s2, %s223
      %s225 = smul.u32 32, %s19
      %p226 = scmp.lt.s32.totalorder %s19, 1
      %s227 = scalar_select %p226, %s19, 1
      %s228 = smul.addr %s227, 8
      %s229 = scalar_lea.vmem %s3, %s228
      %p231 = scmp.eq.s32.totalorder %s20, 0
      // Predicated region
      $region29: #{_lambda_.6} parent=27 // pred_check
        %p232 = pneg %p231
      $region30: #{_lambda_.6} parent=27 // pred_check_branch
        %234 = sbr.rel (%p232) target = $region32
      $region31: #{_lambda_.6} parent=27 // pred_region
        %235 = vst [vmem:[#allocation2] sm:$0xff] 0.0
        %236 = vst [vmem:[#allocation2 + $0x8] sm:$0xff] 0.0
        %237 = vst [vmem:[#allocation2 + $0x10] sm:$0xff] 0.0
        %238 = vst [vmem:[#allocation2 + $0x18] sm:$0xff] 0.0
        %239 = vst [vmem:[#allocation2 + $0x20] sm:$0xff] 0.0
        %240 = vst [vmem:[#allocation2 + $0x28] sm:$0xff] 0.0
        %241 = vst [vmem:[#allocation2 + $0x30] sm:$0xff] 0.0
        %242 = vst [vmem:[#allocation2 + $0x38] sm:$0xff] 0.0
        %243 = vst [vmem:[#allocation2 + $0x40] sm:$0xff] 0.0
        %244 = vst [vmem:[#allocation2 + $0x48] sm:$0xff] 0.0
        %245 = vst [vmem:[#allocation2 + $0x50] sm:$0xff] 0.0
        %246 = vst [vmem:[#allocation2 + $0x58] sm:$0xff] 0.0
        %247 = vst [vmem:[#allocation2 + $0x60] sm:$0xff] 0.0
        %248 = vst [vmem:[#allocation2 + $0x68] sm:$0xff] 0.0
        %249 = vst [vmem:[#allocation2 + $0x70] sm:$0xff] 0.0
        %250 = vst [vmem:[#allocation2 + $0x78] sm:$0xff] 0.0
        %251 = vst [vmem:[#allocation2 + $0x80] sm:$0xff] 0.0
        %252 = vst [vmem:[#allocation2 + $0x88] sm:$0xff] 0.0
        %253 = vst [vmem:[#allocation2 + $0x90] sm:$0xff] 0.0
        %254 = vst [vmem:[#allocation2 + $0x98] sm:$0xff] 0.0
        %255 = vst [vmem:[#allocation2 + $0xa0] sm:$0xff] 0.0
        %256 = vst [vmem:[#allocation2 + $0xa8] sm:$0xff] 0.0
        %257 = vst [vmem:[#allocation2 + $0xb0] sm:$0xff] 0.0
        %258 = vst [vmem:[#allocation2 + $0xb8] sm:$0xff] 0.0
        %259 = vst [vmem:[#allocation2 + $0xc0] sm:$0xff] 0.0
        %260 = vst [vmem:[#allocation2 + $0xc8] sm:$0xff] 0.0
        %261 = vst [vmem:[#allocation2 + $0xd0] sm:$0xff] 0.0
        %262 = vst [vmem:[#allocation2 + $0xd8] sm:$0xff] 0.0
        %263 = vst [vmem:[#allocation2 + $0xe0] sm:$0xff] 0.0
        %264 = vst [vmem:[#allocation2 + $0xe8] sm:$0xff] 0.0
        %265 = vst [vmem:[#allocation2 + $0xf0] sm:$0xff] 0.0
        %266 = vst [vmem:[#allocation2 + $0xf8] sm:$0xff] 0.0
      $region32: #{_lambda_.6} parent=27 // pred_fallthru
        _
      %v267 = vld [vmem:[%s212] sm:$0xf]
      %v268 = vld [vmem:[%s212 + $0x4] sm:$0xf]
      %v269 = vld [vmem:[%s212 + $0x8] sm:$0xf]
      %v270 = vld [vmem:[%s212 + $0xc] sm:$0xf]
      %v271 = vld [vmem:[%s212 + $0x10] sm:$0xf]
      %v272 = vld [vmem:[%s212 + $0x14] sm:$0xf]
      %v273 = vld [vmem:[%s212 + $0x18] sm:$0xf]
      %v274 = vld [vmem:[%s212 + $0x1c] sm:$0xf]
      %v275 = vld [vmem:[%s212 + $0x20] sm:$0xf]
      %v276 = vld [vmem:[%s212 + $0x24] sm:$0xf]
      %v277 = vld [vmem:[%s212 + $0x28] sm:$0xf]
      %v278 = vld [vmem:[%s212 + $0x2c] sm:$0xf]
      %v279 = vld [vmem:[%s212 + $0x30] sm:$0xf]
      %v280 = vld [vmem:[%s212 + $0x34] sm:$0xf]
      %v281 = vld [vmem:[%s212 + $0x38] sm:$0xf]
      %v282 = vld [vmem:[%s212 + $0x3c] sm:$0xf]
      %v283 = vld [vmem:[%s212 + $0x40] sm:$0xf]
      %v284 = vld [vmem:[%s212 + $0x44] sm:$0xf]
      %v285 = vld [vmem:[%s212 + $0x48] sm:$0xf]
      %v286 = vld [vmem:[%s212 + $0x4c] sm:$0xf]
      %v287 = vld [vmem:[%s212 + $0x50] sm:$0xf]
      %v288 = vld [vmem:[%s212 + $0x54] sm:$0xf]
      %v289 = vld [vmem:[%s212 + $0x58] sm:$0xf]
      %v290 = vld [vmem:[%s212 + $0x5c] sm:$0xf]
      %v291 = vld [vmem:[%s212 + $0x60] sm:$0xf]
      %v292 = vld [vmem:[%s212 + $0x64] sm:$0xf]
      %v293 = vld [vmem:[%s212 + $0x68] sm:$0xf]
      %v294 = vld [vmem:[%s212 + $0x6c] sm:$0xf]
      %v295 = vld [vmem:[%s212 + $0x70] sm:$0xf]
      %v296 = vld [vmem:[%s212 + $0x74] sm:$0xf]
      %v297 = vld [vmem:[%s212 + $0x78] sm:$0xf]
      %v298 = vld [vmem:[%s212 + $0x7c] sm:$0xf]
      %v299 = vld [vmem:[#allocation2] sm:$0xff]
      %v300 = vld [vmem:[#allocation2 + $0x8] sm:$0xff]
      %v301 = vld [vmem:[#allocation2 + $0x10] sm:$0xff]
      %v302 = vld [vmem:[#allocation2 + $0x18] sm:$0xff]
      %v303 = vld [vmem:[#allocation2 + $0x20] sm:$0xff]
      %v304 = vld [vmem:[#allocation2 + $0x28] sm:$0xff]
      %v305 = vld [vmem:[#allocation2 + $0x30] sm:$0xff]
      %v306 = vld [vmem:[#allocation2 + $0x38] sm:$0xff]
      %v307 = vld [vmem:[#allocation2 + $0x40] sm:$0xff]
      %v308 = vld [vmem:[#allocation2 + $0x48] sm:$0xff]
      %v309 = vld [vmem:[#allocation2 + $0x50] sm:$0xff]
      %v310 = vld [vmem:[#allocation2 + $0x58] sm:$0xff]
      %v311 = vld [vmem:[#allocation2 + $0x60] sm:$0xff]
      %v312 = vld [vmem:[#allocation2 + $0x68] sm:$0xff]
      %v313 = vld [vmem:[#allocation2 + $0x70] sm:$0xff]
      %v314 = vld [vmem:[#allocation2 + $0x78] sm:$0xff]
      %v315 = vld [vmem:[#allocation2 + $0x80] sm:$0xff]
      %v316 = vld [vmem:[#allocation2 + $0x88] sm:$0xff]
      %v317 = vld [vmem:[#allocation2 + $0x90] sm:$0xff]
      %v318 = vld [vmem:[#allocation2 + $0x98] sm:$0xff]
      %v319 = vld [vmem:[#allocation2 + $0xa0] sm:$0xff]
      %v320 = vld [vmem:[#allocation2 + $0xa8] sm:$0xff]
      %v321 = vld [vmem:[#allocation2 + $0xb0] sm:$0xff]
      %v322 = vld [vmem:[#allocation2 + $0xb8] sm:$0xff]
      %v323 = vld [vmem:[#allocation2 + $0xc0] sm:$0xff]
      %v324 = vld [vmem:[#allocation2 + $0xc8] sm:$0xff]
      %v325 = vld [vmem:[#allocation2 + $0xd0] sm:$0xff]
      %v326 = vld [vmem:[#allocation2 + $0xd8] sm:$0xff]
      %v327 = vld [vmem:[#allocation2 + $0xe0] sm:$0xff]
      %v328 = vld [vmem:[#allocation2 + $0xe8] sm:$0xff]
      %v329 = vld [vmem:[#allocation2 + $0xf0] sm:$0xff]
      %v330 = vld [vmem:[#allocation2 + $0xf8] sm:$0xff]
      %v331 = vld [vmem:[%s218] sm:$0xf]
      %v332 = vld [vmem:[%s218 + $0x4] sm:$0xf]
      %v333 = vld [vmem:[%s218 + $0x8] sm:$0xf]
      %v334 = vld [vmem:[%s218 + $0xc] sm:$0xf]
      %v335 = vld [vmem:[%s218 + $0x10] sm:$0xf]
      %v336 = vld [vmem:[%s218 + $0x14] sm:$0xf]
      %v337 = vld [vmem:[%s218 + $0x18] sm:$0xf]
      %v338 = vld [vmem:[%s218 + $0x1c] sm:$0xf]
      %v339 = vld [vmem:[%s218 + $0x20] sm:$0xf]
      %v340 = vld [vmem:[%s218 + $0x24] sm:$0xf]
      %v341 = vld [vmem:[%s218 + $0x28] sm:$0xf]
      %v342 = vld [vmem:[%s218 + $0x2c] sm:$0xf]
      %v343 = vld [vmem:[%s218 + $0x30] sm:$0xf]
      %v344 = vld [vmem:[%s218 + $0x34] sm:$0xf]
      %v345 = vld [vmem:[%s218 + $0x38] sm:$0xf]
      %v346 = vld [vmem:[%s218 + $0x3c] sm:$0xf]
      %v379 = vunpack.c.l.b16 %v267
      %v380 = vunpack.c.l.b16 %v268
      %v381 = vunpack.c.l.b16 %v269
      %v382 = vunpack.c.l.b16 %v270
      %v383 = vunpack.c.l.b16 %v271
      %v384 = vunpack.c.l.b16 %v272
      %v385 = vunpack.c.l.b16 %v273
      %v386 = vunpack.c.l.b16 %v274
      %v387 = vunpack.c.l.b16 %v275
      %v388 = vunpack.c.l.b16 %v276
      %v389 = vunpack.c.l.b16 %v277
      %v390 = vunpack.c.l.b16 %v278
      %v391 = vunpack.c.l.b16 %v279
      %v392 = vunpack.c.l.b16 %v280
      %v393 = vunpack.c.l.b16 %v281
      %v394 = vunpack.c.l.b16 %v282
      %v395 = vunpack.c.l.b16 %v283
      %v396 = vunpack.c.l.b16 %v284
      %v397 = vunpack.c.l.b16 %v285
      %v398 = vunpack.c.l.b16 %v286
      %v399 = vunpack.c.l.b16 %v287
      %v400 = vunpack.c.l.b16 %v288
      %v401 = vunpack.c.l.b16 %v289
      %v402 = vunpack.c.l.b16 %v290
      %v403 = vunpack.c.l.b16 %v291
      %v404 = vunpack.c.l.b16 %v292
      %v405 = vunpack.c.l.b16 %v293
      %v406 = vunpack.c.l.b16 %v294
      %v407 = vunpack.c.l.b16 %v295
      %v408 = vunpack.c.l.b16 %v296
      %v409 = vunpack.c.l.b16 %v297
      %v410 = vunpack.c.l.b16 %v298
      %v411 = vpack.c.b16 %v380, %v379
      %v412 = vpack.c.b16 %v382, %v381
      %v413 = vpack.c.b16 %v384, %v383
      %v414 = vpack.c.b16 %v386, %v385
      %v415 = vpack.c.b16 %v388, %v387
      %v416 = vpack.c.b16 %v390, %v389
      %v417 = vpack.c.b16 %v392, %v391
      %v418 = vpack.c.b16 %v394, %v393
      %v419 = vpack.c.b16 %v396, %v395
      %v420 = vpack.c.b16 %v398, %v397
      %v421 = vpack.c.b16 %v400, %v399
      %v422 = vpack.c.b16 %v402, %v401
      %v423 = vpack.c.b16 %v404, %v403
      %v424 = vpack.c.b16 %v406, %v405
      %v425 = vpack.c.b16 %v408, %v407
      %v426 = vpack.c.b16 %v410, %v409
      %v459 = vunpack.c.l.b16 %v331
      %v460 = vunpack.c.l.b16 %v332
      %v461 = vunpack.c.l.b16 %v333
      %v462 = vunpack.c.l.b16 %v334
      %v463 = vunpack.c.l.b16 %v335
      %v464 = vunpack.c.l.b16 %v336
      %v465 = vunpack.c.l.b16 %v337
      %v466 = vunpack.c.l.b16 %v338
      %v467 = vunpack.c.l.b16 %v339
      %v468 = vunpack.c.l.b16 %v340
      %v469 = vunpack.c.l.b16 %v341
      %v470 = vunpack.c.l.b16 %v342
      %v471 = vunpack.c.l.b16 %v343
      %v472 = vunpack.c.l.b16 %v344
      %v473 = vunpack.c.l.b16 %v345
      %v474 = vunpack.c.l.b16 %v346
      %v475 = vpack.c.b16 %v460, %v459
      %v476 = vpack.c.b16 %v462, %v461
      %v477 = vpack.c.b16 %v464, %v463
      %v478 = vpack.c.b16 %v466, %v465
      %v479 = vpack.c.b16 %v468, %v467
      %v480 = vpack.c.b16 %v470, %v469
      %v481 = vpack.c.b16 %v472, %v471
      %v482 = vpack.c.b16 %v474, %v473
      %491 = vmatprep.subr.bf16.mxu0 0
      %492 = vmatpush1.bf16.msra.mxu0 %v482
      %493 = vmatprep.subr.bf16.mxu0 0
      %494 = vmatpush1.bf16.msra.mxu0 %v481
      %495 = vmatprep.subr.bf16.mxu0 0
      %496 = vmatpush1.bf16.msra.mxu0 %v480
      %497 = vmatprep.subr.bf16.mxu0 0
      %498 = vmatpush1.bf16.msra.mxu0 %v479
      %499 = vmatprep.subr.bf16.mxu0 0
      %500 = vmatpush1.bf16.msra.mxu0 %v478
      %501 = vmatprep.subr.bf16.mxu0 0
      %502 = vmatpush1.bf16.msra.mxu0 %v477
      %503 = vmatprep.subr.bf16.mxu0 0
      %504 = vmatpush1.bf16.msra.mxu0 %v476
      %505 = vmatprep.subr.bf16.mxu0 0
      %506 = vmatpush1.bf16.msra.mxu0 %v475
      %507 = vmatprep.subr.bf16.mxu0 0
      %508 = vmatpush2.bf16.msra.mxu0 0
      %509 = vmatprep.subr.bf16.mxu0 0
      %510 = vmatpush2.bf16.msra.mxu0 0
      %511 = vmatprep.subr.bf16.mxu0 0
      %512 = vmatpush2.bf16.msra.mxu0 0
      %513 = vmatprep.subr.bf16.mxu0 0
      %514 = vmatpush2.bf16.msra.mxu0 0
      %515 = vmatprep.subr.bf16.mxu0 0
      %516 = vmatpush2.bf16.msra.mxu0 0
      %517 = vmatprep.subr.bf16.mxu0 0
      %518 = vmatpush2.bf16.msra.mxu0 0
      %519 = vmatprep.subr.bf16.mxu0 0
      %520 = vmatpush2.bf16.msra.mxu0 0
      %521 = vmatprep.subr.bf16.mxu0 0
      %522 = vmatpush2.bf16.msra.mxu0 0
      %523 = vmatprep.mubr.bf16.mxu0 0
      %524 = vmatmul.mubr.bf16.gmra.mxu0 %v411
      %v525 = vpop.f32.mrf.mxu0
      %v526 = vadd.f32 0.0, %v525
      %v527 = vpop.f32.mrf.mxu0
      %v528 = vpop.f32.mrf.mxu0
      %v529 = vadd.f32 0.0, %v528
      %v530 = vpop.f32.mrf.mxu0
      %531 = vmatprep.mubr.bf16.mxu0 0
      %532 = vmatmul.mubr.bf16.gmra.mxu0 %v412
      %v533 = vpop.f32.mrf.mxu0
      %v534 = vadd.f32 0.0, %v533
      %v535 = vpop.f32.mrf.mxu0
      %v536 = vpop.f32.mrf.mxu0
      %v537 = vadd.f32 0.0, %v536
      %v538 = vpop.f32.mrf.mxu0
      %539 = vmatprep.mubr.bf16.mxu0 0
      %540 = vmatmul.mubr.bf16.gmra.mxu0 %v413
      %v541 = vpop.f32.mrf.mxu0
      %v542 = vadd.f32 0.0, %v541
      %v543 = vpop.f32.mrf.mxu0
      %v544 = vpop.f32.mrf.mxu0
      %v545 = vadd.f32 0.0, %v544
      %v546 = vpop.f32.mrf.mxu0
      %547 = vmatprep.mubr.bf16.mxu0 0
      %548 = vmatmul.mubr.bf16.gmra.mxu0 %v414
      %v549 = vpop.f32.mrf.mxu0
      %v550 = vadd.f32 0.0, %v549
      %v551 = vpop.f32.mrf.mxu0
      %v552 = vpop.f32.mrf.mxu0
      %v553 = vadd.f32 0.0, %v552
      %v554 = vpop.f32.mrf.mxu0
      %555 = vmatprep.mubr.bf16.mxu0 0
      %556 = vmatmul.mubr.bf16.gmra.mxu0 %v415
      %v557 = vpop.f32.mrf.mxu0
      %v558 = vadd.f32 0.0, %v557
      %v559 = vpop.f32.mrf.mxu0
      %v560 = vpop.f32.mrf.mxu0
      %v561 = vadd.f32 0.0, %v560
      %v562 = vpop.f32.mrf.mxu0
      %563 = vmatprep.mubr.bf16.mxu0 0
      %564 = vmatmul.mubr.bf16.gmra.mxu0 %v416
      %v565 = vpop.f32.mrf.mxu0
      %v566 = vadd.f32 0.0, %v565
      %v567 = vpop.f32.mrf.mxu0
      %v568 = vpop.f32.mrf.mxu0
      %v569 = vadd.f32 0.0, %v568
      %v570 = vpop.f32.mrf.mxu0
      %571 = vmatprep.mubr.bf16.mxu0 0
      %572 = vmatmul.mubr.bf16.gmra.mxu0 %v417
      %v573 = vpop.f32.mrf.mxu0
      %v574 = vadd.f32 0.0, %v573
      %v575 = vpop.f32.mrf.mxu0
      %v576 = vpop.f32.mrf.mxu0
      %v577 = vadd.f32 0.0, %v576
      %v578 = vpop.f32.mrf.mxu0
      %579 = vmatprep.mubr.bf16.mxu0 0
      %580 = vmatmul.mubr.bf16.gmra.mxu0 %v418
      %v581 = vpop.f32.mrf.mxu0
      %v582 = vadd.f32 0.0, %v581
      %v583 = vpop.f32.mrf.mxu0
      %v584 = vpop.f32.mrf.mxu0
      %v585 = vadd.f32 0.0, %v584
      %v586 = vpop.f32.mrf.mxu0
      %587 = vmatprep.mubr.bf16.mxu0 0
      %588 = vmatmul.mubr.bf16.gmra.mxu0 %v419
      %v589 = vpop.f32.mrf.mxu0
      %v590 = vadd.f32 0.0, %v589
      %v591 = vpop.f32.mrf.mxu0
      %v592 = vpop.f32.mrf.mxu0
      %v593 = vadd.f32 0.0, %v592
      %v594 = vpop.f32.mrf.mxu0
      %595 = vmatprep.mubr.bf16.mxu0 0
      %596 = vmatmul.mubr.bf16.gmra.mxu0 %v420
      %v597 = vpop.f32.mrf.mxu0
      %v598 = vadd.f32 0.0, %v597
      %v599 = vpop.f32.mrf.mxu0
      %v600 = vpop.f32.mrf.mxu0
      %v601 = vadd.f32 0.0, %v600
      %v602 = vpop.f32.mrf.mxu0
      %603 = vmatprep.mubr.bf16.mxu0 0
      %604 = vmatmul.mubr.bf16.gmra.mxu0 %v421
      %v605 = vpop.f32.mrf.mxu0
      %v606 = vadd.f32 0.0, %v605
      %v607 = vpop.f32.mrf.mxu0
      %v608 = vpop.f32.mrf.mxu0
      %v609 = vadd.f32 0.0, %v608
      %v610 = vpop.f32.mrf.mxu0
      %611 = vmatprep.mubr.bf16.mxu0 0
      %612 = vmatmul.mubr.bf16.gmra.mxu0 %v422
      %v613 = vpop.f32.mrf.mxu0
      %v614 = vadd.f32 0.0, %v613
      %v615 = vpop.f32.mrf.mxu0
      %v616 = vpop.f32.mrf.mxu0
      %v617 = vadd.f32 0.0, %v616
      %v618 = vpop.f32.mrf.mxu0
      %619 = vmatprep.mubr.bf16.mxu0 0
      %620 = vmatmul.mubr.bf16.gmra.mxu0 %v423
      %v621 = vpop.f32.mrf.mxu0
      %v622 = vadd.f32 0.0, %v621
      %v623 = vpop.f32.mrf.mxu0
      %v624 = vpop.f32.mrf.mxu0
      %v625 = vadd.f32 0.0, %v624
      %v626 = vpop.f32.mrf.mxu0
      %627 = vmatprep.mubr.bf16.mxu0 0
      %628 = vmatmul.mubr.bf16.gmra.mxu0 %v424
      %v629 = vpop.f32.mrf.mxu0
      %v630 = vadd.f32 0.0, %v629
      %v631 = vpop.f32.mrf.mxu0
      %v632 = vpop.f32.mrf.mxu0
      %v633 = vadd.f32 0.0, %v632
      %v634 = vpop.f32.mrf.mxu0
      %635 = vmatprep.mubr.bf16.mxu0 0
      %636 = vmatmul.mubr.bf16.gmra.mxu0 %v425
      %v637 = vpop.f32.mrf.mxu0
      %v638 = vadd.f32 0.0, %v637
      %v639 = vpop.f32.mrf.mxu0
      %v640 = vpop.f32.mrf.mxu0
      %v641 = vadd.f32 0.0, %v640
      %v642 = vpop.f32.mrf.mxu0
      %643 = vmatprep.mubr.bf16.mxu0 0
      %644 = vmatmul.mubr.bf16.gmra.mxu0 %v426
      %v645 = vpop.f32.mrf.mxu0
      %v646 = vadd.f32 0.0, %v645
      %v647 = vpop.f32.mrf.mxu0
      %v648 = vpop.f32.mrf.mxu0
      %v649 = vadd.f32 0.0, %v648
      %v650 = vpop.f32.mrf.mxu0
      %651 = vdwg.mxu0
      %v652 = vadd.f32 %v299, %v526
      %v653 = vadd.f32 %v300, %v529
      %v654 = vadd.f32 %v301, %v534
      %v655 = vadd.f32 %v302, %v537
      %v656 = vadd.f32 %v303, %v542
      %v657 = vadd.f32 %v304, %v545
      %v658 = vadd.f32 %v305, %v550
      %v659 = vadd.f32 %v306, %v553
      %v660 = vadd.f32 %v307, %v558
      %v661 = vadd.f32 %v308, %v561
      %v662 = vadd.f32 %v309, %v566
      %v663 = vadd.f32 %v310, %v569
      %v664 = vadd.f32 %v311, %v574
      %v665 = vadd.f32 %v312, %v577
      %v666 = vadd.f32 %v313, %v582
      %v667 = vadd.f32 %v314, %v585
      %v668 = vadd.f32 %v315, %v590
      %v669 = vadd.f32 %v316, %v593
      %v670 = vadd.f32 %v317, %v598
      %v671 = vadd.f32 %v318, %v601
      %v672 = vadd.f32 %v319, %v606
      %v673 = vadd.f32 %v320, %v609
      %v674 = vadd.f32 %v321, %v614
      %v675 = vadd.f32 %v322, %v617
      %v676 = vadd.f32 %v323, %v622
      %v677 = vadd.f32 %v324, %v625
      %v678 = vadd.f32 %v325, %v630
      %v679 = vadd.f32 %v326, %v633
      %v680 = vadd.f32 %v327, %v638
      %v681 = vadd.f32 %v328, %v641
      %v682 = vadd.f32 %v329, %v646
      %v683 = vadd.f32 %v330, %v649
      %684 = vst [vmem:[#allocation2] sm:$0xff] %v652
      %685 = vst [vmem:[#allocation2 + $0x8] sm:$0xff] %v653
      %686 = vst [vmem:[#allocation2 + $0x10] sm:$0xff] %v654
      %687 = vst [vmem:[#allocation2 + $0x18] sm:$0xff] %v655
      %688 = vst [vmem:[#allocation2 + $0x20] sm:$0xff] %v656
      %689 = vst [vmem:[#allocation2 + $0x28] sm:$0xff] %v657
      %690 = vst [vmem:[#allocation2 + $0x30] sm:$0xff] %v658
      %691 = vst [vmem:[#allocation2 + $0x38] sm:$0xff] %v659
      %692 = vst [vmem:[#allocation2 + $0x40] sm:$0xff] %v660
      %693 = vst [vmem:[#allocation2 + $0x48] sm:$0xff] %v661
      %694 = vst [vmem:[#allocation2 + $0x50] sm:$0xff] %v662
      %695 = vst [vmem:[#allocation2 + $0x58] sm:$0xff] %v663
      %696 = vst [vmem:[#allocation2 + $0x60] sm:$0xff] %v664
      %697 = vst [vmem:[#allocation2 + $0x68] sm:$0xff] %v665
      %698 = vst [vmem:[#allocation2 + $0x70] sm:$0xff] %v666
      %699 = vst [vmem:[#allocation2 + $0x78] sm:$0xff] %v667
      %700 = vst [vmem:[#allocation2 + $0x80] sm:$0xff] %v668
      %701 = vst [vmem:[#allocation2 + $0x88] sm:$0xff] %v669
      %702 = vst [vmem:[#allocation2 + $0x90] sm:$0xff] %v670
      %703 = vst [vmem:[#allocation2 + $0x98] sm:$0xff] %v671
      %704 = vst [vmem:[#allocation2 + $0xa0] sm:$0xff] %v672
      %705 = vst [vmem:[#allocation2 + $0xa8] sm:$0xff] %v673
      %706 = vst [vmem:[#allocation2 + $0xb0] sm:$0xff] %v674
      %707 = vst [vmem:[#allocation2 + $0xb8] sm:$0xff] %v675
      %708 = vst [vmem:[#allocation2 + $0xc0] sm:$0xff] %v676
      %709 = vst [vmem:[#allocation2 + $0xc8] sm:$0xff] %v677
      %710 = vst [vmem:[#allocation2 + $0xd0] sm:$0xff] %v678
      %711 = vst [vmem:[#allocation2 + $0xd8] sm:$0xff] %v679
      %712 = vst [vmem:[#allocation2 + $0xe0] sm:$0xff] %v680
      %713 = vst [vmem:[#allocation2 + $0xe8] sm:$0xff] %v681
      %714 = vst [vmem:[#allocation2 + $0xf0] sm:$0xff] %v682
      %715 = vst [vmem:[#allocation2 + $0xf8] sm:$0xff] %v683
      // Predicated region
      $region33: #{_lambda_.6} parent=27 // pred_check
        %p716 = pneg %p231
      $region34: #{_lambda_.6} parent=27 // pred_check_branch
        %718 = sbr.rel (%p716) target = $region36
      $region35: #{_lambda_.6} parent=27 // pred_region
        %v719 = vld [vmem:[#allocation2] sm:$0xff]
        %v720 = vld [vmem:[#allocation2 + $0x8] sm:$0xff]
        %v721 = vld [vmem:[#allocation2 + $0x10] sm:$0xff]
        %v722 = vld [vmem:[#allocation2 + $0x18] sm:$0xff]
        %v723 = vld [vmem:[#allocation2 + $0x20] sm:$0xff]
        %v724 = vld [vmem:[#allocation2 + $0x28] sm:$0xff]
        %v725 = vld [vmem:[#allocation2 + $0x30] sm:$0xff]
        %v726 = vld [vmem:[#allocation2 + $0x38] sm:$0xff]
        %v727 = vld [vmem:[#allocation2 + $0x40] sm:$0xff]
        %v728 = vld [vmem:[#allocation2 + $0x48] sm:$0xff]
        %v729 = vld [vmem:[#allocation2 + $0x50] sm:$0xff]
        %v730 = vld [vmem:[#allocation2 + $0x58] sm:$0xff]
        %v731 = vld [vmem:[#allocation2 + $0x60] sm:$0xff]
        %v732 = vld [vmem:[#allocation2 + $0x68] sm:$0xff]
        %v733 = vld [vmem:[#allocation2 + $0x70] sm:$0xff]
        %v734 = vld [vmem:[#allocation2 + $0x78] sm:$0xff]
        %v735 = vld [vmem:[#allocation2 + $0x80] sm:$0xff]
        %v736 = vld [vmem:[#allocation2 + $0x88] sm:$0xff]
        %v737 = vld [vmem:[#allocation2 + $0x90] sm:$0xff]
        %v738 = vld [vmem:[#allocation2 + $0x98] sm:$0xff]
        %v739 = vld [vmem:[#allocation2 + $0xa0] sm:$0xff]
        %v740 = vld [vmem:[#allocation2 + $0xa8] sm:$0xff]
        %v741 = vld [vmem:[#allocation2 + $0xb0] sm:$0xff]
        %v742 = vld [vmem:[#allocation2 + $0xb8] sm:$0xff]
        %v743 = vld [vmem:[#allocation2 + $0xc0] sm:$0xff]
        %v744 = vld [vmem:[#allocation2 + $0xc8] sm:$0xff]
        %v745 = vld [vmem:[#allocation2 + $0xd0] sm:$0xff]
        %v746 = vld [vmem:[#allocation2 + $0xd8] sm:$0xff]
        %v747 = vld [vmem:[#allocation2 + $0xe0] sm:$0xff]
        %v748 = vld [vmem:[#allocation2 + $0xe8] sm:$0xff]
        %v749 = vld [vmem:[#allocation2 + $0xf0] sm:$0xff]
        %v750 = vld [vmem:[#allocation2 + $0xf8] sm:$0xff]
        %751 = vst [vmem:[%s224] sm:$0xff] %v719
        %752 = vst [vmem:[%s224 + $0x8] sm:$0xff] %v720
        %753 = vst [vmem:[%s224 + $0x10] sm:$0xff] %v721
        %754 = vst [vmem:[%s224 + $0x18] sm:$0xff] %v722
        %755 = vst [vmem:[%s224 + $0x20] sm:$0xff] %v723
        %756 = vst [vmem:[%s224 + $0x28] sm:$0xff] %v724
        %757 = vst [vmem:[%s224 + $0x30] sm:$0xff] %v725
        %758 = vst [vmem:[%s224 + $0x38] sm:$0xff] %v726
        %759 = vst [vmem:[%s224 + $0x40] sm:$0xff] %v727
        %760 = vst [vmem:[%s224 + $0x48] sm:$0xff] %v728
        %761 = vst [vmem:[%s224 + $0x50] sm:$0xff] %v729
        %762 = vst [vmem:[%s224 + $0x58] sm:$0xff] %v730
        %763 = vst [vmem:[%s224 + $0x60] sm:$0xff] %v731
        %764 = vst [vmem:[%s224 + $0x68] sm:$0xff] %v732
        %765 = vst [vmem:[%s224 + $0x70] sm:$0xff] %v733
        %766 = vst [vmem:[%s224 + $0x78] sm:$0xff] %v734
        %767 = vst [vmem:[%s224 + $0x80] sm:$0xff] %v735
        %768 = vst [vmem:[%s224 + $0x88] sm:$0xff] %v736
        %769 = vst [vmem:[%s224 + $0x90] sm:$0xff] %v737
        %770 = vst [vmem:[%s224 + $0x98] sm:$0xff] %v738
        %771 = vst [vmem:[%s224 + $0xa0] sm:$0xff] %v739
        %772 = vst [vmem:[%s224 + $0xa8] sm:$0xff] %v740
        %773 = vst [vmem:[%s224 + $0xb0] sm:$0xff] %v741
        %774 = vst [vmem:[%s224 + $0xb8] sm:$0xff] %v742
        %775 = vst [vmem:[%s224 + $0xc0] sm:$0xff] %v743
        %776 = vst [vmem:[%s224 + $0xc8] sm:$0xff] %v744
        %777 = vst [vmem:[%s224 + $0xd0] sm:$0xff] %v745
        %778 = vst [vmem:[%s224 + $0xd8] sm:$0xff] %v746
        %779 = vst [vmem:[%s224 + $0xe0] sm:$0xff] %v747
        %780 = vst [vmem:[%s224 + $0xe8] sm:$0xff] %v748
        %781 = vst [vmem:[%s224 + $0xf0] sm:$0xff] %v749
        %782 = vst [vmem:[%s224 + $0xf8] sm:$0xff] %v750
        %v783 = vadd.f32 %v719, %v720
        %v784 = vadd.f32 %v783, %v721
        %v785 = vadd.f32 %v784, %v722
        %v786 = vadd.f32 %v785, %v723
        %v787 = vadd.f32 %v786, %v724
        %v788 = vadd.f32 %v787, %v725
        %v789 = vadd.f32 %v788, %v726
        %v790 = vadd.f32 %v789, %v727
        %v791 = vadd.f32 %v790, %v728
        %v792 = vadd.f32 %v791, %v729
        %v793 = vadd.f32 %v792, %v730
        %v794 = vadd.f32 %v793, %v731
        %v795 = vadd.f32 %v794, %v732
        %v796 = vadd.f32 %v795, %v733
        %v797 = vadd.f32 %v796, %v734
        %v798 = vadd.f32 %v797, %v735
        %v799 = vadd.f32 %v798, %v736
        %v800 = vadd.f32 %v799, %v737
        %v801 = vadd.f32 %v800, %v738
        %v802 = vadd.f32 %v801, %v739
        %v803 = vadd.f32 %v802, %v740
        %v804 = vadd.f32 %v803, %v741
        %v805 = vadd.f32 %v804, %v742
        %v806 = vadd.f32 %v805, %v743
        %v807 = vadd.f32 %v806, %v744
        %v808 = vadd.f32 %v807, %v745
        %v809 = vadd.f32 %v808, %v746
        %v810 = vadd.f32 %v809, %v747
        %v811 = vadd.f32 %v810, %v748
        %v812 = vadd.f32 %v811, %v749
        %v813 = vadd.f32 %v812, %v750
        %v814 = vrot.slane %v813, 4
        %v815 = vadd.f32 %v813, %v814
        %v816 = vrot.slane %v815, 2
        %v817 = vadd.f32 %v815, %v816
        %v818 = vrot.slane %v817, 1
        %v819 = vadd.f32 %v817, %v818
        %v820 = vmul.f32 %v719, %v719
        %v821 = vmul.f32 %v720, %v720
        %v822 = vmul.f32 %v721, %v721
        %v823 = vmul.f32 %v722, %v722
        %v824 = vmul.f32 %v723, %v723
        %v825 = vmul.f32 %v724, %v724
        %v826 = vmul.f32 %v725, %v725
        %v827 = vmul.f32 %v726, %v726
        %v828 = vmul.f32 %v727, %v727
        %v829 = vmul.f32 %v728, %v728
        %v830 = vmul.f32 %v729, %v729
        %v831 = vmul.f32 %v730, %v730
        %v832 = vmul.f32 %v731, %v731
        %v833 = vmul.f32 %v732, %v732
        %v834 = vmul.f32 %v733, %v733
        %v835 = vmul.f32 %v734, %v734
        %v836 = vmul.f32 %v735, %v735
        %v837 = vmul.f32 %v736, %v736
        %v838 = vmul.f32 %v737, %v737
        %v839 = vmul.f32 %v738, %v738
        %v840 = vmul.f32 %v739, %v739
        %v841 = vmul.f32 %v740, %v740
        %v842 = vmul.f32 %v741, %v741
        %v843 = vmul.f32 %v742, %v742
        %v844 = vmul.f32 %v743, %v743
        %v845 = vmul.f32 %v744, %v744
        %v846 = vmul.f32 %v745, %v745
        %v847 = vmul.f32 %v746, %v746
        %v848 = vmul.f32 %v747, %v747
        %v849 = vmul.f32 %v748, %v748
        %v850 = vmul.f32 %v749, %v749
        %v851 = vmul.f32 %v750, %v750
        %v852 = vadd.f32 %v820, %v821
        %v853 = vadd.f32 %v852, %v822
        %v854 = vadd.f32 %v853, %v823
        %v855 = vadd.f32 %v854, %v824
        %v856 = vadd.f32 %v855, %v825
        %v857 = vadd.f32 %v856, %v826
        %v858 = vadd.f32 %v857, %v827
        %v859 = vadd.f32 %v858, %v828
        %v860 = vadd.f32 %v859, %v829
        %v861 = vadd.f32 %v860, %v830
        %v862 = vadd.f32 %v861, %v831
        %v863 = vadd.f32 %v862, %v832
        %v864 = vadd.f32 %v863, %v833
        %v865 = vadd.f32 %v864, %v834
        %v866 = vadd.f32 %v865, %v835
        %v867 = vadd.f32 %v866, %v836
        %v868 = vadd.f32 %v867, %v837
        %v869 = vadd.f32 %v868, %v838
        %v870 = vadd.f32 %v869, %v839
        %v871 = vadd.f32 %v870, %v840
        %v872 = vadd.f32 %v871, %v841
        %v873 = vadd.f32 %v872, %v842
        %v874 = vadd.f32 %v873, %v843
        %v875 = vadd.f32 %v874, %v844
        %v876 = vadd.f32 %v875, %v845
        %v877 = vadd.f32 %v876, %v846
        %v878 = vadd.f32 %v877, %v847
        %v879 = vadd.f32 %v878, %v848
        %v880 = vadd.f32 %v879, %v849
        %v881 = vadd.f32 %v880, %v850
        %v882 = vadd.f32 %v881, %v851
        %v883 = vrot.slane %v882, 4
        %v884 = vadd.f32 %v882, %v883
        %v885 = vrot.slane %v884, 2
        %v886 = vadd.f32 %v884, %v885
        %v887 = vrot.slane %v886, 1
        %v888 = vadd.f32 %v886, %v887
        %vm889 = vcmask 1040384
        %v890 = vsel %vm889, %v819, %v888
        %vm891 = vcmask 1041408
        %v892 = vsel %vm891, %v890, 0.0
        %vm893 = vcmask 1042432
        %v894 = vsel %vm893, %v892, 0.0
        %vm895 = vcmask 1043456
        %v896 = vsel %vm895, %v894, 0.0
        %vm897 = vcmask 1044480
        %v898 = vsel %vm897, %v896, 0.0
        %vm899 = vcmask 1045504
        %v900 = vsel %vm899, %v898, 0.0
        %vm901 = vcmask 1046528
        %v902 = vsel %vm901, %v900, 0.0
        %903 = vst [vmem:[%s229] sm:$0xff] %v902
      $region36: #{_lambda_.6} parent=27 // pred_fallthru
        _
      %s904 = smul.u32 32, %s19
      %p905 = scmp.lt.s32.totalorder %s904, 63
      %s906 = scalar_select %p905, %s904, 63
      %s907 = smul.addr %s906, 8
      %s908 = scalar_lea.vmem %s2, %s907
      %p909 = scmp.lt.s32.totalorder %s19, 1
      %s910 = scalar_select %p909, %s19, 1
      %s911 = smul.addr %s910, 8
      %s912 = scalar_lea.vmem %s3, %s911
      // Predicated region
      $region37: #{_lambda_.6} parent=27 // pred_check
        %p913 = pneg %p99
      $region38: #{_lambda_.6} parent=27 // pred_check_branch
        %915 = sbr.rel (%p913) target = $region40
      $region39: #{_lambda_.6} parent=27 // pred_region
        %s916 = smul.u32 32, %s19
      $region40: #{_lambda_.6} parent=27 // pred_fallthru
        _
      // Predicated region
      $region41: #{_lambda_.6} parent=27 // pred_check
        %p917 = pneg %p125
      $region42: #{_lambda_.6} parent=27 // pred_check_branch
        %919 = sbr.rel (%p917) target = $region44
      $region43: #{_lambda_.6} parent=27 // pred_region
        _
      $region44: #{_lambda_.6} parent=27 // pred_fallthru
        _
    $region28: #{_lambda_.6} parent=5 // pred_fallthru
      _
    %p920 = scmp.le.s32.totalorder 2, %s10
    // Predicated region
    $region45: #{_lambda_.6} parent=5 // pred_check
      %p921 = pneg %p920
    $region46: #{_lambda_.6} parent=5 // pred_check_branch
      %923 = sbr.rel (%p921) target = $region48
    $region47: #{_lambda_.6} parent=5 // pred_region
      %s924 = ssub.s32 %s10, 2
      // Predicated region
      $region49: #{_lambda_.6} parent=47 // pred_check
        %p925 = pneg %p105
      $region50: #{_lambda_.6} parent=47 // pred_check_branch
        %927 = sbr.rel (%p925) target = $region52
      $region51: #{_lambda_.6} parent=47 // pred_region
        %s928 = smul.u32 32, %s21
        %p929 = scmp.lt.s32.totalorder %s928, 63
        %s930 = scalar_select %p929, %s928, 63
        %s931 = smul.addr %s930, 8
        %s932 = scalar_lea.vmem %s2, %s931
      $region52: #{_lambda_.6} parent=47 // pred_fallthru
        _
      // Predicated region
      $region53: #{_lambda_.6} parent=47 // pred_check
        %p933 = pneg %p131
      $region54: #{_lambda_.6} parent=47 // pred_check_branch
        %935 = sbr.rel (%p933) target = $region56
      $region55: #{_lambda_.6} parent=47 // pred_region
        %p936 = scmp.lt.s32.totalorder %s21, 1
        %s937 = scalar_select %p936, %s21, 1
        %s938 = smul.addr %s937, 8
        %s939 = scalar_lea.vmem %s3, %s938
      $region56: #{_lambda_.6} parent=47 // pred_fallthru
        _
    $region48: #{_lambda_.6} parent=5 // pred_fallthru
      _
  $region6: #{_lambda_.6} parent=0 // loop_footer
    %s14 = sadd.s32 1, %s10
  $region7: #{_lambda_.6} parent=0 // loop_footer_branch
    %9 = sbr.rel target = $region3
  $region8: #{_lambda_.6} parent=0 // loop_exit
    _

// kernel: _lambda_.10
$region0: #{_lambda_.10}
  #allocation0 [shape = 'u32[]', space=smem, size = 0x4, offset = 0x4, fixed_abs, tag = 'smem constant byte address 0x4 - core index']
  #allocation1 [shape = 'u32[144,128]{1,0:T(1,128)}', space=vmem, size = 0x12000, scoped, tag = 'internal scratch']
  #allocation2 [shape = 'f32[128,128]{1,0:T(8,128)}', space=vmem, size = 0x10000, scoped, tag = 'scratch operand']
  %s0 = inlined_call_operand.vmem [shape: bf16[128,128], index: 0, kind: input, shape index: {}]
  %s1 = inlined_call_operand.vmem [shape: bf16[128,128], index: 1, kind: input, shape index: {}]
  %s2 = inlined_call_operand.vmem [shape: f32[128,128], index: 2, kind: output, shape index: {0}]
  %s3 = inlined_call_operand.vmem [shape: f32[1,8,128], index: 3, kind: output, shape index: {1}]
  %4 = xla_tuple %s2, %s3
  %s5 = sld [smem:[#allocation0]]
  $region34: #{_lambda_.10} parent=0
    _
  %s7 = ssub.s32 1, %s5
  %s8 = scalar_select 0, %s7, %s5
  // Predicated region
  $region2: #{_lambda_.10} parent=0 // pred_check
    _
  $region3: #{_lambda_.10} parent=0 // pred_check_branch
    %10 = sbr.rel (0) target = $region5
  $region4: #{_lambda_.10} parent=0 // pred_region
    _
  $region5: #{_lambda_.10} parent=0 // pred_fallthru
    _
  // Predicated region
  $region6: #{_lambda_.10} parent=0 // pred_check
    _
  $region7: #{_lambda_.10} parent=0 // pred_check_branch
    %12 = sbr.rel (0) target = $region9
  $region8: #{_lambda_.10} parent=0 // pred_region
    _
  $region9: #{_lambda_.10} parent=0 // pred_fallthru
    _
  %p14 = scmp.eq.s32.totalorder 0, 0
  // Predicated region
  $region10: #{_lambda_.10} parent=0 // pred_check
    %p15 = pneg %p14
  $region11: #{_lambda_.10} parent=0 // pred_check_branch
    %17 = sbr.rel (%p15) target = $region13
  $region12: #{_lambda_.10} parent=0 // pred_region
    %18 = vst [vmem:[#allocation2] sm:$0xff] 0.0
    %19 = vst [vmem:[#allocation2 + $0x8] sm:$0xff] 0.0
    %20 = vst [vmem:[#allocation2 + $0x10] sm:$0xff] 0.0
    %21 = vst [vmem:[#allocation2 + $0x18] sm:$0xff] 0.0
    %22 = vst [vmem:[#allocation2 + $0x20] sm:$0xff] 0.0
    %23 = vst [vmem:[#allocation2 + $0x28] sm:$0xff] 0.0
    %24 = vst [vmem:[#allocation2 + $0x30] sm:$0xff] 0.0
    %25 = vst [vmem:[#allocation2 + $0x38] sm:$0xff] 0.0
    %26 = vst [vmem:[#allocation2 + $0x40] sm:$0xff] 0.0
    %27 = vst [vmem:[#allocation2 + $0x48] sm:$0xff] 0.0
    %28 = vst [vmem:[#allocation2 + $0x50] sm:$0xff] 0.0
    %29 = vst [vmem:[#allocation2 + $0x58] sm:$0xff] 0.0
    %30 = vst [vmem:[#allocation2 + $0x60] sm:$0xff] 0.0
    %31 = vst [vmem:[#allocation2 + $0x68] sm:$0xff] 0.0
    %32 = vst [vmem:[#allocation2 + $0x70] sm:$0xff] 0.0
    %33 = vst [vmem:[#allocation2 + $0x78] sm:$0xff] 0.0
  $region13: #{_lambda_.10} parent=0 // pred_fallthru
    _
  %v34 = vld [vmem:[%s0] sm:$0xf]
  %v35 = vld [vmem:[%s0 + $0x4] sm:$0xf]
  %v36 = vld [vmem:[%s0 + $0x8] sm:$0xf]
  %v37 = vld [vmem:[%s0 + $0xc] sm:$0xf]
  %v38 = vld [vmem:[%s0 + $0x10] sm:$0xf]
  %v39 = vld [vmem:[%s0 + $0x14] sm:$0xf]
  %v40 = vld [vmem:[%s0 + $0x18] sm:$0xf]
  %v41 = vld [vmem:[%s0 + $0x1c] sm:$0xf]
  %v42 = vld [vmem:[%s0 + $0x20] sm:$0xf]
  %v43 = vld [vmem:[%s0 + $0x24] sm:$0xf]
  %v44 = vld [vmem:[%s0 + $0x28] sm:$0xf]
  %v45 = vld [vmem:[%s0 + $0x2c] sm:$0xf]
  %v46 = vld [vmem:[%s0 + $0x30] sm:$0xf]
  %v47 = vld [vmem:[%s0 + $0x34] sm:$0xf]
  %v48 = vld [vmem:[%s0 + $0x38] sm:$0xf]
  %v49 = vld [vmem:[%s0 + $0x3c] sm:$0xf]
  %v50 = vld [vmem:[#allocation2] sm:$0xff]
  %v51 = vld [vmem:[#allocation2 + $0x8] sm:$0xff]
  %v52 = vld [vmem:[#allocation2 + $0x10] sm:$0xff]
  %v53 = vld [vmem:[#allocation2 + $0x18] sm:$0xff]
  %v54 = vld [vmem:[#allocation2 + $0x20] sm:$0xff]
  %v55 = vld [vmem:[#allocation2 + $0x28] sm:$0xff]
  %v56 = vld [vmem:[#allocation2 + $0x30] sm:$0xff]
  %v57 = vld [vmem:[#allocation2 + $0x38] sm:$0xff]
  %v58 = vld [vmem:[#allocation2 + $0x40] sm:$0xff]
  %v59 = vld [vmem:[#allocation2 + $0x48] sm:$0xff]
  %v60 = vld [vmem:[#allocation2 + $0x50] sm:$0xff]
  %v61 = vld [vmem:[#allocation2 + $0x58] sm:$0xff]
  %v62 = vld [vmem:[#allocation2 + $0x60] sm:$0xff]
  %v63 = vld [vmem:[#allocation2 + $0x68] sm:$0xff]
  %v64 = vld [vmem:[#allocation2 + $0x70] sm:$0xff]
  %v65 = vld [vmem:[#allocation2 + $0x78] sm:$0xff]
  %v66 = vld [vmem:[%s1] sm:$0xf]
  %v67 = vld [vmem:[%s1 + $0x4] sm:$0xf]
  %v68 = vld [vmem:[%s1 + $0x8] sm:$0xf]
  %v69 = vld [vmem:[%s1 + $0xc] sm:$0xf]
  %v70 = vld [vmem:[%s1 + $0x10] sm:$0xf]
  %v71 = vld [vmem:[%s1 + $0x14] sm:$0xf]
  %v72 = vld [vmem:[%s1 + $0x18] sm:$0xf]
  %v73 = vld [vmem:[%s1 + $0x1c] sm:$0xf]
  %v74 = vld [vmem:[%s1 + $0x20] sm:$0xf]
  %v75 = vld [vmem:[%s1 + $0x24] sm:$0xf]
  %v76 = vld [vmem:[%s1 + $0x28] sm:$0xf]
  %v77 = vld [vmem:[%s1 + $0x2c] sm:$0xf]
  %v78 = vld [vmem:[%s1 + $0x30] sm:$0xf]
  %v79 = vld [vmem:[%s1 + $0x34] sm:$0xf]
  %v80 = vld [vmem:[%s1 + $0x38] sm:$0xf]
  %v81 = vld [vmem:[%s1 + $0x3c] sm:$0xf]
  %v98 = vunpack.c.l.b16 %v34
  %v99 = vunpack.c.l.b16 %v35
  %v100 = vunpack.c.l.b16 %v36
  %v101 = vunpack.c.l.b16 %v37
  %v102 = vunpack.c.l.b16 %v38
  %v103 = vunpack.c.l.b16 %v39
  %v104 = vunpack.c.l.b16 %v40
  %v105 = vunpack.c.l.b16 %v41
  %v106 = vunpack.c.l.b16 %v42
  %v107 = vunpack.c.l.b16 %v43
  %v108 = vunpack.c.l.b16 %v44
  %v109 = vunpack.c.l.b16 %v45
  %v110 = vunpack.c.l.b16 %v46
  %v111 = vunpack.c.l.b16 %v47
  %v112 = vunpack.c.l.b16 %v48
  %v113 = vunpack.c.l.b16 %v49
  %v114 = vpack.c.b16 %v99, %v98
  %v115 = vpack.c.b16 %v101, %v100
  %v116 = vpack.c.b16 %v103, %v102
  %v117 = vpack.c.b16 %v105, %v104
  %v118 = vpack.c.b16 %v107, %v106
  %v119 = vpack.c.b16 %v109, %v108
  %v120 = vpack.c.b16 %v111, %v110
  %v121 = vpack.c.b16 %v113, %v112
  %v146 = vunpack.c.l.b16 %v66
  %v147 = vunpack.c.l.b16 %v67
  %v148 = vunpack.c.l.b16 %v68
  %v149 = vunpack.c.l.b16 %v69
  %v150 = vunpack.c.l.b16 %v70
  %v151 = vunpack.c.l.b16 %v71
  %v152 = vunpack.c.l.b16 %v72
  %v153 = vunpack.c.l.b16 %v73
  %v154 = vunpack.c.l.b16 %v74
  %v155 = vunpack.c.l.b16 %v75
  %v156 = vunpack.c.l.b16 %v76
  %v157 = vunpack.c.l.b16 %v77
  %v158 = vunpack.c.l.b16 %v78
  %v159 = vunpack.c.l.b16 %v79
  %v160 = vunpack.c.l.b16 %v80
  %v161 = vunpack.c.l.b16 %v81
  %v162 = vpack.c.b16 %v147, %v146
  %v163 = vpack.c.b16 %v149, %v148
  %v164 = vpack.c.b16 %v151, %v150
  %v165 = vpack.c.b16 %v153, %v152
  %v166 = vpack.c.b16 %v155, %v154
  %v167 = vpack.c.b16 %v157, %v156
  %v168 = vpack.c.b16 %v159, %v158
  %v169 = vpack.c.b16 %v161, %v160
  %178 = vmatprep.subr.bf16.mxu0 0
  %179 = vmatpush1.bf16.msra.mxu0 %v169
  %180 = vmatprep.subr.bf16.mxu0 0
  %181 = vmatpush1.bf16.msra.mxu0 %v168
  %182 = vmatprep.subr.bf16.mxu0 0
  %183 = vmatpush1.bf16.msra.mxu0 %v167
  %184 = vmatprep.subr.bf16.mxu0 0
  %185 = vmatpush1.bf16.msra.mxu0 %v166
  %186 = vmatprep.subr.bf16.mxu0 0
  %187 = vmatpush1.bf16.msra.mxu0 %v165
  %188 = vmatprep.subr.bf16.mxu0 0
  %189 = vmatpush1.bf16.msra.mxu0 %v164
  %190 = vmatprep.subr.bf16.mxu0 0
  %191 = vmatpush1.bf16.msra.mxu0 %v163
  %192 = vmatprep.subr.bf16.mxu0 0
  %193 = vmatpush1.bf16.msra.mxu0 %v162
  %194 = vmatprep.subr.bf16.mxu0 0
  %195 = vmatpush2.bf16.msra.mxu0 0
  %196 = vmatprep.subr.bf16.mxu0 0
  %197 = vmatpush2.bf16.msra.mxu0 0
  %198 = vmatprep.subr.bf16.mxu0 0
  %199 = vmatpush2.bf16.msra.mxu0 0
  %200 = vmatprep.subr.bf16.mxu0 0
  %201 = vmatpush2.bf16.msra.mxu0 0
  %202 = vmatprep.subr.bf16.mxu0 0
  %203 = vmatpush2.bf16.msra.mxu0 0
  %204 = vmatprep.subr.bf16.mxu0 0
  %205 = vmatpush2.bf16.msra.mxu0 0
  %206 = vmatprep.subr.bf16.mxu0 0
  %207 = vmatpush2.bf16.msra.mxu0 0
  %208 = vmatprep.subr.bf16.mxu0 0
  %209 = vmatpush2.bf16.msra.mxu0 0
  %210 = vmatprep.mubr.bf16.mxu0 0
  %211 = vmatmul.mubr.bf16.gmra.mxu0 %v114
  %v212 = vpop.f32.mrf.mxu0
  %v213 = vadd.f32 0.0, %v212
  %v214 = vpop.f32.mrf.mxu0
  %v215 = vpop.f32.mrf.mxu0
  %v216 = vadd.f32 0.0, %v215
  %v217 = vpop.f32.mrf.mxu0
  %218 = vmatprep.mubr.bf16.mxu0 0
  %219 = vmatmul.mubr.bf16.gmra.mxu0 %v115
  %v220 = vpop.f32.mrf.mxu0
  %v221 = vadd.f32 0.0, %v220
  %v222 = vpop.f32.mrf.mxu0
  %v223 = vpop.f32.mrf.mxu0
  %v224 = vadd.f32 0.0, %v223
  %v225 = vpop.f32.mrf.mxu0
  %226 = vmatprep.mubr.bf16.mxu0 0
  %227 = vmatmul.mubr.bf16.gmra.mxu0 %v116
  %v228 = vpop.f32.mrf.mxu0
  %v229 = vadd.f32 0.0, %v228
  %v230 = vpop.f32.mrf.mxu0
  %v231 = vpop.f32.mrf.mxu0
  %v232 = vadd.f32 0.0, %v231
  %v233 = vpop.f32.mrf.mxu0
  %234 = vmatprep.mubr.bf16.mxu0 0
  %235 = vmatmul.mubr.bf16.gmra.mxu0 %v117
  %v236 = vpop.f32.mrf.mxu0
  %v237 = vadd.f32 0.0, %v236
  %v238 = vpop.f32.mrf.mxu0
  %v239 = vpop.f32.mrf.mxu0
  %v240 = vadd.f32 0.0, %v239
  %v241 = vpop.f32.mrf.mxu0
  %242 = vmatprep.mubr.bf16.mxu0 0
  %243 = vmatmul.mubr.bf16.gmra.mxu0 %v118
  %v244 = vpop.f32.mrf.mxu0
  %v245 = vadd.f32 0.0, %v244
  %v246 = vpop.f32.mrf.mxu0
  %v247 = vpop.f32.mrf.mxu0
  %v248 = vadd.f32 0.0, %v247
  %v249 = vpop.f32.mrf.mxu0
  %250 = vmatprep.mubr.bf16.mxu0 0
  %251 = vmatmul.mubr.bf16.gmra.mxu0 %v119
  %v252 = vpop.f32.mrf.mxu0
  %v253 = vadd.f32 0.0, %v252
  %v254 = vpop.f32.mrf.mxu0
  %v255 = vpop.f32.mrf.mxu0
  %v256 = vadd.f32 0.0, %v255
  %v257 = vpop.f32.mrf.mxu0
  %258 = vmatprep.mubr.bf16.mxu0 0
  %259 = vmatmul.mubr.bf16.gmra.mxu0 %v120
  %v260 = vpop.f32.mrf.mxu0
  %v261 = vadd.f32 0.0, %v260
  %v262 = vpop.f32.mrf.mxu0
  %v263 = vpop.f32.mrf.mxu0
  %v264 = vadd.f32 0.0, %v263
  %v265 = vpop.f32.mrf.mxu0
  %266 = vmatprep.mubr.bf16.mxu0 0
  %267 = vmatmul.mubr.bf16.gmra.mxu0 %v121
  %v268 = vpop.f32.mrf.mxu0
  %v269 = vadd.f32 0.0, %v268
  %v270 = vpop.f32.mrf.mxu0
  %v271 = vpop.f32.mrf.mxu0
  %v272 = vadd.f32 0.0, %v271
  %v273 = vpop.f32.mrf.mxu0
  %274 = vdwg.mxu0
  %v275 = vadd.f32 %v50, %v213
  %v276 = vadd.f32 %v51, %v216
  %v277 = vadd.f32 %v52, %v221
  %v278 = vadd.f32 %v53, %v224
  %v279 = vadd.f32 %v54, %v229
  %v280 = vadd.f32 %v55, %v232
  %v281 = vadd.f32 %v56, %v237
  %v282 = vadd.f32 %v57, %v240
  %v283 = vadd.f32 %v58, %v245
  %v284 = vadd.f32 %v59, %v248
  %v285 = vadd.f32 %v60, %v253
  %v286 = vadd.f32 %v61, %v256
  %v287 = vadd.f32 %v62, %v261
  %v288 = vadd.f32 %v63, %v264
  %v289 = vadd.f32 %v64, %v269
  %v290 = vadd.f32 %v65, %v272
  %291 = vst [vmem:[#allocation2] sm:$0xff] %v275
  %292 = vst [vmem:[#allocation2 + $0x8] sm:$0xff] %v276
  %293 = vst [vmem:[#allocation2 + $0x10] sm:$0xff] %v277
  %294 = vst [vmem:[#allocation2 + $0x18] sm:$0xff] %v278
  %295 = vst [vmem:[#allocation2 + $0x20] sm:$0xff] %v279
  %296 = vst [vmem:[#allocation2 + $0x28] sm:$0xff] %v280
  %297 = vst [vmem:[#allocation2 + $0x30] sm:$0xff] %v281
  %298 = vst [vmem:[#allocation2 + $0x38] sm:$0xff] %v282
  %299 = vst [vmem:[#allocation2 + $0x40] sm:$0xff] %v283
  %300 = vst [vmem:[#allocation2 + $0x48] sm:$0xff] %v284
  %301 = vst [vmem:[#allocation2 + $0x50] sm:$0xff] %v285
  %302 = vst [vmem:[#allocation2 + $0x58] sm:$0xff] %v286
  %303 = vst [vmem:[#allocation2 + $0x60] sm:$0xff] %v287
  %304 = vst [vmem:[#allocation2 + $0x68] sm:$0xff] %v288
  %305 = vst [vmem:[#allocation2 + $0x70] sm:$0xff] %v289
  %306 = vst [vmem:[#allocation2 + $0x78] sm:$0xff] %v290
  // Predicated region
  $region14: #{_lambda_.10} parent=0 // pred_check
    %p307 = pneg %p14
  $region15: #{_lambda_.10} parent=0 // pred_check_branch
    %309 = sbr.rel (%p307) target = $region17
  $region16: #{_lambda_.10} parent=0 // pred_region
    %v310 = vld [vmem:[#allocation2] sm:$0xff]
    %v311 = vld [vmem:[#allocation2 + $0x8] sm:$0xff]
    %v312 = vld [vmem:[#allocation2 + $0x10] sm:$0xff]
    %v313 = vld [vmem:[#allocation2 + $0x18] sm:$0xff]
    %v314 = vld [vmem:[#allocation2 + $0x20] sm:$0xff]
    %v315 = vld [vmem:[#allocation2 + $0x28] sm:$0xff]
    %v316 = vld [vmem:[#allocation2 + $0x30] sm:$0xff]
    %v317 = vld [vmem:[#allocation2 + $0x38] sm:$0xff]
    %v318 = vld [vmem:[#allocation2 + $0x40] sm:$0xff]
    %v319 = vld [vmem:[#allocation2 + $0x48] sm:$0xff]
    %v320 = vld [vmem:[#allocation2 + $0x50] sm:$0xff]
    %v321 = vld [vmem:[#allocation2 + $0x58] sm:$0xff]
    %v322 = vld [vmem:[#allocation2 + $0x60] sm:$0xff]
    %v323 = vld [vmem:[#allocation2 + $0x68] sm:$0xff]
    %v324 = vld [vmem:[#allocation2 + $0x70] sm:$0xff]
    %v325 = vld [vmem:[#allocation2 + $0x78] sm:$0xff]
    %326 = vst [vmem:[%s2] sm:$0xff] %v310
    %327 = vst [vmem:[%s2 + $0x8] sm:$0xff] %v311
    %328 = vst [vmem:[%s2 + $0x10] sm:$0xff] %v312
    %329 = vst [vmem:[%s2 + $0x18] sm:$0xff] %v313
    %330 = vst [vmem:[%s2 + $0x20] sm:$0xff] %v314
    %331 = vst [vmem:[%s2 + $0x28] sm:$0xff] %v315
    %332 = vst [vmem:[%s2 + $0x30] sm:$0xff] %v316
    %333 = vst [vmem:[%s2 + $0x38] sm:$0xff] %v317
    %334 = vst [vmem:[%s2 + $0x40] sm:$0xff] %v318
    %335 = vst [vmem:[%s2 + $0x48] sm:$0xff] %v319
    %336 = vst [vmem:[%s2 + $0x50] sm:$0xff] %v320
    %337 = vst [vmem:[%s2 + $0x58] sm:$0xff] %v321
    %338 = vst [vmem:[%s2 + $0x60] sm:$0xff] %v322
    %339 = vst [vmem:[%s2 + $0x68] sm:$0xff] %v323
    %340 = vst [vmem:[%s2 + $0x70] sm:$0xff] %v324
    %341 = vst [vmem:[%s2 + $0x78] sm:$0xff] %v325
    %v342 = vadd.f32 %v310, %v311
    %v343 = vadd.f32 %v342, %v312
    %v344 = vadd.f32 %v343, %v313
    %v345 = vadd.f32 %v344, %v314
    %v346 = vadd.f32 %v345, %v315
    %v347 = vadd.f32 %v346, %v316
    %v348 = vadd.f32 %v347, %v317
    %v349 = vadd.f32 %v348, %v318
    %v350 = vadd.f32 %v349, %v319
    %v351 = vadd.f32 %v350, %v320
    %v352 = vadd.f32 %v351, %v321
    %v353 = vadd.f32 %v352, %v322
    %v354 = vadd.f32 %v353, %v323
    %v355 = vadd.f32 %v354, %v324
    %v356 = vadd.f32 %v355, %v325
    %v357 = vrot.slane %v356, 4
    %v358 = vadd.f32 %v356, %v357
    %v359 = vrot.slane %v358, 2
    %v360 = vadd.f32 %v358, %v359
    %v361 = vrot.slane %v360, 1
    %v362 = vadd.f32 %v360, %v361
    %v363 = vmul.f32 %v310, %v310
    %v364 = vmul.f32 %v311, %v311
    %v365 = vmul.f32 %v312, %v312
    %v366 = vmul.f32 %v313, %v313
    %v367 = vmul.f32 %v314, %v314
    %v368 = vmul.f32 %v315, %v315
    %v369 = vmul.f32 %v316, %v316
    %v370 = vmul.f32 %v317, %v317
    %v371 = vmul.f32 %v318, %v318
    %v372 = vmul.f32 %v319, %v319
    %v373 = vmul.f32 %v320, %v320
    %v374 = vmul.f32 %v321, %v321
    %v375 = vmul.f32 %v322, %v322
    %v376 = vmul.f32 %v323, %v323
    %v377 = vmul.f32 %v324, %v324
    %v378 = vmul.f32 %v325, %v325
    %v379 = vadd.f32 %v363, %v364
    %v380 = vadd.f32 %v379, %v365
    %v381 = vadd.f32 %v380, %v366
    %v382 = vadd.f32 %v381, %v367
    %v383 = vadd.f32 %v382, %v368
    %v384 = vadd.f32 %v383, %v369
    %v385 = vadd.f32 %v384, %v370
    %v386 = vadd.f32 %v385, %v371
    %v387 = vadd.f32 %v386, %v372
    %v388 = vadd.f32 %v387, %v373
    %v389 = vadd.f32 %v388, %v374
    %v390 = vadd.f32 %v389, %v375
    %v391 = vadd.f32 %v390, %v376
    %v392 = vadd.f32 %v391, %v377
    %v393 = vadd.f32 %v392, %v378
    %v394 = vrot.slane %v393, 4
    %v395 = vadd.f32 %v393, %v394
    %v396 = vrot.slane %v395, 2
    %v397 = vadd.f32 %v395, %v396
    %v398 = vrot.slane %v397, 1
    %v399 = vadd.f32 %v397, %v398
    %vm400 = vcmask 1040384
    %v401 = vsel %vm400, %v362, %v399
    %vm402 = vcmask 1041408
    %v403 = vsel %vm402, %v401, 0.0
    %vm404 = vcmask 1042432
    %v405 = vsel %vm404, %v403, 0.0
    %vm406 = vcmask 1043456
    %v407 = vsel %vm406, %v405, 0.0
    %vm408 = vcmask 1044480
    %v409 = vsel %vm408, %v407, 0.0
    %vm410 = vcmask 1045504
    %v411 = vsel %vm410, %v409, 0.0
    %vm412 = vcmask 1046528
    %v413 = vsel %vm412, %v411, 0.0
    %414 = vst [vmem:[%s3] sm:$0xff] %v413
  $region17: #{_lambda_.10} parent=0 // pred_fallthru
    _
  // Predicated region
  $region18: #{_lambda_.10} parent=0 // pred_check
    _
  $region19: #{_lambda_.10} parent=0 // pred_check_branch
    %416 = sbr.rel (0) target = $region21
  $region20: #{_lambda_.10} parent=0 // pred_region
    _
  $region21: #{_lambda_.10} parent=0 // pred_fallthru
    _
  // Predicated region
  $region22: #{_lambda_.10} parent=0 // pred_check
    _
  $region23: #{_lambda_.10} parent=0 // pred_check_branch
    %418 = sbr.rel (0) target = $region25
  $region24: #{_lambda_.10} parent=0 // pred_region
    _
  $region25: #{_lambda_.10} parent=0 // pred_fallthru
    _
  // Predicated region
  $region26: #{_lambda_.10} parent=0 // pred_check
    _
  $region27: #{_lambda_.10} parent=0 // pred_check_branch
    %420 = sbr.rel (0) target = $region29
  $region28: #{_lambda_.10} parent=0 // pred_region
    _
  $region29: #{_lambda_.10} parent=0 // pred_fallthru
    _
  // Predicated region
  $region30: #{_lambda_.10} parent=0 // pred_check
    _
  $region31: #{_lambda_.10} parent=0 // pred_check_branch
    %422 = sbr.rel (0) target = $region33
  $region32: #{_lambda_.10} parent=0 // pred_region
    _
  $region33: #{_lambda_.10} parent=0 // pred_fallthru
    _

// kernel: _lambda_.11
$region0: #{_lambda_.11}
  #allocation0 [shape = 'u32[]', space=smem, size = 0x4, offset = 0x4, fixed_abs, tag = 'smem constant byte address 0x4 - core index']
  #allocation1 [shape = 'u32[144,128]{1,0:T(1,128)}', space=vmem, size = 0x12000, scoped, tag = 'internal scratch']
  %s0 = inlined_call_operand.vmem [shape: f32[128,128], index: 0, kind: input, shape index: {}]
  %s1 = inlined_call_operand.vmem [shape: f32[1,128], index: 1, kind: input, shape index: {}]
  %s2 = inlined_call_operand.vmem [shape: f32[1,128], index: 2, kind: input, shape index: {}]
  %s3 = inlined_call_operand.vmem [shape: f32[128,128], index: 3, kind: input, shape index: {}]
  %s4 = inlined_call_operand.vmem [shape: f32[1,128], index: 4, kind: input, shape index: {}]
  %s5 = inlined_call_operand.vmem [shape: f32[1,128], index: 5, kind: input, shape index: {}]
  %s6 = inlined_call_operand.hbm [shape: f32[128,128], index: 6, kind: output, shape index: {}]
  %s7 = sld [smem:[#allocation0]]
  $region34: #{_lambda_.11} parent=0
    _
  %s9 = ssub.s32 1, %s7
  %s10 = scalar_select 0, %s9, %s7
  $region1: #{_lambda_.11} parent=0
    #allocation2 [shape = 'u8[65536]{0}', space=vmem, size = 0x10000, scoped, tag = 'output window, operand 0, single buffered']
    #allocation3 [shape = 's32[1]{0}', space=sflag, size = 0x4, scoped, tag = 'scoped memory for _lambda_.11']
    %11 = vsyncpa [#allocation3], 0
    // Predicated region
    $region2: #{_lambda_.11} parent=1 // pred_check
      _
    $region3: #{_lambda_.11} parent=1 // pred_check_branch
      %13 = sbr.rel (0) target = $region5
    $region4: #{_lambda_.11} parent=1 // pred_region
      _
    $region5: #{_lambda_.11} parent=1 // pred_fallthru
      _
    // Predicated region
    $region6: #{_lambda_.11} parent=1 // pred_check
      _
    $region7: #{_lambda_.11} parent=1 // pred_check_branch
      %15 = sbr.rel (0) target = $region9
    $region8: #{_lambda_.11} parent=1 // pred_region
      _
    $region9: #{_lambda_.11} parent=1 // pred_fallthru
      _
    // Predicated region
    $region10: #{_lambda_.11} parent=1 // pred_check
      _
    $region11: #{_lambda_.11} parent=1 // pred_check_branch
      %17 = sbr.rel (0) target = $region13
    $region12: #{_lambda_.11} parent=1 // pred_region
      _
    $region13: #{_lambda_.11} parent=1 // pred_fallthru
      _
    // Predicated region
    $region14: #{_lambda_.11} parent=1 // pred_check
      _
    $region15: #{_lambda_.11} parent=1 // pred_check_branch
      %19 = sbr.rel (0) target = $region17
    $region16: #{_lambda_.11} parent=1 // pred_region
      _
    $region17: #{_lambda_.11} parent=1 // pred_fallthru
      _
    // Predicated region
    $region18: #{_lambda_.11} parent=1 // pred_check
      _
    $region19: #{_lambda_.11} parent=1 // pred_check_branch
      %21 = sbr.rel (0) target = $region21
    $region20: #{_lambda_.11} parent=1 // pred_region
      _
    $region21: #{_lambda_.11} parent=1 // pred_fallthru
      _
    // Predicated region
    $region22: #{_lambda_.11} parent=1 // pred_check
      _
    $region23: #{_lambda_.11} parent=1 // pred_check_branch
      %23 = sbr.rel (0) target = $region25
    $region24: #{_lambda_.11} parent=1 // pred_region
      _
    $region25: #{_lambda_.11} parent=1 // pred_fallthru
      _
    %v24 = vld [vmem:[%s0] sm:$0xff]
    %v25 = vld [vmem:[%s0 + $0x8] sm:$0xff]
    %v26 = vld [vmem:[%s0 + $0x10] sm:$0xff]
    %v27 = vld [vmem:[%s0 + $0x18] sm:$0xff]
    %v28 = vld [vmem:[%s0 + $0x20] sm:$0xff]
    %v29 = vld [vmem:[%s0 + $0x28] sm:$0xff]
    %v30 = vld [vmem:[%s0 + $0x30] sm:$0xff]
    %v31 = vld [vmem:[%s0 + $0x38] sm:$0xff]
    %v32 = vld [vmem:[%s0 + $0x40] sm:$0xff]
    %v33 = vld [vmem:[%s0 + $0x48] sm:$0xff]
    %v34 = vld [vmem:[%s0 + $0x50] sm:$0xff]
    %v35 = vld [vmem:[%s0 + $0x58] sm:$0xff]
    %v36 = vld [vmem:[%s0 + $0x60] sm:$0xff]
    %v37 = vld [vmem:[%s0 + $0x68] sm:$0xff]
    %v38 = vld [vmem:[%s0 + $0x70] sm:$0xff]
    %v39 = vld [vmem:[%s0 + $0x78] sm:$0xff]
    %v40 = vld [vmem:[%s1] sm:$0x1]
    %v42 = vlaneseq
    %v43 = vshrl.u32 %v42, 7
    %v44 = vsub.s32 0, %v43
    %v45 = vrot.slane %v40, %v44
    %v47 = vmul.f32 %v24, %v45
    %v48 = vmul.f32 %v25, %v45
    %v49 = vmul.f32 %v26, %v45
    %v50 = vmul.f32 %v27, %v45
    %v51 = vmul.f32 %v28, %v45
    %v52 = vmul.f32 %v29, %v45
    %v53 = vmul.f32 %v30, %v45
    %v54 = vmul.f32 %v31, %v45
    %v55 = vmul.f32 %v32, %v45
    %v56 = vmul.f32 %v33, %v45
    %v57 = vmul.f32 %v34, %v45
    %v58 = vmul.f32 %v35, %v45
    %v59 = vmul.f32 %v36, %v45
    %v60 = vmul.f32 %v37, %v45
    %v61 = vmul.f32 %v38, %v45
    %v62 = vmul.f32 %v39, %v45
    %v63 = vld [vmem:[%s2] sm:$0x1]
    %v65 = vlaneseq
    %v66 = vshrl.u32 %v65, 7
    %v67 = vsub.s32 0, %v66
    %v68 = vrot.slane %v63, %v67
    %v70 = vadd.f32 %v47, %v68
    %v71 = vadd.f32 %v48, %v68
    %v72 = vadd.f32 %v49, %v68
    %v73 = vadd.f32 %v50, %v68
    %v74 = vadd.f32 %v51, %v68
    %v75 = vadd.f32 %v52, %v68
    %v76 = vadd.f32 %v53, %v68
    %v77 = vadd.f32 %v54, %v68
    %v78 = vadd.f32 %v55, %v68
    %v79 = vadd.f32 %v56, %v68
    %v80 = vadd.f32 %v57, %v68
    %v81 = vadd.f32 %v58, %v68
    %v82 = vadd.f32 %v59, %v68
    %v83 = vadd.f32 %v60, %v68
    %v84 = vadd.f32 %v61, %v68
    %v85 = vadd.f32 %v62, %v68
    %v86 = vld [vmem:[%s3] sm:$0xff]
    %v87 = vld [vmem:[%s3 + $0x8] sm:$0xff]
    %v88 = vld [vmem:[%s3 + $0x10] sm:$0xff]
    %v89 = vld [vmem:[%s3 + $0x18] sm:$0xff]
    %v90 = vld [vmem:[%s3 + $0x20] sm:$0xff]
    %v91 = vld [vmem:[%s3 + $0x28] sm:$0xff]
    %v92 = vld [vmem:[%s3 + $0x30] sm:$0xff]
    %v93 = vld [vmem:[%s3 + $0x38] sm:$0xff]
    %v94 = vld [vmem:[%s3 + $0x40] sm:$0xff]
    %v95 = vld [vmem:[%s3 + $0x48] sm:$0xff]
    %v96 = vld [vmem:[%s3 + $0x50] sm:$0xff]
    %v97 = vld [vmem:[%s3 + $0x58] sm:$0xff]
    %v98 = vld [vmem:[%s3 + $0x60] sm:$0xff]
    %v99 = vld [vmem:[%s3 + $0x68] sm:$0xff]
    %v100 = vld [vmem:[%s3 + $0x70] sm:$0xff]
    %v101 = vld [vmem:[%s3 + $0x78] sm:$0xff]
    %v102 = vld [vmem:[%s4] sm:$0x1]
    %v104 = vlaneseq
    %v105 = vshrl.u32 %v104, 7
    %v106 = vsub.s32 0, %v105
    %v107 = vrot.slane %v102, %v106
    %v109 = vmul.f32 %v86, %v107
    %v110 = vmul.f32 %v87, %v107
    %v111 = vmul.f32 %v88, %v107
    %v112 = vmul.f32 %v89, %v107
    %v113 = vmul.f32 %v90, %v107
    %v114 = vmul.f32 %v91, %v107
    %v115 = vmul.f32 %v92, %v107
    %v116 = vmul.f32 %v93, %v107
    %v117 = vmul.f32 %v94, %v107
    %v118 = vmul.f32 %v95, %v107
    %v119 = vmul.f32 %v96, %v107
    %v120 = vmul.f32 %v97, %v107
    %v121 = vmul.f32 %v98, %v107
    %v122 = vmul.f32 %v99, %v107
    %v123 = vmul.f32 %v100, %v107
    %v124 = vmul.f32 %v101, %v107
    %v125 = vld [vmem:[%s5] sm:$0x1]
    %v127 = vlaneseq
    %v128 = vshrl.u32 %v127, 7
    %v129 = vsub.s32 0, %v128
    %v130 = vrot.slane %v125, %v129
    %v132 = vadd.f32 %v109, %v130
    %v133 = vadd.f32 %v110, %v130
    %v134 = vadd.f32 %v111, %v130
    %v135 = vadd.f32 %v112, %v130
    %v136 = vadd.f32 %v113, %v130
    %v137 = vadd.f32 %v114, %v130
    %v138 = vadd.f32 %v115, %v130
    %v139 = vadd.f32 %v116, %v130
    %v140 = vadd.f32 %v117, %v130
    %v141 = vadd.f32 %v118, %v130
    %v142 = vadd.f32 %v119, %v130
    %v143 = vadd.f32 %v120, %v130
    %v144 = vadd.f32 %v121, %v130
    %v145 = vadd.f32 %v122, %v130
    %v146 = vadd.f32 %v123, %v130
    %v147 = vadd.f32 %v124, %v130
    %v148 = vadd.f32 %v70, %v132
    %v149 = vadd.f32 %v71, %v133
    %v150 = vadd.f32 %v72, %v134
    %v151 = vadd.f32 %v73, %v135
    %v152 = vadd.f32 %v74, %v136
    %v153 = vadd.f32 %v75, %v137
    %v154 = vadd.f32 %v76, %v138
    %v155 = vadd.f32 %v77, %v139
    %v156 = vadd.f32 %v78, %v140
    %v157 = vadd.f32 %v79, %v141
    %v158 = vadd.f32 %v80, %v142
    %v159 = vadd.f32 %v81, %v143
    %v160 = vadd.f32 %v82, %v144
    %v161 = vadd.f32 %v83, %v145
    %v162 = vadd.f32 %v84, %v146
    %v163 = vadd.f32 %v85, %v147
    %v164 = vmax.f32 %v148, 0.0
    %v165 = vmax.f32 %v149, 0.0
    %v166 = vmax.f32 %v150, 0.0
    %v167 = vmax.f32 %v151, 0.0
    %v168 = vmax.f32 %v152, 0.0
    %v169 = vmax.f32 %v153, 0.0
    %v170 = vmax.f32 %v154, 0.0
    %v171 = vmax.f32 %v155, 0.0
    %v172 = vmax.f32 %v156, 0.0
    %v173 = vmax.f32 %v157, 0.0
    %v174 = vmax.f32 %v158, 0.0
    %v175 = vmax.f32 %v159, 0.0
    %v176 = vmax.f32 %v160, 0.0
    %v177 = vmax.f32 %v161, 0.0
    %v178 = vmax.f32 %v162, 0.0
    %v179 = vmax.f32 %v163, 0.0
    %180 = vst [vmem:[#allocation2] sm:$0xff] %v164
    %181 = vst [vmem:[#allocation2 + $0x8] sm:$0xff] %v165
    %182 = vst [vmem:[#allocation2 + $0x10] sm:$0xff] %v166
    %183 = vst [vmem:[#allocation2 + $0x18] sm:$0xff] %v167
    %184 = vst [vmem:[#allocation2 + $0x20] sm:$0xff] %v168
    %185 = vst [vmem:[#allocation2 + $0x28] sm:$0xff] %v169
    %186 = vst [vmem:[#allocation2 + $0x30] sm:$0xff] %v170
    %187 = vst [vmem:[#allocation2 + $0x38] sm:$0xff] %v171
    %188 = vst [vmem:[#allocation2 + $0x40] sm:$0xff] %v172
    %189 = vst [vmem:[#allocation2 + $0x48] sm:$0xff] %v173
    %190 = vst [vmem:[#allocation2 + $0x50] sm:$0xff] %v174
    %191 = vst [vmem:[#allocation2 + $0x58] sm:$0xff] %v175
    %192 = vst [vmem:[#allocation2 + $0x60] sm:$0xff] %v176
    %193 = vst [vmem:[#allocation2 + $0x68] sm:$0xff] %v177
    %194 = vst [vmem:[#allocation2 + $0x70] sm:$0xff] %v178
    %195 = vst [vmem:[#allocation2 + $0x78] sm:$0xff] %v179
    // Predicated region
    $region26: #{_lambda_.11} parent=1 // pred_check
      _
    $region27: #{_lambda_.11} parent=1 // pred_check_branch
      %197 = sbr.rel (0) target = $region29
    $region28: #{_lambda_.11} parent=1 // pred_region
      %s199 = ssub.s32 2048, 2048
      %200 = vsyncadd [#allocation3], %s199
      %s201 = sshll.u32 [#allocation2], 4
      %s202 = int_to_ptr.vmem [resolvable:$true] %s201
      %207 = dma.vmem_to_hbm [thread:$0]  %s202, 2048, %s6, [#allocation3], 128, 128, 8
    $region29: #{_lambda_.11} parent=1 // pred_fallthru
      _
    // Predicated region
    $region30: #{_lambda_.11} parent=1 // pred_check
      _
    $region31: #{_lambda_.11} parent=1 // pred_check_branch
      %209 = sbr.rel (0) target = $region33
    $region32: #{_lambda_.11} parent=1 // pred_region
      %210 = dma.done [#allocation3], 2048
    $region33: #{_lambda_.11} parent=1 // pred_fallthru
      _
    %211 = vsyncpa [#allocation3], 1

// kernel: _lambda_.9
$region0: #{_lambda_.9}
  #allocation0 [shape = 'u32[]', space=smem, size = 0x4, offset = 0x4, fixed_abs, tag = 'smem constant byte address 0x4 - core index']
  #allocation1 [shape = 'u32[144,128]{1,0:T(1,128)}', space=vmem, size = 0x12000, scoped, tag = 'internal scratch']
  #allocation2 [shape = 'f32[128,128]{1,0:T(8,128)}', space=vmem, size = 0x10000, scoped, tag = 'scratch operand']
  %s0 = inlined_call_operand.vmem [shape: f32[128,128], index: 0, kind: input, shape index: {}]
  %s1 = inlined_call_operand.vmem [shape: f32[1,128], index: 1, kind: input, shape index: {}]
  %s2 = inlined_call_operand.vmem [shape: f32[1,128], index: 2, kind: input, shape index: {}]
  %s3 = inlined_call_operand.vmem [shape: bf16[128,128], index: 3, kind: input, shape index: {}]
  %s4 = inlined_call_operand.vmem [shape: f32[128,128], index: 4, kind: output, shape index: {0}]
  %s5 = inlined_call_operand.vmem [shape: f32[1,8,128], index: 5, kind: output, shape index: {1}]
  %6 = xla_tuple %s4, %s5
  %s7 = sld [smem:[#allocation0]]
  $region42: #{_lambda_.9} parent=0
    _
  %s9 = ssub.s32 1, %s7
  %s10 = scalar_select 0, %s9, %s7
  // Predicated region
  $region2: #{_lambda_.9} parent=0 // pred_check
    _
  $region3: #{_lambda_.9} parent=0 // pred_check_branch
    %12 = sbr.rel (0) target = $region5
  $region4: #{_lambda_.9} parent=0 // pred_region
    _
  $region5: #{_lambda_.9} parent=0 // pred_fallthru
    _
  // Predicated region
  $region6: #{_lambda_.9} parent=0 // pred_check
    _
  $region7: #{_lambda_.9} parent=0 // pred_check_branch
    %14 = sbr.rel (0) target = $region9
  $region8: #{_lambda_.9} parent=0 // pred_region
    _
  $region9: #{_lambda_.9} parent=0 // pred_fallthru
    _
  // Predicated region
  $region10: #{_lambda_.9} parent=0 // pred_check
    _
  $region11: #{_lambda_.9} parent=0 // pred_check_branch
    %16 = sbr.rel (0) target = $region13
  $region12: #{_lambda_.9} parent=0 // pred_region
    _
  $region13: #{_lambda_.9} parent=0 // pred_fallthru
    _
  // Predicated region
  $region14: #{_lambda_.9} parent=0 // pred_check
    _
  $region15: #{_lambda_.9} parent=0 // pred_check_branch
    %18 = sbr.rel (0) target = $region17
  $region16: #{_lambda_.9} parent=0 // pred_region
    _
  $region17: #{_lambda_.9} parent=0 // pred_fallthru
    _
  %p20 = scmp.eq.s32.totalorder 0, 0
  // Predicated region
  $region18: #{_lambda_.9} parent=0 // pred_check
    %p21 = pneg %p20
  $region19: #{_lambda_.9} parent=0 // pred_check_branch
    %23 = sbr.rel (%p21) target = $region21
  $region20: #{_lambda_.9} parent=0 // pred_region
    %24 = vst [vmem:[#allocation2] sm:$0xff] 0.0
    %25 = vst [vmem:[#allocation2 + $0x8] sm:$0xff] 0.0
    %26 = vst [vmem:[#allocation2 + $0x10] sm:$0xff] 0.0
    %27 = vst [vmem:[#allocation2 + $0x18] sm:$0xff] 0.0
    %28 = vst [vmem:[#allocation2 + $0x20] sm:$0xff] 0.0
    %29 = vst [vmem:[#allocation2 + $0x28] sm:$0xff] 0.0
    %30 = vst [vmem:[#allocation2 + $0x30] sm:$0xff] 0.0
    %31 = vst [vmem:[#allocation2 + $0x38] sm:$0xff] 0.0
    %32 = vst [vmem:[#allocation2 + $0x40] sm:$0xff] 0.0
    %33 = vst [vmem:[#allocation2 + $0x48] sm:$0xff] 0.0
    %34 = vst [vmem:[#allocation2 + $0x50] sm:$0xff] 0.0
    %35 = vst [vmem:[#allocation2 + $0x58] sm:$0xff] 0.0
    %36 = vst [vmem:[#allocation2 + $0x60] sm:$0xff] 0.0
    %37 = vst [vmem:[#allocation2 + $0x68] sm:$0xff] 0.0
    %38 = vst [vmem:[#allocation2 + $0x70] sm:$0xff] 0.0
    %39 = vst [vmem:[#allocation2 + $0x78] sm:$0xff] 0.0
  $region21: #{_lambda_.9} parent=0 // pred_fallthru
    _
  %v40 = vld [vmem:[%s0] sm:$0xff]
  %v41 = vld [vmem:[%s0 + $0x8] sm:$0xff]
  %v42 = vld [vmem:[%s0 + $0x10] sm:$0xff]
  %v43 = vld [vmem:[%s0 + $0x18] sm:$0xff]
  %v44 = vld [vmem:[%s0 + $0x20] sm:$0xff]
  %v45 = vld [vmem:[%s0 + $0x28] sm:$0xff]
  %v46 = vld [vmem:[%s0 + $0x30] sm:$0xff]
  %v47 = vld [vmem:[%s0 + $0x38] sm:$0xff]
  %v48 = vld [vmem:[%s0 + $0x40] sm:$0xff]
  %v49 = vld [vmem:[%s0 + $0x48] sm:$0xff]
  %v50 = vld [vmem:[%s0 + $0x50] sm:$0xff]
  %v51 = vld [vmem:[%s0 + $0x58] sm:$0xff]
  %v52 = vld [vmem:[%s0 + $0x60] sm:$0xff]
  %v53 = vld [vmem:[%s0 + $0x68] sm:$0xff]
  %v54 = vld [vmem:[%s0 + $0x70] sm:$0xff]
  %v55 = vld [vmem:[%s0 + $0x78] sm:$0xff]
  %v56 = vld [vmem:[%s1] sm:$0x1]
  %v58 = vlaneseq
  %v59 = vshrl.u32 %v58, 7
  %v60 = vsub.s32 0, %v59
  %v61 = vrot.slane %v56, %v60
  %v63 = vmul.f32 %v40, %v61
  %v64 = vmul.f32 %v41, %v61
  %v65 = vmul.f32 %v42, %v61
  %v66 = vmul.f32 %v43, %v61
  %v67 = vmul.f32 %v44, %v61
  %v68 = vmul.f32 %v45, %v61
  %v69 = vmul.f32 %v46, %v61
  %v70 = vmul.f32 %v47, %v61
  %v71 = vmul.f32 %v48, %v61
  %v72 = vmul.f32 %v49, %v61
  %v73 = vmul.f32 %v50, %v61
  %v74 = vmul.f32 %v51, %v61
  %v75 = vmul.f32 %v52, %v61
  %v76 = vmul.f32 %v53, %v61
  %v77 = vmul.f32 %v54, %v61
  %v78 = vmul.f32 %v55, %v61
  %v79 = vld [vmem:[%s2] sm:$0x1]
  %v81 = vlaneseq
  %v82 = vshrl.u32 %v81, 7
  %v83 = vsub.s32 0, %v82
  %v84 = vrot.slane %v79, %v83
  %v86 = vadd.f32 %v63, %v84
  %v87 = vadd.f32 %v64, %v84
  %v88 = vadd.f32 %v65, %v84
  %v89 = vadd.f32 %v66, %v84
  %v90 = vadd.f32 %v67, %v84
  %v91 = vadd.f32 %v68, %v84
  %v92 = vadd.f32 %v69, %v84
  %v93 = vadd.f32 %v70, %v84
  %v94 = vadd.f32 %v71, %v84
  %v95 = vadd.f32 %v72, %v84
  %v96 = vadd.f32 %v73, %v84
  %v97 = vadd.f32 %v74, %v84
  %v98 = vadd.f32 %v75, %v84
  %v99 = vadd.f32 %v76, %v84
  %v100 = vadd.f32 %v77, %v84
  %v101 = vadd.f32 %v78, %v84
  %v102 = vmax.f32 %v86, 0.0
  %v103 = vmax.f32 %v87, 0.0
  %v104 = vmax.f32 %v88, 0.0
  %v105 = vmax.f32 %v89, 0.0
  %v106 = vmax.f32 %v90, 0.0
  %v107 = vmax.f32 %v91, 0.0
  %v108 = vmax.f32 %v92, 0.0
  %v109 = vmax.f32 %v93, 0.0
  %v110 = vmax.f32 %v94, 0.0
  %v111 = vmax.f32 %v95, 0.0
  %v112 = vmax.f32 %v96, 0.0
  %v113 = vmax.f32 %v97, 0.0
  %v114 = vmax.f32 %v98, 0.0
  %v115 = vmax.f32 %v99, 0.0
  %v116 = vmax.f32 %v100, 0.0
  %v117 = vmax.f32 %v101, 0.0
  %v118 = vlaneseq
  %v119 = vshrl.u32 %v118, 7
  %v120 = vadd.s32 %v119, 8
  %v121 = vadd.s32 %v119, 16
  %v122 = vadd.s32 %v119, 24
  %v123 = vadd.s32 %v119, 32
  %v124 = vadd.s32 %v119, 40
  %v125 = vadd.s32 %v119, 48
  %v126 = vadd.s32 %v119, 56
  %v127 = vadd.s32 %v119, 64
  %v128 = vadd.s32 %v119, 72
  %v129 = vadd.s32 %v119, 80
  %v130 = vadd.s32 %v119, 88
  %v131 = vadd.s32 %v119, 96
  %v132 = vadd.s32 %v119, 104
  %v133 = vadd.s32 %v119, 112
  %v134 = vadd.s32 %v119, 120
  %s135 = smul.u32 0, 128
  %v136 = vstv %s135
  %v137 = vadd.s32 %v119, %v136
  %v138 = vadd.s32 %v120, %v136
  %v139 = vadd.s32 %v121, %v136
  %v140 = vadd.s32 %v122, %v136
  %v141 = vadd.s32 %v123, %v136
  %v142 = vadd.s32 %v124, %v136
  %v143 = vadd.s32 %v125, %v136
  %v144 = vadd.s32 %v126, %v136
  %v145 = vadd.s32 %v127, %v136
  %v146 = vadd.s32 %v128, %v136
  %v147 = vadd.s32 %v129, %v136
  %v148 = vadd.s32 %v130, %v136
  %v149 = vadd.s32 %v131, %v136
  %v150 = vadd.s32 %v132, %v136
  %v151 = vadd.s32 %v133, %v136
  %v152 = vadd.s32 %v134, %v136
  %vm153 = vcmp.lt.s32.totalorder %v137, 128
  %vm154 = vcmp.lt.s32.totalorder %v138, 128
  %vm155 = vcmp.lt.s32.totalorder %v139, 128
  %vm156 = vcmp.lt.s32.totalorder %v140, 128
  %vm157 = vcmp.lt.s32.totalorder %v141, 128
  %vm158 = vcmp.lt.s32.totalorder %v142, 128
  %vm159 = vcmp.lt.s32.totalorder %v143, 128
  %vm160 = vcmp.lt.s32.totalorder %v144, 128
  %vm161 = vcmp.lt.s32.totalorder %v145, 128
  %vm162 = vcmp.lt.s32.totalorder %v146, 128
  %vm163 = vcmp.lt.s32.totalorder %v147, 128
  %vm164 = vcmp.lt.s32.totalorder %v148, 128
  %vm165 = vcmp.lt.s32.totalorder %v149, 128
  %vm166 = vcmp.lt.s32.totalorder %v150, 128
  %vm167 = vcmp.lt.s32.totalorder %v151, 128
  %vm168 = vcmp.lt.s32.totalorder %v152, 128
  %v169 = vsel %vm153, %v102, 0.0
  %v170 = vsel %vm154, %v103, 0.0
  %v171 = vsel %vm155, %v104, 0.0
  %v172 = vsel %vm156, %v105, 0.0
  %v173 = vsel %vm157, %v106, 0.0
  %v174 = vsel %vm158, %v107, 0.0
  %v175 = vsel %vm159, %v108, 0.0
  %v176 = vsel %vm160, %v109, 0.0
  %v177 = vsel %vm161, %v110, 0.0
  %v178 = vsel %vm162, %v111, 0.0
  %v179 = vsel %vm163, %v112, 0.0
  %v180 = vsel %vm164, %v113, 0.0
  %v181 = vsel %vm165, %v114, 0.0
  %v182 = vsel %vm166, %v115, 0.0
  %v183 = vsel %vm167, %v116, 0.0
  %v184 = vsel %vm168, %v117, 0.0
  %v185 = vld [vmem:[#allocation2] sm:$0xff]
  %v186 = vld [vmem:[#allocation2 + $0x8] sm:$0xff]
  %v187 = vld [vmem:[#allocation2 + $0x10] sm:$0xff]
  %v188 = vld [vmem:[#allocation2 + $0x18] sm:$0xff]
  %v189 = vld [vmem:[#allocation2 + $0x20] sm:$0xff]
  %v190 = vld [vmem:[#allocation2 + $0x28] sm:$0xff]
  %v191 = vld [vmem:[#allocation2 + $0x30] sm:$0xff]
  %v192 = vld [vmem:[#allocation2 + $0x38] sm:$0xff]
  %v193 = vld [vmem:[#allocation2 + $0x40] sm:$0xff]
  %v194 = vld [vmem:[#allocation2 + $0x48] sm:$0xff]
  %v195 = vld [vmem:[#allocation2 + $0x50] sm:$0xff]
  %v196 = vld [vmem:[#allocation2 + $0x58] sm:$0xff]
  %v197 = vld [vmem:[#allocation2 + $0x60] sm:$0xff]
  %v198 = vld [vmem:[#allocation2 + $0x68] sm:$0xff]
  %v199 = vld [vmem:[#allocation2 + $0x70] sm:$0xff]
  %v200 = vld [vmem:[#allocation2 + $0x78] sm:$0xff]
  %v201 = vpack.c.bf16 %v170, %v169
  %v202 = vpack.c.bf16 %v172, %v171
  %v203 = vpack.c.bf16 %v174, %v173
  %v204 = vpack.c.bf16 %v176, %v175
  %v205 = vpack.c.bf16 %v178, %v177
  %v206 = vpack.c.bf16 %v180, %v179
  %v207 = vpack.c.bf16 %v182, %v181
  %v208 = vpack.c.bf16 %v184, %v183
  %v209 = vld [vmem:[%s3] sm:$0xf]
  %v210 = vld [vmem:[%s3 + $0x4] sm:$0xf]
  %v211 = vld [vmem:[%s3 + $0x8] sm:$0xf]
  %v212 = vld [vmem:[%s3 + $0xc] sm:$0xf]
  %v213 = vld [vmem:[%s3 + $0x10] sm:$0xf]
  %v214 = vld [vmem:[%s3 + $0x14] sm:$0xf]
  %v215 = vld [vmem:[%s3 + $0x18] sm:$0xf]
  %v216 = vld [vmem:[%s3 + $0x1c] sm:$0xf]
  %v217 = vld [vmem:[%s3 + $0x20] sm:$0xf]
  %v218 = vld [vmem:[%s3 + $0x24] sm:$0xf]
  %v219 = vld [vmem:[%s3 + $0x28] sm:$0xf]
  %v220 = vld [vmem:[%s3 + $0x2c] sm:$0xf]
  %v221 = vld [vmem:[%s3 + $0x30] sm:$0xf]
  %v222 = vld [vmem:[%s3 + $0x34] sm:$0xf]
  %v223 = vld [vmem:[%s3 + $0x38] sm:$0xf]
  %v224 = vld [vmem:[%s3 + $0x3c] sm:$0xf]
  %v241 = vunpack.c.l.b16 %v209
  %v242 = vunpack.c.l.b16 %v210
  %v243 = vunpack.c.l.b16 %v211
  %v244 = vunpack.c.l.b16 %v212
  %v245 = vunpack.c.l.b16 %v213
  %v246 = vunpack.c.l.b16 %v214
  %v247 = vunpack.c.l.b16 %v215
  %v248 = vunpack.c.l.b16 %v216
  %v249 = vunpack.c.l.b16 %v217
  %v250 = vunpack.c.l.b16 %v218
  %v251 = vunpack.c.l.b16 %v219
  %v252 = vunpack.c.l.b16 %v220
  %v253 = vunpack.c.l.b16 %v221
  %v254 = vunpack.c.l.b16 %v222
  %v255 = vunpack.c.l.b16 %v223
  %v256 = vunpack.c.l.b16 %v224
  %v257 = vpack.c.b16 %v242, %v241
  %v258 = vpack.c.b16 %v244, %v243
  %v259 = vpack.c.b16 %v246, %v245
  %v260 = vpack.c.b16 %v248, %v247
  %v261 = vpack.c.b16 %v250, %v249
  %v262 = vpack.c.b16 %v252, %v251
  %v263 = vpack.c.b16 %v254, %v253
  %v264 = vpack.c.b16 %v256, %v255
  %273 = vmatprep.subr.bf16.mxu0 0
  %274 = vmatpush1.bf16.msra.mxu0 %v264
  %275 = vmatprep.subr.bf16.mxu0 0
  %276 = vmatpush1.bf16.msra.mxu0 %v263
  %277 = vmatprep.subr.bf16.mxu0 0
  %278 = vmatpush1.bf16.msra.mxu0 %v262
  %279 = vmatprep.subr.bf16.mxu0 0
  %280 = vmatpush1.bf16.msra.mxu0 %v261
  %281 = vmatprep.subr.bf16.mxu0 0
  %282 = vmatpush1.bf16.msra.mxu0 %v260
  %283 = vmatprep.subr.bf16.mxu0 0
  %284 = vmatpush1.bf16.msra.mxu0 %v259
  %285 = vmatprep.subr.bf16.mxu0 0
  %286 = vmatpush1.bf16.msra.mxu0 %v258
  %287 = vmatprep.subr.bf16.mxu0 0
  %288 = vmatpush1.bf16.msra.mxu0 %v257
  %289 = vmatprep.subr.bf16.mxu0 0
  %290 = vmatpush2.bf16.msra.mxu0 0
  %291 = vmatprep.subr.bf16.mxu0 0
  %292 = vmatpush2.bf16.msra.mxu0 0
  %293 = vmatprep.subr.bf16.mxu0 0
  %294 = vmatpush2.bf16.msra.mxu0 0
  %295 = vmatprep.subr.bf16.mxu0 0
  %296 = vmatpush2.bf16.msra.mxu0 0
  %297 = vmatprep.subr.bf16.mxu0 0
  %298 = vmatpush2.bf16.msra.mxu0 0
  %299 = vmatprep.subr.bf16.mxu0 0
  %300 = vmatpush2.bf16.msra.mxu0 0
  %301 = vmatprep.subr.bf16.mxu0 0
  %302 = vmatpush2.bf16.msra.mxu0 0
  %303 = vmatprep.subr.bf16.mxu0 0
  %304 = vmatpush2.bf16.msra.mxu0 0
  %305 = vmatprep.mubr.bf16.mxu0 0
  %306 = vmatmul.mubr.bf16.gmra.mxu0 %v201
  %v307 = vpop.f32.mrf.mxu0
  %v308 = vadd.f32 0.0, %v307
  %v309 = vpop.f32.mrf.mxu0
  %v310 = vpop.f32.mrf.mxu0
  %v311 = vadd.f32 0.0, %v310
  %v312 = vpop.f32.mrf.mxu0
  %313 = vmatprep.mubr.bf16.mxu0 0
  %314 = vmatmul.mubr.bf16.gmra.mxu0 %v202
  %v315 = vpop.f32.mrf.mxu0
  %v316 = vadd.f32 0.0, %v315
  %v317 = vpop.f32.mrf.mxu0
  %v318 = vpop.f32.mrf.mxu0
  %v319 = vadd.f32 0.0, %v318
  %v320 = vpop.f32.mrf.mxu0
  %321 = vmatprep.mubr.bf16.mxu0 0
  %322 = vmatmul.mubr.bf16.gmra.mxu0 %v203
  %v323 = vpop.f32.mrf.mxu0
  %v324 = vadd.f32 0.0, %v323
  %v325 = vpop.f32.mrf.mxu0
  %v326 = vpop.f32.mrf.mxu0
  %v327 = vadd.f32 0.0, %v326
  %v328 = vpop.f32.mrf.mxu0
  %329 = vmatprep.mubr.bf16.mxu0 0
  %330 = vmatmul.mubr.bf16.gmra.mxu0 %v204
  %v331 = vpop.f32.mrf.mxu0
  %v332 = vadd.f32 0.0, %v331
  %v333 = vpop.f32.mrf.mxu0
  %v334 = vpop.f32.mrf.mxu0
  %v335 = vadd.f32 0.0, %v334
  %v336 = vpop.f32.mrf.mxu0
  %337 = vmatprep.mubr.bf16.mxu0 0
  %338 = vmatmul.mubr.bf16.gmra.mxu0 %v205
  %v339 = vpop.f32.mrf.mxu0
  %v340 = vadd.f32 0.0, %v339
  %v341 = vpop.f32.mrf.mxu0
  %v342 = vpop.f32.mrf.mxu0
  %v343 = vadd.f32 0.0, %v342
  %v344 = vpop.f32.mrf.mxu0
  %345 = vmatprep.mubr.bf16.mxu0 0
  %346 = vmatmul.mubr.bf16.gmra.mxu0 %v206
  %v347 = vpop.f32.mrf.mxu0
  %v348 = vadd.f32 0.0, %v347
  %v349 = vpop.f32.mrf.mxu0
  %v350 = vpop.f32.mrf.mxu0
  %v351 = vadd.f32 0.0, %v350
  %v352 = vpop.f32.mrf.mxu0
  %353 = vmatprep.mubr.bf16.mxu0 0
  %354 = vmatmul.mubr.bf16.gmra.mxu0 %v207
  %v355 = vpop.f32.mrf.mxu0
  %v356 = vadd.f32 0.0, %v355
  %v357 = vpop.f32.mrf.mxu0
  %v358 = vpop.f32.mrf.mxu0
  %v359 = vadd.f32 0.0, %v358
  %v360 = vpop.f32.mrf.mxu0
  %361 = vmatprep.mubr.bf16.mxu0 0
  %362 = vmatmul.mubr.bf16.gmra.mxu0 %v208
  %v363 = vpop.f32.mrf.mxu0
  %v364 = vadd.f32 0.0, %v363
  %v365 = vpop.f32.mrf.mxu0
  %v366 = vpop.f32.mrf.mxu0
  %v367 = vadd.f32 0.0, %v366
  %v368 = vpop.f32.mrf.mxu0
  %369 = vdwg.mxu0
  %v370 = vadd.f32 %v185, %v308
  %v371 = vadd.f32 %v186, %v311
  %v372 = vadd.f32 %v187, %v316
  %v373 = vadd.f32 %v188, %v319
  %v374 = vadd.f32 %v189, %v324
  %v375 = vadd.f32 %v190, %v327
  %v376 = vadd.f32 %v191, %v332
  %v377 = vadd.f32 %v192, %v335
  %v378 = vadd.f32 %v193, %v340
  %v379 = vadd.f32 %v194, %v343
  %v380 = vadd.f32 %v195, %v348
  %v381 = vadd.f32 %v196, %v351
  %v382 = vadd.f32 %v197, %v356
  %v383 = vadd.f32 %v198, %v359
  %v384 = vadd.f32 %v199, %v364
  %v385 = vadd.f32 %v200, %v367
  %386 = vst [vmem:[#allocation2] sm:$0xff] %v370
  %387 = vst [vmem:[#allocation2 + $0x8] sm:$0xff] %v371
  %388 = vst [vmem:[#allocation2 + $0x10] sm:$0xff] %v372
  %389 = vst [vmem:[#allocation2 + $0x18] sm:$0xff] %v373
  %390 = vst [vmem:[#allocation2 + $0x20] sm:$0xff] %v374
  %391 = vst [vmem:[#allocation2 + $0x28] sm:$0xff] %v375
  %392 = vst [vmem:[#allocation2 + $0x30] sm:$0xff] %v376
  %393 = vst [vmem:[#allocation2 + $0x38] sm:$0xff] %v377
  %394 = vst [vmem:[#allocation2 + $0x40] sm:$0xff] %v378
  %395 = vst [vmem:[#allocation2 + $0x48] sm:$0xff] %v379
  %396 = vst [vmem:[#allocation2 + $0x50] sm:$0xff] %v380
  %397 = vst [vmem:[#allocation2 + $0x58] sm:$0xff] %v381
  %398 = vst [vmem:[#allocation2 + $0x60] sm:$0xff] %v382
  %399 = vst [vmem:[#allocation2 + $0x68] sm:$0xff] %v383
  %400 = vst [vmem:[#allocation2 + $0x70] sm:$0xff] %v384
  %401 = vst [vmem:[#allocation2 + $0x78] sm:$0xff] %v385
  // Predicated region
  $region22: #{_lambda_.9} parent=0 // pred_check
    %p402 = pneg %p20
  $region23: #{_lambda_.9} parent=0 // pred_check_branch
    %404 = sbr.rel (%p402) target = $region25
  $region24: #{_lambda_.9} parent=0 // pred_region
    %v405 = vld [vmem:[#allocation2] sm:$0xff]
    %v406 = vld [vmem:[#allocation2 + $0x8] sm:$0xff]
    %v407 = vld [vmem:[#allocation2 + $0x10] sm:$0xff]
    %v408 = vld [vmem:[#allocation2 + $0x18] sm:$0xff]
    %v409 = vld [vmem:[#allocation2 + $0x20] sm:$0xff]
    %v410 = vld [vmem:[#allocation2 + $0x28] sm:$0xff]
    %v411 = vld [vmem:[#allocation2 + $0x30] sm:$0xff]
    %v412 = vld [vmem:[#allocation2 + $0x38] sm:$0xff]
    %v413 = vld [vmem:[#allocation2 + $0x40] sm:$0xff]
    %v414 = vld [vmem:[#allocation2 + $0x48] sm:$0xff]
    %v415 = vld [vmem:[#allocation2 + $0x50] sm:$0xff]
    %v416 = vld [vmem:[#allocation2 + $0x58] sm:$0xff]
    %v417 = vld [vmem:[#allocation2 + $0x60] sm:$0xff]
    %v418 = vld [vmem:[#allocation2 + $0x68] sm:$0xff]
    %v419 = vld [vmem:[#allocation2 + $0x70] sm:$0xff]
    %v420 = vld [vmem:[#allocation2 + $0x78] sm:$0xff]
    %421 = vst [vmem:[%s4] sm:$0xff] %v405
    %422 = vst [vmem:[%s4 + $0x8] sm:$0xff] %v406
    %423 = vst [vmem:[%s4 + $0x10] sm:$0xff] %v407
    %424 = vst [vmem:[%s4 + $0x18] sm:$0xff] %v408
    %425 = vst [vmem:[%s4 + $0x20] sm:$0xff] %v409
    %426 = vst [vmem:[%s4 + $0x28] sm:$0xff] %v410
    %427 = vst [vmem:[%s4 + $0x30] sm:$0xff] %v411
    %428 = vst [vmem:[%s4 + $0x38] sm:$0xff] %v412
    %429 = vst [vmem:[%s4 + $0x40] sm:$0xff] %v413
    %430 = vst [vmem:[%s4 + $0x48] sm:$0xff] %v414
    %431 = vst [vmem:[%s4 + $0x50] sm:$0xff] %v415
    %432 = vst [vmem:[%s4 + $0x58] sm:$0xff] %v416
    %433 = vst [vmem:[%s4 + $0x60] sm:$0xff] %v417
    %434 = vst [vmem:[%s4 + $0x68] sm:$0xff] %v418
    %435 = vst [vmem:[%s4 + $0x70] sm:$0xff] %v419
    %436 = vst [vmem:[%s4 + $0x78] sm:$0xff] %v420
    %v437 = vadd.f32 %v405, %v406
    %v438 = vadd.f32 %v437, %v407
    %v439 = vadd.f32 %v438, %v408
    %v440 = vadd.f32 %v439, %v409
    %v441 = vadd.f32 %v440, %v410
    %v442 = vadd.f32 %v441, %v411
    %v443 = vadd.f32 %v442, %v412
    %v444 = vadd.f32 %v443, %v413
    %v445 = vadd.f32 %v444, %v414
    %v446 = vadd.f32 %v445, %v415
    %v447 = vadd.f32 %v446, %v416
    %v448 = vadd.f32 %v447, %v417
    %v449 = vadd.f32 %v448, %v418
    %v450 = vadd.f32 %v449, %v419
    %v451 = vadd.f32 %v450, %v420
    %v452 = vrot.slane %v451, 4
    %v453 = vadd.f32 %v451, %v452
    %v454 = vrot.slane %v453, 2
    %v455 = vadd.f32 %v453, %v454
    %v456 = vrot.slane %v455, 1
    %v457 = vadd.f32 %v455, %v456
    %v458 = vmul.f32 %v405, %v405
    %v459 = vmul.f32 %v406, %v406
    %v460 = vmul.f32 %v407, %v407
    %v461 = vmul.f32 %v408, %v408
    %v462 = vmul.f32 %v409, %v409
    %v463 = vmul.f32 %v410, %v410
    %v464 = vmul.f32 %v411, %v411
    %v465 = vmul.f32 %v412, %v412
    %v466 = vmul.f32 %v413, %v413
    %v467 = vmul.f32 %v414, %v414
    %v468 = vmul.f32 %v415, %v415
    %v469 = vmul.f32 %v416, %v416
    %v470 = vmul.f32 %v417, %v417
    %v471 = vmul.f32 %v418, %v418
    %v472 = vmul.f32 %v419, %v419
    %v473 = vmul.f32 %v420, %v420
    %v474 = vadd.f32 %v458, %v459
    %v475 = vadd.f32 %v474, %v460
    %v476 = vadd.f32 %v475, %v461
    %v477 = vadd.f32 %v476, %v462
    %v478 = vadd.f32 %v477, %v463
    %v479 = vadd.f32 %v478, %v464
    %v480 = vadd.f32 %v479, %v465
    %v481 = vadd.f32 %v480, %v466
    %v482 = vadd.f32 %v481, %v467
    %v483 = vadd.f32 %v482, %v468
    %v484 = vadd.f32 %v483, %v469
    %v485 = vadd.f32 %v484, %v470
    %v486 = vadd.f32 %v485, %v471
    %v487 = vadd.f32 %v486, %v472
    %v488 = vadd.f32 %v487, %v473
    %v489 = vrot.slane %v488, 4
    %v490 = vadd.f32 %v488, %v489
    %v491 = vrot.slane %v490, 2
    %v492 = vadd.f32 %v490, %v491
    %v493 = vrot.slane %v492, 1
    %v494 = vadd.f32 %v492, %v493
    %vm495 = vcmask 1040384
    %v496 = vsel %vm495, %v457, %v494
    %vm497 = vcmask 1041408
    %v498 = vsel %vm497, %v496, 0.0
    %vm499 = vcmask 1042432
    %v500 = vsel %vm499, %v498, 0.0
    %vm501 = vcmask 1043456
    %v502 = vsel %vm501, %v500, 0.0
    %vm503 = vcmask 1044480
    %v504 = vsel %vm503, %v502, 0.0
    %vm505 = vcmask 1045504
    %v506 = vsel %vm505, %v504, 0.0
    %vm507 = vcmask 1046528
    %v508 = vsel %vm507, %v506, 0.0
    %509 = vst [vmem:[%s5] sm:$0xff] %v508
  $region25: #{_lambda_.9} parent=0 // pred_fallthru
    _
  // Predicated region
  $region26: #{_lambda_.9} parent=0 // pred_check
    _
  $region27: #{_lambda_.9} parent=0 // pred_check_branch
    %511 = sbr.rel (0) target = $region29
  $region28: #{_lambda_.9} parent=0 // pred_region
    _
  $region29: #{_lambda_.9} parent=0 // pred_fallthru
    _
  // Predicated region
  $region30: #{_lambda_.9} parent=0 // pred_check
    _
  $region31: #{_lambda_.9} parent=0 // pred_check_branch
    %513 = sbr.rel (0) target = $region33
  $region32: #{_lambda_.9} parent=0 // pred_region
    _
  $region33: #{_lambda_.9} parent=0 // pred_fallthru
    _
  // Predicated region
  $region34: #{_lambda_.9} parent=0 // pred_check
    _
  $region35: #{_lambda_.9} parent=0 // pred_check_branch
    %515 = sbr.rel (0) target = $region37
  $region36: #{_lambda_.9} parent=0 // pred_region
    _
  $region37: #{_lambda_.9} parent=0 // pred_fallthru
    _
  // Predicated region
  $region38: #{_lambda_.9} parent=0 // pred_check
    _
  $region39: #{_lambda_.9} parent=0 // pred_check_branch
    %517 = sbr.rel (0) target = $region41
  $region40: #{_lambda_.9} parent=0 // pred_region
    _
  $region41: #{_lambda_.9} parent=0 // pred_fallthru
    _

// kernel: _lambda_.8
$region0: #{_lambda_.8}
  #allocation0 [shape = 'u32[]', space=smem, size = 0x4, offset = 0x4, fixed_abs, tag = 'smem constant byte address 0x4 - core index']
  #allocation1 [shape = 'u32[144,128]{1,0:T(1,128)}', space=vmem, size = 0x12000, scoped, tag = 'internal scratch']
  #allocation2 [shape = 'f32[64,128]{1,0:T(8,128)}', space=vmem, size = 0x8000, scoped, tag = 'scratch operand']
  %s0 = inlined_call_operand.vmem [shape: bf16[4,2,10,10,128], index: 0, kind: input, shape index: {}]
  %s1 = inlined_call_operand.vmem [shape: bf16[9,128,128], index: 1, kind: input, shape index: {}]
  %s2 = inlined_call_operand.vmem [shape: f32[2,64,128], index: 2, kind: output, shape index: {0}]
  %s3 = inlined_call_operand.vmem [shape: f32[2,8,128], index: 3, kind: output, shape index: {1}]
  %4 = xla_tuple %s2, %s3
  %s5 = sld [smem:[#allocation0]]
  $region90: #{_lambda_.8} parent=0
    _
  %s7 = ssub.s32 1, %s5
  %s8 = scalar_select 0, %s7, %s5
  $region1: #{_lambda_.8} parent=0
    #allocation3 [shape = 'u8[327680]{0}', space=vmem, size = 0x50000, scoped, tag = 'input window, operand 0']
    loop: start=0, step=1, limit=4
    $region2: #{_lambda_.8} parent=1 // loop_pre_header
      _
    $region3: #{_lambda_.8} parent=1 // loop_header
      %s10 = sphi 0, %s14
      %p11 = scmp.ge.s32.totalorder %s10, 4
      %s20 = sphi 0, %s22
      %s23 = sphi 0, %s20
      %s24 = sphi 0, %s23
      %s40 = sphi 0, %s24
      %s44 = sphi 0, %s44
      %s46 = sphi 0, %s44
      %s47 = sphi 0, %s46
      %s61 = sphi 0, %s47
      %s67 = sphi 0, %s69
      %s70 = sphi 0, %s67
      %s71 = sphi 0, %s70
      %s87 = sphi 0, %s71
      %s93 = sphi 0, %s95
      %s96 = sphi 0, %s93
      %s97 = sphi 0, %s96
      %s113 = sphi 0, %s97
    $region4: #{_lambda_.8} parent=1 // loop_header_branch
      %13 = sbr.rel (%p11) target = $region8
    $region5: #{_lambda_.8} parent=1 // loop_body
      %s15 = ssub.s32 %s10, 1
      %s16 = ssub.s32 %s10, 2
      %s17 = sadd.s32 %s10, 1
      %s18 = ssub.s32 %s10, %s17
      %p19 = scmp.eq.s32.totalorder %s18, 0
      %s21 = sadd.s32 %s20, 1
      %s22 = scalar_select %p19, %s20, %s21
      %p25 = pneg %p19
      %p26 = scmp.eq.s32.totalorder %s10, 1
      %p27 = por %p25, %p26
      %p28 = scmp.ne.s32.totalorder %s20, %s23
      %p29 = scmp.eq.s32.totalorder %s10, 0
      %p30 = por %p28, %p29
      %p31 = scmp.ne.s32.totalorder %s20, %s23
      %p32 = scmp.eq.s32.totalorder %s15, 1
      %p33 = por %p31, %p32
      %p34 = scmp.ne.s32.totalorder %s23, %s24
      %p35 = scmp.eq.s32.totalorder %s15, 0
      %p36 = por %p34, %p35
      %p37 = scmp.ne.s32.totalorder %s23, %s24
      %p38 = scmp.eq.s32.totalorder %s16, 1
      %p39 = por %p37, %p38
      %p41 = scmp.ne.s32.totalorder %s24, %s40
      %p42 = scmp.eq.s32.totalorder %s16, 0
      %p43 = por %p41, %p42
      %s45 = sadd.s32 %s44, 1
      %p48 = scmp.eq.s32.totalorder %s10, 1
      %p49 = scmp.ne.s32.totalorder %s44, %s46
      %p50 = scmp.eq.s32.totalorder %s10, 0
      %p51 = por %p49, %p50
      %p52 = scmp.ne.s32.totalorder %s44, %s46
      %p53 = scmp.eq.s32.totalorder %s15, 1
      %p54 = por %p52, %p53
      %p55 = scmp.ne.s32.totalorder %s46, %s47
      %p56 = scmp.eq.s32.totalorder %s15, 0
      %p57 = por %p55, %p56
      %p58 = scmp.ne.s32.totalorder %s46, %s47
      %p59 = scmp.eq.s32.totalorder %s16, 1
      %p60 = por %p58, %p59
      %p62 = scmp.ne.s32.totalorder %s47, %s61
      %p63 = scmp.eq.s32.totalorder %s16, 0
      %p64 = por %p62, %p63
      %s65 = ssub.s32 %s10, %s17
      %p66 = scmp.eq.s32.totalorder %s65, 0
      %s68 = sadd.s32 %s67, 1
      %s69 = scalar_select %p66, %s67, %s68
      %p72 = pneg %p66
      %p73 = scmp.eq.s32.totalorder %s10, 1
      %p74 = por %p72, %p73
      %p75 = scmp.ne.s32.totalorder %s67, %s70
      %p76 = scmp.eq.s32.totalorder %s10, 0
      %p77 = por %p75, %p76
      %p78 = scmp.ne.s32.totalorder %s67, %s70
      %p79 = scmp.eq.s32.totalorder %s15, 1
      %p80 = por %p78, %p79
      %p81 = scmp.ne.s32.totalorder %s70, %s71
      %p82 = scmp.eq.s32.totalorder %s15, 0
      %p83 = por %p81, %p82
      %p84 = scmp.ne.s32.totalorder %s70, %s71
      %p85 = scmp.eq.s32.totalorder %s16, 1
      %p86 = por %p84, %p85
      %p88 = scmp.ne.s32.totalorder %s71, %s87
      %p89 = scmp.eq.s32.totalorder %s16, 0
      %p90 = por %p88, %p89
      %s91 = ssub.s32 %s10, %s17
      %p92 = scmp.eq.s32.totalorder %s91, 0
      %s94 = sadd.s32 %s93, 1
      %s95 = scalar_select %p92, %s93, %s94
      %p98 = pneg %p92
      %p99 = scmp.eq.s32.totalorder %s10, 1
      %p100 = por %p98, %p99
      %p101 = scmp.ne.s32.totalorder %s93, %s96
      %p102 = scmp.eq.s32.totalorder %s10, 0
      %p103 = por %p101, %p102
      %p104 = scmp.ne.s32.totalorder %s93, %s96
      %p105 = scmp.eq.s32.totalorder %s15, 1
      %p106 = por %p104, %p105
      %p107 = scmp.ne.s32.totalorder %s96, %s97
      %p108 = scmp.eq.s32.totalorder %s15, 0
      %p109 = por %p107, %p108
      %p110 = scmp.ne.s32.totalorder %s96, %s97
      %p111 = scmp.eq.s32.totalorder %s16, 1
      %p112 = por %p110, %p111
      %p114 = scmp.ne.s32.totalorder %s97, %s113
      %p115 = scmp.eq.s32.totalorder %s16, 0
      %p116 = por %p114, %p115
      %p117 = scmp.le.s32.totalorder 1, %s10
      %p118 = scmp.lt.s32.totalorder %s10, 3
      %p119 = pnand %p117, %p118
      %p120 = pneg %p119
      // Predicated region
      $region9: #{_lambda_.8} parent=5 // pred_check
        _
      $region10: #{_lambda_.8} parent=5 // pred_check_branch
        %122 = sbr.rel (%p119) target = $region12
      $region11: #{_lambda_.8} parent=5 // pred_region
        %s123 = ssub.s32 %s10, 1
        // Predicated region
        $region13: #{_lambda_.8} parent=11 // pred_check
          %p124 = pneg %p57
        $region14: #{_lambda_.8} parent=11 // pred_check_branch
          %126 = sbr.rel (%p124) target = $region16
        $region15: #{_lambda_.8} parent=11 // pred_region
          _
        $region16: #{_lambda_.8} parent=11 // pred_fallthru
          _
      $region12: #{_lambda_.8} parent=5 // pred_fallthru
        _
      %p127 = scmp.lt.s32.totalorder %s10, 2
      // Predicated region
      $region17: #{_lambda_.8} parent=5 // pred_check
        %p128 = pneg %p127
      $region18: #{_lambda_.8} parent=5 // pred_check_branch
        %130 = sbr.rel (%p128) target = $region20
      $region19: #{_lambda_.8} parent=5 // pred_region
        // Predicated region
        $region21: #{_lambda_.8} parent=19 // pred_check
          %p131 = pneg %p30
        $region22: #{_lambda_.8} parent=19 // pred_check_branch
          %133 = sbr.rel (%p131) target = $region24
        $region23: #{_lambda_.8} parent=19 // pred_region
          %s134 = sand.u32 %s20, 1
          %s135 = sand.u32 %s20, 1
          %s136 = smul.addr %s135, 320
          %s137 = scalar_lea.vmem [#allocation3], %s136
          %s138 = smul.addr %s10, 20
          %s139 = smul.addr %s138, 4
          %s140 = scalar_lea.vmem %s0, %s139
          // Predicated region
          $region25: #{_lambda_.8} parent=23 // pred_check
            _
          $region26: #{_lambda_.8} parent=23 // pred_check_branch
            %142 = sbr.rel (0) target = $region28
          $region27: #{_lambda_.8} parent=23 // pred_region
            // Predicated region
            $region29: #{_lambda_.8} parent=27 // pred_check
              _
            $region30: #{_lambda_.8} parent=27 // pred_check_branch
              %144 = sbr.rel target = $region32
            $region31: #{_lambda_.8} parent=27 // pred_region
              // Predicated region
              $region44: #{_lambda_.8} parent=31 // pred_check
                _
              $region45: #{_lambda_.8} parent=31 // pred_check_branch
                %318 = sbr.rel (0) target = $region47
              $region46: #{_lambda_.8} parent=31 // pred_region
                loop: start=0, step=1, limit=1
                $region48: #{_lambda_.8} parent=46 // loop_pre_header
                  _
                $region49: #{_lambda_.8} parent=46 // loop_header
                  %s320 = sphi 0, %s324
                  %p321 = scmp.ge.s32.totalorder %s320, 1
                  %s325 = sphi %s140, %s140
                  %s326 = sphi %s137, %s137
                $region50: #{_lambda_.8} parent=46 // loop_header_branch
                  %323 = sbr.rel (%p321) target = $region54
                $region51: #{_lambda_.8} parent=46 // loop_body
                  _
                $region52: #{_lambda_.8} parent=46 // loop_footer
                  %s324 = sadd.s32 1, %s320
                $region53: #{_lambda_.8} parent=46 // loop_footer_branch
                  %319 = sbr.rel target = $region49
                $region54: #{_lambda_.8} parent=46 // loop_exit
                  _
                %s328 = ssub.s32 16, 1
                loop: start=0, step=1, limit=1
                $region55: #{_lambda_.8} parent=46 // loop_pre_header
                  _
                $region56: #{_lambda_.8} parent=46 // loop_header
                  %s330 = sphi 0, %s334
                  %p331 = scmp.ge.s32.totalorder %s330, 1
                  %s335 = sphi %s140, %s140
                  %s336 = sphi %s137, %s137
                $region57: #{_lambda_.8} parent=46 // loop_header_branch
                  %333 = sbr.rel (%p331) target = $region61
                $region58: #{_lambda_.8} parent=46 // loop_body
                  %v337 = vld [vmem:[%s335] sm:%s328]
                  %338 = vst [vmem:[%s336] sm:%s328] %v337
                  %v339 = vld [vmem:[%s335 + $0x4] sm:%s328]
                  %340 = vst [vmem:[%s336 + $0x4] sm:%s328] %v339
                  %v341 = vld [vmem:[%s335 + $0x8] sm:%s328]
                  %342 = vst [vmem:[%s336 + $0x8] sm:%s328] %v341
                  %v343 = vld [vmem:[%s335 + $0xc] sm:%s328]
                  %344 = vst [vmem:[%s336 + $0xc] sm:%s328] %v343
                  %v345 = vld [vmem:[%s335 + $0x10] sm:%s328]
                  %346 = vst [vmem:[%s336 + $0x10] sm:%s328] %v345
                  %v347 = vld [vmem:[%s335 + $0x14] sm:%s328]
                  %348 = vst [vmem:[%s336 + $0x14] sm:%s328] %v347
                  %v349 = vld [vmem:[%s335 + $0x18] sm:%s328]
                  %350 = vst [vmem:[%s336 + $0x18] sm:%s328] %v349
                  %v351 = vld [vmem:[%s335 + $0x1c] sm:%s328]
                  %352 = vst [vmem:[%s336 + $0x1c] sm:%s328] %v351
                  %v353 = vld [vmem:[%s335 + $0x20] sm:%s328]
                  %354 = vst [vmem:[%s336 + $0x20] sm:%s328] %v353
                  %v355 = vld [vmem:[%s335 + $0x24] sm:%s328]
                  %356 = vst [vmem:[%s336 + $0x24] sm:%s328] %v355
                  %v357 = vld [vmem:[%s335 + $0x28] sm:%s328]
                  %358 = vst [vmem:[%s336 + $0x28] sm:%s328] %v357
                  %v359 = vld [vmem:[%s335 + $0x2c] sm:%s328]
                  %360 = vst [vmem:[%s336 + $0x2c] sm:%s328] %v359
                  %v361 = vld [vmem:[%s335 + $0x30] sm:%s328]
                  %362 = vst [vmem:[%s336 + $0x30] sm:%s328] %v361
                  %v363 = vld [vmem:[%s335 + $0x34] sm:%s328]
                  %364 = vst [vmem:[%s336 + $0x34] sm:%s328] %v363
                  %v365 = vld [vmem:[%s335 + $0x38] sm:%s328]
                  %366 = vst [vmem:[%s336 + $0x38] sm:%s328] %v365
                  %v367 = vld [vmem:[%s335 + $0x3c] sm:%s328]
                  %368 = vst [vmem:[%s336 + $0x3c] sm:%s328] %v367
                  %v369 = vld [vmem:[%s335 + $0x40] sm:%s328]
                  %370 = vst [vmem:[%s336 + $0x40] sm:%s328] %v369
                  %v371 = vld [vmem:[%s335 + $0x44] sm:%s328]
                  %372 = vst [vmem:[%s336 + $0x44] sm:%s328] %v371
                  %v373 = vld [vmem:[%s335 + $0x48] sm:%s328]
                  %374 = vst [vmem:[%s336 + $0x48] sm:%s328] %v373
                  %v375 = vld [vmem:[%s335 + $0x4c] sm:%s328]
                  %376 = vst [vmem:[%s336 + $0x4c] sm:%s328] %v375
                  %v377 = vld [vmem:[%s335 + $0xa0] sm:%s328]
                  %378 = vst [vmem:[%s336 + $0x50] sm:%s328] %v377
                  %v379 = vld [vmem:[%s335 + $0xa4] sm:%s328]
                  %380 = vst [vmem:[%s336 + $0x54] sm:%s328] %v379
                  %v381 = vld [vmem:[%s335 + $0xa8] sm:%s328]
                  %382 = vst [vmem:[%s336 + $0x58] sm:%s328] %v381
                  %v383 = vld [vmem:[%s335 + $0xac] sm:%s328]
                  %384 = vst [vmem:[%s336 + $0x5c] sm:%s328] %v383
                  %v385 = vld [vmem:[%s335 + $0xb0] sm:%s328]
                  %386 = vst [vmem:[%s336 + $0x60] sm:%s328] %v385
                  %v387 = vld [vmem:[%s335 + $0xb4] sm:%s328]
                  %388 = vst [vmem:[%s336 + $0x64] sm:%s328] %v387
                  %v389 = vld [vmem:[%s335 + $0xb8] sm:%s328]
                  %390 = vst [vmem:[%s336 + $0x68] sm:%s328] %v389
                  %v391 = vld [vmem:[%s335 + $0xbc] sm:%s328]
                  %392 = vst [vmem:[%s336 + $0x6c] sm:%s328] %v391
                  %v393 = vld [vmem:[%s335 + $0xc0] sm:%s328]
                  %394 = vst [vmem:[%s336 + $0x70] sm:%s328] %v393
                  %v395 = vld [vmem:[%s335 + $0xc4] sm:%s328]
                  %396 = vst [vmem:[%s336 + $0x74] sm:%s328] %v395
                  %v397 = vld [vmem:[%s335 + $0xc8] sm:%s328]
                  %398 = vst [vmem:[%s336 + $0x78] sm:%s328] %v397
                  %v399 = vld [vmem:[%s335 + $0xcc] sm:%s328]
                  %400 = vst [vmem:[%s336 + $0x7c] sm:%s328] %v399
                  %v401 = vld [vmem:[%s335 + $0xd0] sm:%s328]
                  %402 = vst [vmem:[%s336 + $0x80] sm:%s328] %v401
                  %v403 = vld [vmem:[%s335 + $0xd4] sm:%s328]
                  %404 = vst [vmem:[%s336 + $0x84] sm:%s328] %v403
                  %v405 = vld [vmem:[%s335 + $0xd8] sm:%s328]
                  %406 = vst [vmem:[%s336 + $0x88] sm:%s328] %v405
                  %v407 = vld [vmem:[%s335 + $0xdc] sm:%s328]
                  %408 = vst [vmem:[%s336 + $0x8c] sm:%s328] %v407
                  %v409 = vld [vmem:[%s335 + $0xe0] sm:%s328]
                  %410 = vst [vmem:[%s336 + $0x90] sm:%s328] %v409
                  %v411 = vld [vmem:[%s335 + $0xe4] sm:%s328]
                  %412 = vst [vmem:[%s336 + $0x94] sm:%s328] %v411
                  %v413 = vld [vmem:[%s335 + $0xe8] sm:%s328]
                  %414 = vst [vmem:[%s336 + $0x98] sm:%s328] %v413
                  %v415 = vld [vmem:[%s335 + $0xec] sm:%s328]
                  %416 = vst [vmem:[%s336 + $0x9c] sm:%s328] %v415
                  %v417 = vld [vmem:[%s335 + $0x140] sm:%s328]
                  %418 = vst [vmem:[%s336 + $0xa0] sm:%s328] %v417
                  %v419 = vld [vmem:[%s335 + $0x144] sm:%s328]
                  %420 = vst [vmem:[%s336 + $0xa4] sm:%s328] %v419
                  %v421 = vld [vmem:[%s335 + $0x148] sm:%s328]
                  %422 = vst [vmem:[%s336 + $0xa8] sm:%s328] %v421
                  %v423 = vld [vmem:[%s335 + $0x14c] sm:%s328]
                  %424 = vst [vmem:[%s336 + $0xac] sm:%s328] %v423
                  %v425 = vld [vmem:[%s335 + $0x150] sm:%s328]
                  %426 = vst [vmem:[%s336 + $0xb0] sm:%s328] %v425
                  %v427 = vld [vmem:[%s335 + $0x154] sm:%s328]
                  %428 = vst [vmem:[%s336 + $0xb4] sm:%s328] %v427
                  %v429 = vld [vmem:[%s335 + $0x158] sm:%s328]
                  %430 = vst [vmem:[%s336 + $0xb8] sm:%s328] %v429
                  %v431 = vld [vmem:[%s335 + $0x15c] sm:%s328]
                  %432 = vst [vmem:[%s336 + $0xbc] sm:%s328] %v431
                  %v433 = vld [vmem:[%s335 + $0x160] sm:%s328]
                  %434 = vst [vmem:[%s336 + $0xc0] sm:%s328] %v433
                  %v435 = vld [vmem:[%s335 + $0x164] sm:%s328]
                  %436 = vst [vmem:[%s336 + $0xc4] sm:%s328] %v435
                  %v437 = vld [vmem:[%s335 + $0x168] sm:%s328]
                  %438 = vst [vmem:[%s336 + $0xc8] sm:%s328] %v437
                  %v439 = vld [vmem:[%s335 + $0x16c] sm:%s328]
                  %440 = vst [vmem:[%s336 + $0xcc] sm:%s328] %v439
                  %v441 = vld [vmem:[%s335 + $0x170] sm:%s328]
                  %442 = vst [vmem:[%s336 + $0xd0] sm:%s328] %v441
                  %v443 = vld [vmem:[%s335 + $0x174] sm:%s328]
                  %444 = vst [vmem:[%s336 + $0xd4] sm:%s328] %v443
                  %v445 = vld [vmem:[%s335 + $0x178] sm:%s328]
                  %446 = vst [vmem:[%s336 + $0xd8] sm:%s328] %v445
                  %v447 = vld [vmem:[%s335 + $0x17c] sm:%s328]
                  %448 = vst [vmem:[%s336 + $0xdc] sm:%s328] %v447
                  %v449 = vld [vmem:[%s335 + $0x180] sm:%s328]
                  %450 = vst [vmem:[%s336 + $0xe0] sm:%s328] %v449
                  %v451 = vld [vmem:[%s335 + $0x184] sm:%s328]
                  %452 = vst [vmem:[%s336 + $0xe4] sm:%s328] %v451
                  %v453 = vld [vmem:[%s335 + $0x188] sm:%s328]
                  %454 = vst [vmem:[%s336 + $0xe8] sm:%s328] %v453
                  %v455 = vld [vmem:[%s335 + $0x18c] sm:%s328]
                  %456 = vst [vmem:[%s336 + $0xec] sm:%s328] %v455
                  %v457 = vld [vmem:[%s335 + $0x1e0] sm:%s328]
                  %458 = vst [vmem:[%s336 + $0xf0] sm:%s328] %v457
                  %v459 = vld [vmem:[%s335 + $0x1e4] sm:%s328]
                  %460 = vst [vmem:[%s336 + $0xf4] sm:%s328] %v459
                  %v461 = vld [vmem:[%s335 + $0x1e8] sm:%s328]
                  %462 = vst [vmem:[%s336 + $0xf8] sm:%s328] %v461
                  %v463 = vld [vmem:[%s335 + $0x1ec] sm:%s328]
                  %464 = vst [vmem:[%s336 + $0xfc] sm:%s328] %v463
                  %v465 = vld [vmem:[%s335 + $0x1f0] sm:%s328]
                  %466 = vst [vmem:[%s336 + $0x100] sm:%s328] %v465
                  %v467 = vld [vmem:[%s335 + $0x1f4] sm:%s328]
                  %468 = vst [vmem:[%s336 + $0x104] sm:%s328] %v467
                  %v469 = vld [vmem:[%s335 + $0x1f8] sm:%s328]
                  %470 = vst [vmem:[%s336 + $0x108] sm:%s328] %v469
                  %v471 = vld [vmem:[%s335 + $0x1fc] sm:%s328]
                  %472 = vst [vmem:[%s336 + $0x10c] sm:%s328] %v471
                  %v473 = vld [vmem:[%s335 + $0x200] sm:%s328]
                  %474 = vst [vmem:[%s336 + $0x110] sm:%s328] %v473
                  %v475 = vld [vmem:[%s335 + $0x204] sm:%s328]
                  %476 = vst [vmem:[%s336 + $0x114] sm:%s328] %v475
                  %v477 = vld [vmem:[%s335 + $0x208] sm:%s328]
                  %478 = vst [vmem:[%s336 + $0x118] sm:%s328] %v477
                  %v479 = vld [vmem:[%s335 + $0x20c] sm:%s328]
                  %480 = vst [vmem:[%s336 + $0x11c] sm:%s328] %v479
                  %v481 = vld [vmem:[%s335 + $0x210] sm:%s328]
                  %482 = vst [vmem:[%s336 + $0x120] sm:%s328] %v481
                  %v483 = vld [vmem:[%s335 + $0x214] sm:%s328]
                  %484 = vst [vmem:[%s336 + $0x124] sm:%s328] %v483
                  %v485 = vld [vmem:[%s335 + $0x218] sm:%s328]
                  %486 = vst [vmem:[%s336 + $0x128] sm:%s328] %v485
                  %v487 = vld [vmem:[%s335 + $0x21c] sm:%s328]
                  %488 = vst [vmem:[%s336 + $0x12c] sm:%s328] %v487
                  %v489 = vld [vmem:[%s335 + $0x220] sm:%s328]
                  %490 = vst [vmem:[%s336 + $0x130] sm:%s328] %v489
                  %v491 = vld [vmem:[%s335 + $0x224] sm:%s328]
                  %492 = vst [vmem:[%s336 + $0x134] sm:%s328] %v491
                  %v493 = vld [vmem:[%s335 + $0x228] sm:%s328]
                  %494 = vst [vmem:[%s336 + $0x138] sm:%s328] %v493
                  %v495 = vld [vmem:[%s335 + $0x22c] sm:%s328]
                  %496 = vst [vmem:[%s336 + $0x13c] sm:%s328] %v495
                $region59: #{_lambda_.8} parent=46 // loop_footer
                  %s334 = sadd.s32 1, %s330
                $region60: #{_lambda_.8} parent=46 // loop_footer_branch
                  %329 = sbr.rel target = $region56
                $region61: #{_lambda_.8} parent=46 // loop_exit
                  _
              $region47: #{_lambda_.8} parent=31 // pred_fallthru
                _
            $region32: #{_lambda_.8} parent=27 // pred_fallthru
              _
            // Predicated region
            $region33: #{_lambda_.8} parent=27 // pred_check
              _
            $region34: #{_lambda_.8} parent=27 // pred_check_branch
              %146 = sbr.rel (0) target = $region36
            $region35: #{_lambda_.8} parent=27 // pred_region
              %s148 = ssub.s32 16, 1
              loop: start=0, step=1, limit=1
              $region37: #{_lambda_.8} parent=35 // loop_pre_header
                _
              $region38: #{_lambda_.8} parent=35 // loop_header
                %s150 = sphi 0, %s154
                %p151 = scmp.ge.s32.totalorder %s150, 1
                %s155 = sphi %s140, %s140
                %s156 = sphi %s137, %s137
              $region39: #{_lambda_.8} parent=35 // loop_header_branch
                %153 = sbr.rel (%p151) target = $region43
              $region40: #{_lambda_.8} parent=35 // loop_body
                %v157 = vld [vmem:[%s155] sm:%s148]
                %158 = vst [vmem:[%s156] sm:%s148] %v157
                %v159 = vld [vmem:[%s155 + $0x4] sm:%s148]
                %160 = vst [vmem:[%s156 + $0x4] sm:%s148] %v159
                %v161 = vld [vmem:[%s155 + $0x8] sm:%s148]
                %162 = vst [vmem:[%s156 + $0x8] sm:%s148] %v161
                %v163 = vld [vmem:[%s155 + $0xc] sm:%s148]
                %164 = vst [vmem:[%s156 + $0xc] sm:%s148] %v163
                %v165 = vld [vmem:[%s155 + $0x10] sm:%s148]
                %166 = vst [vmem:[%s156 + $0x10] sm:%s148] %v165
                %v167 = vld [vmem:[%s155 + $0x14] sm:%s148]
                %168 = vst [vmem:[%s156 + $0x14] sm:%s148] %v167
                %v169 = vld [vmem:[%s155 + $0x18] sm:%s148]
                %170 = vst [vmem:[%s156 + $0x18] sm:%s148] %v169
                %v171 = vld [vmem:[%s155 + $0x1c] sm:%s148]
                %172 = vst [vmem:[%s156 + $0x1c] sm:%s148] %v171
                %v173 = vld [vmem:[%s155 + $0x20] sm:%s148]
                %174 = vst [vmem:[%s156 + $0x20] sm:%s148] %v173
                %v175 = vld [vmem:[%s155 + $0x24] sm:%s148]
                %176 = vst [vmem:[%s156 + $0x24] sm:%s148] %v175
                %v177 = vld [vmem:[%s155 + $0x28] sm:%s148]
                %178 = vst [vmem:[%s156 + $0x28] sm:%s148] %v177
                %v179 = vld [vmem:[%s155 + $0x2c] sm:%s148]
                %180 = vst [vmem:[%s156 + $0x2c] sm:%s148] %v179
                %v181 = vld [vmem:[%s155 + $0x30] sm:%s148]
                %182 = vst [vmem:[%s156 + $0x30] sm:%s148] %v181
                %v183 = vld [vmem:[%s155 + $0x34] sm:%s148]
                %184 = vst [vmem:[%s156 + $0x34] sm:%s148] %v183
                %v185 = vld [vmem:[%s155 + $0x38] sm:%s148]
                %186 = vst [vmem:[%s156 + $0x38] sm:%s148] %v185
                %v187 = vld [vmem:[%s155 + $0x3c] sm:%s148]
                %188 = vst [vmem:[%s156 + $0x3c] sm:%s148] %v187
                %v189 = vld [vmem:[%s155 + $0x40] sm:%s148]
                %190 = vst [vmem:[%s156 + $0x40] sm:%s148] %v189
                %v191 = vld [vmem:[%s155 + $0x44] sm:%s148]
                %192 = vst [vmem:[%s156 + $0x44] sm:%s148] %v191
                %v193 = vld [vmem:[%s155 + $0x48] sm:%s148]
                %194 = vst [vmem:[%s156 + $0x48] sm:%s148] %v193
                %v195 = vld [vmem:[%s155 + $0x4c] sm:%s148]
                %196 = vst [vmem:[%s156 + $0x4c] sm:%s148] %v195
                %v197 = vld [vmem:[%s155 + $0xa0] sm:%s148]
                %198 = vst [vmem:[%s156 + $0x50] sm:%s148] %v197
                %v199 = vld [vmem:[%s155 + $0xa4] sm:%s148]
                %200 = vst [vmem:[%s156 + $0x54] sm:%s148] %v199
                %v201 = vld [vmem:[%s155 + $0xa8] sm:%s148]
                %202 = vst [vmem:[%s156 + $0x58] sm:%s148] %v201
                %v203 = vld [vmem:[%s155 + $0xac] sm:%s148]
                %204 = vst [vmem:[%s156 + $0x5c] sm:%s148] %v203
                %v205 = vld [vmem:[%s155 + $0xb0] sm:%s148]
                %206 = vst [vmem:[%s156 + $0x60] sm:%s148] %v205
                %v207 = vld [vmem:[%s155 + $0xb4] sm:%s148]
                %208 = vst [vmem:[%s156 + $0x64] sm:%s148] %v207
                %v209 = vld [vmem:[%s155 + $0xb8] sm:%s148]
                %210 = vst [vmem:[%s156 + $0x68] sm:%s148] %v209
                %v211 = vld [vmem:[%s155 + $0xbc] sm:%s148]
                %212 = vst [vmem:[%s156 + $0x6c] sm:%s148] %v211
                %v213 = vld [vmem:[%s155 + $0xc0] sm:%s148]
                %214 = vst [vmem:[%s156 + $0x70] sm:%s148] %v213
                %v215 = vld [vmem:[%s155 + $0xc4] sm:%s148]
                %216 = vst [vmem:[%s156 + $0x74] sm:%s148] %v215
                %v217 = vld [vmem:[%s155 + $0xc8] sm:%s148]
                %218 = vst [vmem:[%s156 + $0x78] sm:%s148] %v217
                %v219 = vld [vmem:[%s155 + $0xcc] sm:%s148]
                %220 = vst [vmem:[%s156 + $0x7c] sm:%s148] %v219
                %v221 = vld [vmem:[%s155 + $0xd0] sm:%s148]
                %222 = vst [vmem:[%s156 + $0x80] sm:%s148] %v221
                %v223 = vld [vmem:[%s155 + $0xd4] sm:%s148]
                %224 = vst [vmem:[%s156 + $0x84] sm:%s148] %v223
                %v225 = vld [vmem:[%s155 + $0xd8] sm:%s148]
                %226 = vst [vmem:[%s156 + $0x88] sm:%s148] %v225
                %v227 = vld [vmem:[%s155 + $0xdc] sm:%s148]
                %228 = vst [vmem:[%s156 + $0x8c] sm:%s148] %v227
                %v229 = vld [vmem:[%s155 + $0xe0] sm:%s148]
                %230 = vst [vmem:[%s156 + $0x90] sm:%s148] %v229
                %v231 = vld [vmem:[%s155 + $0xe4] sm:%s148]
                %232 = vst [vmem:[%s156 + $0x94] sm:%s148] %v231
                %v233 = vld [vmem:[%s155 + $0xe8] sm:%s148]
                %234 = vst [vmem:[%s156 + $0x98] sm:%s148] %v233
                %v235 = vld [vmem:[%s155 + $0xec] sm:%s148]
                %236 = vst [vmem:[%s156 + $0x9c] sm:%s148] %v235
                %v237 = vld [vmem:[%s155 + $0x140] sm:%s148]
                %238 = vst [vmem:[%s156 + $0xa0] sm:%s148] %v237
                %v239 = vld [vmem:[%s155 + $0x144] sm:%s148]
                %240 = vst [vmem:[%s156 + $0xa4] sm:%s148] %v239
                %v241 = vld [vmem:[%s155 + $0x148] sm:%s148]
                %242 = vst [vmem:[%s156 + $0xa8] sm:%s148] %v241
                %v243 = vld [vmem:[%s155 + $0x14c] sm:%s148]
                %244 = vst [vmem:[%s156 + $0xac] sm:%s148] %v243
                %v245 = vld [vmem:[%s155 + $0x150] sm:%s148]
                %246 = vst [vmem:[%s156 + $0xb0] sm:%s148] %v245
                %v247 = vld [vmem:[%s155 + $0x154] sm:%s148]
                %248 = vst [vmem:[%s156 + $0xb4] sm:%s148] %v247
                %v249 = vld [vmem:[%s155 + $0x158] sm:%s148]
                %250 = vst [vmem:[%s156 + $0xb8] sm:%s148] %v249
                %v251 = vld [vmem:[%s155 + $0x15c] sm:%s148]
                %252 = vst [vmem:[%s156 + $0xbc] sm:%s148] %v251
                %v253 = vld [vmem:[%s155 + $0x160] sm:%s148]
                %254 = vst [vmem:[%s156 + $0xc0] sm:%s148] %v253
                %v255 = vld [vmem:[%s155 + $0x164] sm:%s148]
                %256 = vst [vmem:[%s156 + $0xc4] sm:%s148] %v255
                %v257 = vld [vmem:[%s155 + $0x168] sm:%s148]
                %258 = vst [vmem:[%s156 + $0xc8] sm:%s148] %v257
                %v259 = vld [vmem:[%s155 + $0x16c] sm:%s148]
                %260 = vst [vmem:[%s156 + $0xcc] sm:%s148] %v259
                %v261 = vld [vmem:[%s155 + $0x170] sm:%s148]
                %262 = vst [vmem:[%s156 + $0xd0] sm:%s148] %v261
                %v263 = vld [vmem:[%s155 + $0x174] sm:%s148]
                %264 = vst [vmem:[%s156 + $0xd4] sm:%s148] %v263
                %v265 = vld [vmem:[%s155 + $0x178] sm:%s148]
                %266 = vst [vmem:[%s156 + $0xd8] sm:%s148] %v265
                %v267 = vld [vmem:[%s155 + $0x17c] sm:%s148]
                %268 = vst [vmem:[%s156 + $0xdc] sm:%s148] %v267
                %v269 = vld [vmem:[%s155 + $0x180] sm:%s148]
                %270 = vst [vmem:[%s156 + $0xe0] sm:%s148] %v269
                %v271 = vld [vmem:[%s155 + $0x184] sm:%s148]
                %272 = vst [vmem:[%s156 + $0xe4] sm:%s148] %v271
                %v273 = vld [vmem:[%s155 + $0x188] sm:%s148]
                %274 = vst [vmem:[%s156 + $0xe8] sm:%s148] %v273
                %v275 = vld [vmem:[%s155 + $0x18c] sm:%s148]
                %276 = vst [vmem:[%s156 + $0xec] sm:%s148] %v275
                %v277 = vld [vmem:[%s155 + $0x1e0] sm:%s148]
                %278 = vst [vmem:[%s156 + $0xf0] sm:%s148] %v277
                %v279 = vld [vmem:[%s155 + $0x1e4] sm:%s148]
                %280 = vst [vmem:[%s156 + $0xf4] sm:%s148] %v279
                %v281 = vld [vmem:[%s155 + $0x1e8] sm:%s148]
                %282 = vst [vmem:[%s156 + $0xf8] sm:%s148] %v281
                %v283 = vld [vmem:[%s155 + $0x1ec] sm:%s148]
                %284 = vst [vmem:[%s156 + $0xfc] sm:%s148] %v283
                %v285 = vld [vmem:[%s155 + $0x1f0] sm:%s148]
                %286 = vst [vmem:[%s156 + $0x100] sm:%s148] %v285
                %v287 = vld [vmem:[%s155 + $0x1f4] sm:%s148]
                %288 = vst [vmem:[%s156 + $0x104] sm:%s148] %v287
                %v289 = vld [vmem:[%s155 + $0x1f8] sm:%s148]
                %290 = vst [vmem:[%s156 + $0x108] sm:%s148] %v289
                %v291 = vld [vmem:[%s155 + $0x1fc] sm:%s148]
                %292 = vst [vmem:[%s156 + $0x10c] sm:%s148] %v291
                %v293 = vld [vmem:[%s155 + $0x200] sm:%s148]
                %294 = vst [vmem:[%s156 + $0x110] sm:%s148] %v293
                %v295 = vld [vmem:[%s155 + $0x204] sm:%s148]
                %296 = vst [vmem:[%s156 + $0x114] sm:%s148] %v295
                %v297 = vld [vmem:[%s155 + $0x208] sm:%s148]
                %298 = vst [vmem:[%s156 + $0x118] sm:%s148] %v297
                %v299 = vld [vmem:[%s155 + $0x20c] sm:%s148]
                %300 = vst [vmem:[%s156 + $0x11c] sm:%s148] %v299
                %v301 = vld [vmem:[%s155 + $0x210] sm:%s148]
                %302 = vst [vmem:[%s156 + $0x120] sm:%s148] %v301
                %v303 = vld [vmem:[%s155 + $0x214] sm:%s148]
                %304 = vst [vmem:[%s156 + $0x124] sm:%s148] %v303
                %v305 = vld [vmem:[%s155 + $0x218] sm:%s148]
                %306 = vst [vmem:[%s156 + $0x128] sm:%s148] %v305
                %v307 = vld [vmem:[%s155 + $0x21c] sm:%s148]
                %308 = vst [vmem:[%s156 + $0x12c] sm:%s148] %v307
                %v309 = vld [vmem:[%s155 + $0x220] sm:%s148]
                %310 = vst [vmem:[%s156 + $0x130] sm:%s148] %v309
                %v311 = vld [vmem:[%s155 + $0x224] sm:%s148]
                %312 = vst [vmem:[%s156 + $0x134] sm:%s148] %v311
                %v313 = vld [vmem:[%s155 + $0x228] sm:%s148]
                %314 = vst [vmem:[%s156 + $0x138] sm:%s148] %v313
                %v315 = vld [vmem:[%s155 + $0x22c] sm:%s148]
                %316 = vst [vmem:[%s156 + $0x13c] sm:%s148] %v315
              $region41: #{_lambda_.8} parent=35 // loop_footer
                %s154 = sadd.s32 1, %s150
              $region42: #{_lambda_.8} parent=35 // loop_footer_branch
                %149 = sbr.rel target = $region38
              $region43: #{_lambda_.8} parent=35 // loop_exit
                _
            $region36: #{_lambda_.8} parent=27 // pred_fallthru
              _
          $region28: #{_lambda_.8} parent=23 // pred_fallthru
            _
          %497 = vnop
        $region24: #{_lambda_.8} parent=19 // pred_fallthru
          _
      $region20: #{_lambda_.8} parent=5 // pred_fallthru
        _
      %p498 = scmp.le.s32.totalorder 1, %s10
      %p499 = scmp.lt.s32.totalorder %s10, 3
      %p500 = pnand %p498, %p499
      %p501 = pneg %p500
      // Predicated region
      $region62: #{_lambda_.8} parent=5 // pred_check
        _
      $region63: #{_lambda_.8} parent=5 // pred_check_branch
        %503 = sbr.rel (%p500) target = $region65
      $region64: #{_lambda_.8} parent=5 // pred_region
        %s504 = ssub.s32 %s10, 1
        %s505 = sand.u32 %s23, 1
        %s506 = sand.u32 %s23, 1
        %s507 = smul.addr %s506, 320
        %s508 = scalar_lea.vmem [#allocation3], %s507
        // Predicated region
        $region66: #{_lambda_.8} parent=64 // pred_check
          %p509 = pneg %p36
        $region67: #{_lambda_.8} parent=64 // pred_check_branch
          %511 = sbr.rel (%p509) target = $region69
        $region68: #{_lambda_.8} parent=64 // pred_region
          _
        $region69: #{_lambda_.8} parent=64 // pred_fallthru
          _
        %s512 = sand.u32 %s23, 1
        %s513 = sand.u32 %s23, 1
        %s514 = smul.addr %s513, 320
        %s515 = scalar_lea.vmem [#allocation3], %s514
        %p516 = pneg %p36
        %p517 = pneg %p33
        %p518 = pneg %p57
        %p519 = pneg %p54
        %p520 = pneg %p83
        %p521 = pneg %p80
        %p522 = scmp.lt.s32.totalorder %s15, 1
        %s523 = scalar_select %p522, %s15, 1
        %s524 = smul.addr %s523, 8
        %s525 = smul.addr %s524, 8
        %s526 = scalar_lea.vmem %s2, %s525
        %p527 = pneg %p109
        %p528 = pneg %p106
        %p529 = scmp.lt.s32.totalorder %s15, 1
        %s530 = scalar_select %p529, %s15, 1
        %s531 = smul.addr %s530, 8
        %s532 = scalar_lea.vmem %s3, %s531
        %p533 = scmp.lt.s32.totalorder %s15, 1
        %s534 = scalar_select %p533, %s15, 1
        %s535 = smul.addr %s534, 8
        %s536 = smul.addr %s535, 8
        %s537 = scalar_lea.vmem %s2, %s536
        %p538 = scmp.lt.s32.totalorder %s15, 1
        %s539 = scalar_select %p538, %s15, 1
        %s540 = smul.addr %s539, 8
        %s541 = scalar_lea.vmem %s3, %s540
        %543 = vst [vmem:[#allocation2] sm:$0xff] 0.0
        %544 = vst [vmem:[#allocation2 + $0x8] sm:$0xff] 0.0
        %545 = vst [vmem:[#allocation2 + $0x10] sm:$0xff] 0.0
        %546 = vst [vmem:[#allocation2 + $0x18] sm:$0xff] 0.0
        %547 = vst [vmem:[#allocation2 + $0x20] sm:$0xff] 0.0
        %548 = vst [vmem:[#allocation2 + $0x28] sm:$0xff] 0.0
        %549 = vst [vmem:[#allocation2 + $0x30] sm:$0xff] 0.0
        %550 = vst [vmem:[#allocation2 + $0x38] sm:$0xff] 0.0
        %v551 = vld [vmem:[%s508] sm:$0xf]
        %v552 = vld [vmem:[%s508 + $0x8] sm:$0xf]
        %v553 = vld [vmem:[%s508 + $0x10] sm:$0xf]
        %v554 = vld [vmem:[%s508 + $0x18] sm:$0xf]
        %v555 = vld [vmem:[%s508 + $0x20] sm:$0xf]
        %v556 = vld [vmem:[%s508 + $0x28] sm:$0xf]
        %v557 = vld [vmem:[%s508 + $0x30] sm:$0xf]
        %v558 = vld [vmem:[%s508 + $0x38] sm:$0xf]
        %v559 = vld [vmem:[#allocation2] sm:$0xff]
        %v560 = vld [vmem:[#allocation2 + $0x8] sm:$0xff]
        %v561 = vld [vmem:[#allocation2 + $0x10] sm:$0xff]
        %v562 = vld [vmem:[#allocation2 + $0x18] sm:$0xff]
        %v563 = vld [vmem:[#allocation2 + $0x20] sm:$0xff]
        %v564 = vld [vmem:[#allocation2 + $0x28] sm:$0xff]
        %v565 = vld [vmem:[#allocation2 + $0x30] sm:$0xff]
        %v566 = vld [vmem:[#allocation2 + $0x38] sm:$0xff]
        %v567 = vld [vmem:[%s1] sm:$0xf]
        %v568 = vld [vmem:[%s1 + $0x4] sm:$0xf]
        %v569 = vld [vmem:[%s1 + $0x8] sm:$0xf]
        %v570 = vld [vmem:[%s1 + $0xc] sm:$0xf]
        %v571 = vld [vmem:[%s1 + $0x10] sm:$0xf]
        %v572 = vld [vmem:[%s1 + $0x14] sm:$0xf]
        %v573 = vld [vmem:[%s1 + $0x18] sm:$0xf]
        %v574 = vld [vmem:[%s1 + $0x1c] sm:$0xf]
        %v575 = vld [vmem:[%s1 + $0x20] sm:$0xf]
        %v576 = vld [vmem:[%s1 + $0x24] sm:$0xf]
        %v577 = vld [vmem:[%s1 + $0x28] sm:$0xf]
        %v578 = vld [vmem:[%s1 + $0x2c] sm:$0xf]
        %v579 = vld [vmem:[%s1 + $0x30] sm:$0xf]
        %v580 = vld [vmem:[%s1 + $0x34] sm:$0xf]
        %v581 = vld [vmem:[%s1 + $0x38] sm:$0xf]
        %v582 = vld [vmem:[%s1 + $0x3c] sm:$0xf]
        %v591 = vunpack.c.l.b16 %v551
        %v592 = vunpack.c.l.b16 %v552
        %v593 = vunpack.c.l.b16 %v553
        %v594 = vunpack.c.l.b16 %v554
        %v595 = vunpack.c.l.b16 %v555
        %v596 = vunpack.c.l.b16 %v556
        %v597 = vunpack.c.l.b16 %v557
        %v598 = vunpack.c.l.b16 %v558
        %v599 = vpack.c.b16 %v592, %v591
        %v600 = vpack.c.b16 %v594, %v593
        %v601 = vpack.c.b16 %v596, %v595
        %v602 = vpack.c.b16 %v598, %v597
        %v623 = vunpack.c.l.b16 %v567
        %v624 = vunpack.c.l.b16 %v568
        %v625 = vunpack.c.l.b16 %v569
        %v626 = vunpack.c.l.b16 %v570
        %v627 = vunpack.c.l.b16 %v571
        %v628 = vunpack.c.l.b16 %v572
        %v629 = vunpack.c.l.b16 %v573
        %v630 = vunpack.c.l.b16 %v574
        %v631 = vunpack.c.l.b16 %v575
        %v632 = vunpack.c.l.b16 %v576
        %v633 = vunpack.c.l.b16 %v577
        %v634 = vunpack.c.l.b16 %v578
        %v635 = vunpack.c.l.b16 %v579
        %v636 = vunpack.c.l.b16 %v580
        %v637 = vunpack.c.l.b16 %v581
        %v638 = vunpack.c.l.b16 %v582
        %v639 = vpack.c.b16 %v624, %v623
        %v640 = vpack.c.b16 %v626, %v625
        %v641 = vpack.c.b16 %v628, %v627
        %v642 = vpack.c.b16 %v630, %v629
        %v643 = vpack.c.b16 %v632, %v631
        %v644 = vpack.c.b16 %v634, %v633
        %v645 = vpack.c.b16 %v636, %v635
        %v646 = vpack.c.b16 %v638, %v637
        %655 = vmatprep.subr.bf16.mxu0 0
        %656 = vmatpush1.bf16.msra.mxu0 %v646
        %657 = vmatprep.subr.bf16.mxu0 0
        %658 = vmatpush1.bf16.msra.mxu0 %v645
        %659 = vmatprep.subr.bf16.mxu0 0
        %660 = vmatpush1.bf16.msra.mxu0 %v644
        %661 = vmatprep.subr.bf16.mxu0 0
        %662 = vmatpush1.bf16.msra.mxu0 %v643
        %663 = vmatprep.subr.bf16.mxu0 0
        %664 = vmatpush1.bf16.msra.mxu0 %v642
        %665 = vmatprep.subr.bf16.mxu0 0
        %666 = vmatpush1.bf16.msra.mxu0 %v641
        %667 = vmatprep.subr.bf16.mxu0 0
        %668 = vmatpush1.bf16.msra.mxu0 %v640
        %669 = vmatprep.subr.bf16.mxu0 0
        %670 = vmatpush1.bf16.msra.mxu0 %v639
        %671 = vmatprep.subr.bf16.mxu0 0
        %672 = vmatpush2.bf16.msra.mxu0 0
        %673 = vmatprep.subr.bf16.mxu0 0
        %674 = vmatpush2.bf16.msra.mxu0 0
        %675 = vmatprep.subr.bf16.mxu0 0
        %676 = vmatpush2.bf16.msra.mxu0 0
        %677 = vmatprep.subr.bf16.mxu0 0
        %678 = vmatpush2.bf16.msra.mxu0 0
        %679 = vmatprep.subr.bf16.mxu0 0
        %680 = vmatpush2.bf16.msra.mxu0 0
        %681 = vmatprep.subr.bf16.mxu0 0
        %682 = vmatpush2.bf16.msra.mxu0 0
        %683 = vmatprep.subr.bf16.mxu0 0
        %684 = vmatpush2.bf16.msra.mxu0 0
        %685 = vmatprep.subr.bf16.mxu0 0
        %686 = vmatpush2.bf16.msra.mxu0 0
        %687 = vmatprep.mubr.bf16.mxu0 0
        %688 = vmatmul.mubr.bf16.gmra.mxu0 %v599
        %v689 = vpop.f32.mrf.mxu0
        %v690 = vadd.f32 0.0, %v689
        %v691 = vpop.f32.mrf.mxu0
        %v692 = vpop.f32.mrf.mxu0
        %v693 = vadd.f32 0.0, %v692
        %v694 = vpop.f32.mrf.mxu0
        %695 = vmatprep.mubr.bf16.mxu0 0
        %696 = vmatmul.mubr.bf16.gmra.mxu0 %v600
        %v697 = vpop.f32.mrf.mxu0
        %v698 = vadd.f32 0.0, %v697
        %v699 = vpop.f32.mrf.mxu0
        %v700 = vpop.f32.mrf.mxu0
        %v701 = vadd.f32 0.0, %v700
        %v702 = vpop.f32.mrf.mxu0
        %703 = vmatprep.mubr.bf16.mxu0 0
        %704 = vmatmul.mubr.bf16.gmra.mxu0 %v601
        %v705 = vpop.f32.mrf.mxu0
        %v706 = vadd.f32 0.0, %v705
        %v707 = vpop.f32.mrf.mxu0
        %v708 = vpop.f32.mrf.mxu0
        %v709 = vadd.f32 0.0, %v708
        %v710 = vpop.f32.mrf.mxu0
        %711 = vmatprep.mubr.bf16.mxu0 0
        %712 = vmatmul.mubr.bf16.gmra.mxu0 %v602
        %v713 = vpop.f32.mrf.mxu0
        %v714 = vadd.f32 0.0, %v713
        %v715 = vpop.f32.mrf.mxu0
        %v716 = vpop.f32.mrf.mxu0
        %v717 = vadd.f32 0.0, %v716
        %v718 = vpop.f32.mrf.mxu0
        %719 = vdwg.mxu0
        %v720 = vadd.f32 %v559, %v690
        %v721 = vadd.f32 %v560, %v693
        %v722 = vadd.f32 %v561, %v698
        %v723 = vadd.f32 %v562, %v701
        %v724 = vadd.f32 %v563, %v706
        %v725 = vadd.f32 %v564, %v709
        %v726 = vadd.f32 %v565, %v714
        %v727 = vadd.f32 %v566, %v717
        %728 = vst [vmem:[#allocation2] sm:$0xff] %v720
        %729 = vst [vmem:[#allocation2 + $0x8] sm:$0xff] %v721
        %730 = vst [vmem:[#allocation2 + $0x10] sm:$0xff] %v722
        %731 = vst [vmem:[#allocation2 + $0x18] sm:$0xff] %v723
        %732 = vst [vmem:[#allocation2 + $0x20] sm:$0xff] %v724
        %733 = vst [vmem:[#allocation2 + $0x28] sm:$0xff] %v725
        %734 = vst [vmem:[#allocation2 + $0x30] sm:$0xff] %v726
        %735 = vst [vmem:[#allocation2 + $0x38] sm:$0xff] %v727
        %s736 = scalar_lea.vmem %s508, 80 [#allocation3]
        %v737 = vld [vmem:[%s736] sm:$0xf]
        %v738 = vld [vmem:[%s736 + $0x8] sm:$0xf]
        %v739 = vld [vmem:[%s736 + $0x10] sm:$0xf]
        %v740 = vld [vmem:[%s736 + $0x18] sm:$0xf]
        %v741 = vld [vmem:[%s736 + $0x20] sm:$0xf]
        %v742 = vld [vmem:[%s736 + $0x28] sm:$0xf]
        %v743 = vld [vmem:[%s736 + $0x30] sm:$0xf]
        %v744 = vld [vmem:[%s736 + $0x38] sm:$0xf]
        %v745 = vld [vmem:[#allocation2] sm:$0xff]
        %v746 = vld [vmem:[#allocation2 + $0x8] sm:$0xff]
        %v747 = vld [vmem:[#allocation2 + $0x10] sm:$0xff]
        %v748 = vld [vmem:[#allocation2 + $0x18] sm:$0xff]
        %v749 = vld [vmem:[#allocation2 + $0x20] sm:$0xff]
        %v750 = vld [vmem:[#allocation2 + $0x28] sm:$0xff]
        %v751 = vld [vmem:[#allocation2 + $0x30] sm:$0xff]
        %v752 = vld [vmem:[#allocation2 + $0x38] sm:$0xff]
        %s753 = scalar_lea.vmem %s1, 64
        %v754 = vld [vmem:[%s753] sm:$0xf]
        %v755 = vld [vmem:[%s753 + $0x4] sm:$0xf]
        %v756 = vld [vmem:[%s753 + $0x8] sm:$0xf]
        %v757 = vld [vmem:[%s753 + $0xc] sm:$0xf]
        %v758 = vld [vmem:[%s753 + $0x10] sm:$0xf]
        %v759 = vld [vmem:[%s753 + $0x14] sm:$0xf]
        %v760 = vld [vmem:[%s753 + $0x18] sm:$0xf]
        %v761 = vld [vmem:[%s753 + $0x1c] sm:$0xf]
        %v762 = vld [vmem:[%s753 + $0x20] sm:$0xf]
        %v763 = vld [vmem:[%s753 + $0x24] sm:$0xf]
        %v764 = vld [vmem:[%s753 + $0x28] sm:$0xf]
        %v765 = vld [vmem:[%s753 + $0x2c] sm:$0xf]
        %v766 = vld [vmem:[%s753 + $0x30] sm:$0xf]
        %v767 = vld [vmem:[%s753 + $0x34] sm:$0xf]
        %v768 = vld [vmem:[%s753 + $0x38] sm:$0xf]
        %v769 = vld [vmem:[%s753 + $0x3c] sm:$0xf]
        %v778 = vunpack.c.l.b16 %v737
        %v779 = vunpack.c.l.b16 %v738
        %v780 = vunpack.c.l.b16 %v739
        %v781 = vunpack.c.l.b16 %v740
        %v782 = vunpack.c.l.b16 %v741
        %v783 = vunpack.c.l.b16 %v742
        %v784 = vunpack.c.l.b16 %v743
        %v785 = vunpack.c.l.b16 %v744
        %v786 = vpack.c.b16 %v779, %v778
        %v787 = vpack.c.b16 %v781, %v780
        %v788 = vpack.c.b16 %v783, %v782
        %v789 = vpack.c.b16 %v785, %v784
        %v810 = vunpack.c.l.b16 %v754
        %v811 = vunpack.c.l.b16 %v755
        %v812 = vunpack.c.l.b16 %v756
        %v813 = vunpack.c.l.b16 %v757
        %v814 = vunpack.c.l.b16 %v758
        %v815 = vunpack.c.l.b16 %v759
        %v816 = vunpack.c.l.b16 %v760
        %v817 = vunpack.c.l.b16 %v761
        %v818 = vunpack.c.l.b16 %v762
        %v819 = vunpack.c.l.b16 %v763
        %v820 = vunpack.c.l.b16 %v764
        %v821 = vunpack.c.l.b16 %v765
        %v822 = vunpack.c.l.b16 %v766
        %v823 = vunpack.c.l.b16 %v767
        %v824 = vunpack.c.l.b16 %v768
        %v825 = vunpack.c.l.b16 %v769
        %v826 = vpack.c.b16 %v811, %v810
        %v827 = vpack.c.b16 %v813, %v812
        %v828 = vpack.c.b16 %v815, %v814
        %v829 = vpack.c.b16 %v817, %v816
        %v830 = vpack.c.b16 %v819, %v818
        %v831 = vpack.c.b16 %v821, %v820
        %v832 = vpack.c.b16 %v823, %v822
        %v833 = vpack.c.b16 %v825, %v824
        %842 = vmatprep.subr.bf16.mxu0 0
        %843 = vmatpush1.bf16.msra.mxu0 %v833
        %844 = vmatprep.subr.bf16.mxu0 0
        %845 = vmatpush1.bf16.msra.mxu0 %v832
        %846 = vmatprep.subr.bf16.mxu0 0
        %847 = vmatpush1.bf16.msra.mxu0 %v831
        %848 = vmatprep.subr.bf16.mxu0 0
        %849 = vmatpush1.bf16.msra.mxu0 %v830
        %850 = vmatprep.subr.bf16.mxu0 0
        %851 = vmatpush1.bf16.msra.mxu0 %v829
        %852 = vmatprep.subr.bf16.mxu0 0
        %853 = vmatpush1.bf16.msra.mxu0 %v828
        %854 = vmatprep.subr.bf16.mxu0 0
        %855 = vmatpush1.bf16.msra.mxu0 %v827
        %856 = vmatprep.subr.bf16.mxu0 0
        %857 = vmatpush1.bf16.msra.mxu0 %v826
        %858 = vmatprep.subr.bf16.mxu0 0
        %859 = vmatpush2.bf16.msra.mxu0 0
        %860 = vmatprep.subr.bf16.mxu0 0
        %861 = vmatpush2.bf16.msra.mxu0 0
        %862 = vmatprep.subr.bf16.mxu0 0
        %863 = vmatpush2.bf16.msra.mxu0 0
        %864 = vmatprep.subr.bf16.mxu0 0
        %865 = vmatpush2.bf16.msra.mxu0 0
        %866 = vmatprep.subr.bf16.mxu0 0
        %867 = vmatpush2.bf16.msra.mxu0 0
        %868 = vmatprep.subr.bf16.mxu0 0
        %869 = vmatpush2.bf16.msra.mxu0 0
        %870 = vmatprep.subr.bf16.mxu0 0
        %871 = vmatpush2.bf16.msra.mxu0 0
        %872 = vmatprep.subr.bf16.mxu0 0
        %873 = vmatpush2.bf16.msra.mxu0 0
        %874 = vmatprep.mubr.bf16.mxu0 0
        %875 = vmatmul.mubr.bf16.gmra.mxu0 %v786
        %v876 = vpop.f32.mrf.mxu0
        %v877 = vadd.f32 0.0, %v876
        %v878 = vpop.f32.mrf.mxu0
        %v879 = vpop.f32.mrf.mxu0
        %v880 = vadd.f32 0.0, %v879
        %v881 = vpop.f32.mrf.mxu0
        %882 = vmatprep.mubr.bf16.mxu0 0
        %883 = vmatmul.mubr.bf16.gmra.mxu0 %v787
        %v884 = vpop.f32.mrf.mxu0
        %v885 = vadd.f32 0.0, %v884
        %v886 = vpop.f32.mrf.mxu0
        %v887 = vpop.f32.mrf.mxu0
        %v888 = vadd.f32 0.0, %v887
        %v889 = vpop.f32.mrf.mxu0
        %890 = vmatprep.mubr.bf16.mxu0 0
        %891 = vmatmul.mubr.bf16.gmra.mxu0 %v788
        %v892 = vpop.f32.mrf.mxu0
        %v893 = vadd.f32 0.0, %v892
        %v894 = vpop.f32.mrf.mxu0
        %v895 = vpop.f32.mrf.mxu0
        %v896 = vadd.f32 0.0, %v895
        %v897 = vpop.f32.mrf.mxu0
        %898 = vmatprep.mubr.bf16.mxu0 0
        %899 = vmatmul.mubr.bf16.gmra.mxu0 %v789
        %v900 = vpop.f32.mrf.mxu0
        %v901 = vadd.f32 0.0, %v900
        %v902 = vpop.f32.mrf.mxu0
        %v903 = vpop.f32.mrf.mxu0
        %v904 = vadd.f32 0.0, %v903
        %v905 = vpop.f32.mrf.mxu0
        %906 = vdwg.mxu0
        %v907 = vadd.f32 %v745, %v877
        %v908 = vadd.f32 %v746, %v880
        %v909 = vadd.f32 %v747, %v885
        %v910 = vadd.f32 %v748, %v888
        %v911 = vadd.f32 %v749, %v893
        %v912 = vadd.f32 %v750, %v896
        %v913 = vadd.f32 %v751, %v901
        %v914 = vadd.f32 %v752, %v904
        %915 = vst [vmem:[#allocation2] sm:$0xff] %v907
        %916 = vst [vmem:[#allocation2 + $0x8] sm:$0xff] %v908
        %917 = vst [vmem:[#allocation2 + $0x10] sm:$0xff] %v909
        %918 = vst [vmem:[#allocation2 + $0x18] sm:$0xff] %v910
        %919 = vst [vmem:[#allocation2 + $0x20] sm:$0xff] %v911
        %920 = vst [vmem:[#allocation2 + $0x28] sm:$0xff] %v912
        %921 = vst [vmem:[#allocation2 + $0x30] sm:$0xff] %v913
        %922 = vst [vmem:[#allocation2 + $0x38] sm:$0xff] %v914
        %v923 = vld [vmem:[%s508] sm:$0xf]
        %v924 = vld [vmem:[%s508 + $0x4] sm:$0x1]
        %v925 = vld [vmem:[%s508 + $0x8] sm:$0xf]
        %v926 = vld [vmem:[%s508 + $0xc] sm:$0x1]
        %v927 = vld [vmem:[%s508 + $0x10] sm:$0xf]
        %v928 = vld [vmem:[%s508 + $0x14] sm:$0x1]
        %v929 = vld [vmem:[%s508 + $0x18] sm:$0xf]
        %v930 = vld [vmem:[%s508 + $0x1c] sm:$0x1]
        %v931 = vld [vmem:[%s508 + $0x20] sm:$0xf]
        %v932 = vld [vmem:[%s508 + $0x24] sm:$0x1]
        %v933 = vld [vmem:[%s508 + $0x28] sm:$0xf]
        %v934 = vld [vmem:[%s508 + $0x2c] sm:$0x1]
        %v935 = vld [vmem:[%s508 + $0x30] sm:$0xf]
        %v936 = vld [vmem:[%s508 + $0x34] sm:$0x1]
        %v937 = vld [vmem:[%s508 + $0x38] sm:$0xf]
        %v938 = vld [vmem:[%s508 + $0x3c] sm:$0x1]
        %vm939 = vsmask.f32 3328
        %vm940 = vsmask.f32 7440
        %vm941 = vmor %vm939, %vm940
        %v943 = vshrl.u32 %v923, 16
        %v945 = vrot.slane %v943, 4
        %v946 = vshll.u32 %v923, 16
        %v948 = vrot.slane %v946, 5
        %v949 = vor.u32 %v945, %v948
        %v950 = vrot.slane %v949, 4
        %v952 = vshll.u32 %v924, 16
        %v954 = vrot.slane %v952, 5
        %v955 = vsel %vm941, %v950, %v954
        %v957 = vshrl.u32 %v925, 16
        %v959 = vrot.slane %v957, 4
        %v960 = vshll.u32 %v925, 16
        %v962 = vrot.slane %v960, 5
        %v963 = vor.u32 %v959, %v962
        %v964 = vrot.slane %v963, 4
        %v966 = vshll.u32 %v926, 16
        %v968 = vrot.slane %v966, 5
        %v969 = vsel %vm941, %v964, %v968
        %v971 = vshrl.u32 %v927, 16
        %v973 = vrot.slane %v971, 4
        %v974 = vshll.u32 %v927, 16
        %v976 = vrot.slane %v974, 5
        %v977 = vor.u32 %v973, %v976
        %v978 = vrot.slane %v977, 4
        %v980 = vshll.u32 %v928, 16
        %v982 = vrot.slane %v980, 5
        %v983 = vsel %vm941, %v978, %v982
        %v985 = vshrl.u32 %v929, 16
        %v987 = vrot.slane %v985, 4
        %v988 = vshll.u32 %v929, 16
        %v990 = vrot.slane %v988, 5
        %v991 = vor.u32 %v987, %v990
        %v992 = vrot.slane %v991, 4
        %v994 = vshll.u32 %v930, 16
        %v996 = vrot.slane %v994, 5
        %v997 = vsel %vm941, %v992, %v996
        %v999 = vshrl.u32 %v931, 16
        %v1001 = vrot.slane %v999, 4
        %v1002 = vshll.u32 %v931, 16
        %v1004 = vrot.slane %v1002, 5
        %v1005 = vor.u32 %v1001, %v1004
        %v1006 = vrot.slane %v1005, 4
        %v1008 = vshll.u32 %v932, 16
        %v1010 = vrot.slane %v1008, 5
        %v1011 = vsel %vm941, %v1006, %v1010
        %v1013 = vshrl.u32 %v933, 16
        %v1015 = vrot.slane %v1013, 4
        %v1016 = vshll.u32 %v933, 16
        %v1018 = vrot.slane %v1016, 5
        %v1019 = vor.u32 %v1015, %v1018
        %v1020 = vrot.slane %v1019, 4
        %v1022 = vshll.u32 %v934, 16
        %v1024 = vrot.slane %v1022, 5
        %v1025 = vsel %vm941, %v1020, %v1024
        %v1027 = vshrl.u32 %v935, 16
        %v1029 = vrot.slane %v1027, 4
        %v1030 = vshll.u32 %v935, 16
        %v1032 = vrot.slane %v1030, 5
        %v1033 = vor.u32 %v1029, %v1032
        %v1034 = vrot.slane %v1033, 4
        %v1036 = vshll.u32 %v936, 16
        %v1038 = vrot.slane %v1036, 5
        %v1039 = vsel %vm941, %v1034, %v1038
        %v1041 = vshrl.u32 %v937, 16
        %v1043 = vrot.slane %v1041, 4
        %v1044 = vshll.u32 %v937, 16
        %v1046 = vrot.slane %v1044, 5
        %v1047 = vor.u32 %v1043, %v1046
        %v1048 = vrot.slane %v1047, 4
        %v1050 = vshll.u32 %v938, 16
        %v1052 = vrot.slane %v1050, 5
        %v1053 = vsel %vm941, %v1048, %v1052
        %v1054 = vld [vmem:[#allocation2] sm:$0xff]
        %v1055 = vld [vmem:[#allocation2 + $0x8] sm:$0xff]
        %v1056 = vld [vmem:[#allocation2 + $0x10] sm:$0xff]
        %v1057 = vld [vmem:[#allocation2 + $0x18] sm:$0xff]
        %v1058 = vld [vmem:[#allocation2 + $0x20] sm:$0xff]
        %v1059 = vld [vmem:[#allocation2 + $0x28] sm:$0xff]
        %v1060 = vld [vmem:[#allocation2 + $0x30] sm:$0xff]
        %v1061 = vld [vmem:[#allocation2 + $0x38] sm:$0xff]
        %s1062 = scalar_lea.vmem %s1, 128
        %v1063 = vld [vmem:[%s1062] sm:$0xf]
        %v1064 = vld [vmem:[%s1062 + $0x4] sm:$0xf]
        %v1065 = vld [vmem:[%s1062 + $0x8] sm:$0xf]
        %v1066 = vld [vmem:[%s1062 + $0xc] sm:$0xf]
        %v1067 = vld [vmem:[%s1062 + $0x10] sm:$0xf]
        %v1068 = vld [vmem:[%s1062 + $0x14] sm:$0xf]
        %v1069 = vld [vmem:[%s1062 + $0x18] sm:$0xf]
        %v1070 = vld [vmem:[%s1062 + $0x1c] sm:$0xf]
        %v1071 = vld [vmem:[%s1062 + $0x20] sm:$0xf]
        %v1072 = vld [vmem:[%s1062 + $0x24] sm:$0xf]
        %v1073 = vld [vmem:[%s1062 + $0x28] sm:$0xf]
        %v1074 = vld [vmem:[%s1062 + $0x2c] sm:$0xf]
        %v1075 = vld [vmem:[%s1062 + $0x30] sm:$0xf]
        %v1076 = vld [vmem:[%s1062 + $0x34] sm:$0xf]
        %v1077 = vld [vmem:[%s1062 + $0x38] sm:$0xf]
        %v1078 = vld [vmem:[%s1062 + $0x3c] sm:$0xf]
        %v1079 = vunpack.c.l.b16 %v955
        %v1080 = vunpack.c.l.b16 %v969
        %v1081 = vunpack.c.l.b16 %v983
        %v1082 = vunpack.c.l.b16 %v997
        %v1083 = vunpack.c.l.b16 %v1011
        %v1084 = vunpack.c.l.b16 %v1025
        %v1085 = vunpack.c.l.b16 %v1039
        %v1086 = vunpack.c.l.b16 %v1053
        %v1087 = vpack.c.b16 %v1080, %v1079
        %v1088 = vpack.c.b16 %v1082, %v1081
        %v1089 = vpack.c.b16 %v1084, %v1083
        %v1090 = vpack.c.b16 %v1086, %v1085
        %v1111 = vunpack.c.l.b16 %v1063
        %v1112 = vunpack.c.l.b16 %v1064
        %v1113 = vunpack.c.l.b16 %v1065
        %v1114 = vunpack.c.l.b16 %v1066
        %v1115 = vunpack.c.l.b16 %v1067
        %v1116 = vunpack.c.l.b16 %v1068
        %v1117 = vunpack.c.l.b16 %v1069
        %v1118 = vunpack.c.l.b16 %v1070
        %v1119 = vunpack.c.l.b16 %v1071
        %v1120 = vunpack.c.l.b16 %v1072
        %v1121 = vunpack.c.l.b16 %v1073
        %v1122 = vunpack.c.l.b16 %v1074
        %v1123 = vunpack.c.l.b16 %v1075
        %v1124 = vunpack.c.l.b16 %v1076
        %v1125 = vunpack.c.l.b16 %v1077
        %v1126 = vunpack.c.l.b16 %v1078
        %v1127 = vpack.c.b16 %v1112, %v1111
        %v1128 = vpack.c.b16 %v1114, %v1113
        %v1129 = vpack.c.b16 %v1116, %v1115
        %v1130 = vpack.c.b16 %v1118, %v1117
        %v1131 = vpack.c.b16 %v1120, %v1119
        %v1132 = vpack.c.b16 %v1122, %v1121
        %v1133 = vpack.c.b16 %v1124, %v1123
        %v1134 = vpack.c.b16 %v1126, %v1125
        %1143 = vmatprep.subr.bf16.mxu0 0
        %1144 = vmatpush1.bf16.msra.mxu0 %v1134
        %1145 = vmatprep.subr.bf16.mxu0 0
        %1146 = vmatpush1.bf16.msra.mxu0 %v1133
        %1147 = vmatprep.subr.bf16.mxu0 0
        %1148 = vmatpush1.bf16.msra.mxu0 %v1132
        %1149 = vmatprep.subr.bf16.mxu0 0
        %1150 = vmatpush1.bf16.msra.mxu0 %v1131
        %1151 = vmatprep.subr.bf16.mxu0 0
        %1152 = vmatpush1.bf16.msra.mxu0 %v1130
        %1153 = vmatprep.subr.bf16.mxu0 0
        %1154 = vmatpush1.bf16.msra.mxu0 %v1129
        %1155 = vmatprep.subr.bf16.mxu0 0
        %1156 = vmatpush1.bf16.msra.mxu0 %v1128
        %1157 = vmatprep.subr.bf16.mxu0 0
        %1158 = vmatpush1.bf16.msra.mxu0 %v1127
        %1159 = vmatprep.subr.bf16.mxu0 0
        %1160 = vmatpush2.bf16.msra.mxu0 0
        %1161 = vmatprep.subr.bf16.mxu0 0
        %1162 = vmatpush2.bf16.msra.mxu0 0
        %1163 = vmatprep.subr.bf16.mxu0 0
        %1164 = vmatpush2.bf16.msra.mxu0 0
        %1165 = vmatprep.subr.bf16.mxu0 0
        %1166 = vmatpush2.bf16.msra.mxu0 0
        %1167 = vmatprep.subr.bf16.mxu0 0
        %1168 = vmatpush2.bf16.msra.mxu0 0
        %1169 = vmatprep.subr.bf16.mxu0 0
        %1170 = vmatpush2.bf16.msra.mxu0 0
        %1171 = vmatprep.subr.bf16.mxu0 0
        %1172 = vmatpush2.bf16.msra.mxu0 0
        %1173 = vmatprep.subr.bf16.mxu0 0
        %1174 = vmatpush2.bf16.msra.mxu0 0
        %1175 = vmatprep.mubr.bf16.mxu0 0
        %1176 = vmatmul.mubr.bf16.gmra.mxu0 %v1087
        %v1177 = vpop.f32.mrf.mxu0
        %v1178 = vadd.f32 0.0, %v1177
        %v1179 = vpop.f32.mrf.mxu0
        %v1180 = vpop.f32.mrf.mxu0
        %v1181 = vadd.f32 0.0, %v1180
        %v1182 = vpop.f32.mrf.mxu0
        %1183 = vmatprep.mubr.bf16.mxu0 0
        %1184 = vmatmul.mubr.bf16.gmra.mxu0 %v1088
        %v1185 = vpop.f32.mrf.mxu0
        %v1186 = vadd.f32 0.0, %v1185
        %v1187 = vpop.f32.mrf.mxu0
        %v1188 = vpop.f32.mrf.mxu0
        %v1189 = vadd.f32 0.0, %v1188
        %v1190 = vpop.f32.mrf.mxu0
        %1191 = vmatprep.mubr.bf16.mxu0 0
        %1192 = vmatmul.mubr.bf16.gmra.mxu0 %v1089
        %v1193 = vpop.f32.mrf.mxu0
        %v1194 = vadd.f32 0.0, %v1193
        %v1195 = vpop.f32.mrf.mxu0
        %v1196 = vpop.f32.mrf.mxu0
        %v1197 = vadd.f32 0.0, %v1196
        %v1198 = vpop.f32.mrf.mxu0
        %1199 = vmatprep.mubr.bf16.mxu0 0
        %1200 = vmatmul.mubr.bf16.gmra.mxu0 %v1090
        %v1201 = vpop.f32.mrf.mxu0
        %v1202 = vadd.f32 0.0, %v1201
        %v1203 = vpop.f32.mrf.mxu0
        %v1204 = vpop.f32.mrf.mxu0
        %v1205 = vadd.f32 0.0, %v1204
        %v1206 = vpop.f32.mrf.mxu0
        %1207 = vdwg.mxu0
        %v1208 = vadd.f32 %v1054, %v1178
        %v1209 = vadd.f32 %v1055, %v1181
        %v1210 = vadd.f32 %v1056, %v1186
        %v1211 = vadd.f32 %v1057, %v1189
        %v1212 = vadd.f32 %v1058, %v1194
        %v1213 = vadd.f32 %v1059, %v1197
        %v1214 = vadd.f32 %v1060, %v1202
        %v1215 = vadd.f32 %v1061, %v1205
        %1216 = vst [vmem:[#allocation2] sm:$0xff] %v1208
        %1217 = vst [vmem:[#allocation2 + $0x8] sm:$0xff] %v1209
        %1218 = vst [vmem:[#allocation2 + $0x10] sm:$0xff] %v1210
        %1219 = vst [vmem:[#allocation2 + $0x18] sm:$0xff] %v1211
        %1220 = vst [vmem:[#allocation2 + $0x20] sm:$0xff] %v1212
        %1221 = vst [vmem:[#allocation2 + $0x28] sm:$0xff] %v1213
        %1222 = vst [vmem:[#allocation2 + $0x30] sm:$0xff] %v1214
        %1223 = vst [vmem:[#allocation2 + $0x38] sm:$0xff] %v1215
        %s1224 = scalar_lea.vmem %s508, 160 [#allocation3]
        %v1225 = vld [vmem:[%s1224] sm:$0xf]
        %v1226 = vld [vmem:[%s1224 + $0x8] sm:$0xf]
        %v1227 = vld [vmem:[%s1224 + $0x10] sm:$0xf]
        %v1228 = vld [vmem:[%s1224 + $0x18] sm:$0xf]
        %v1229 = vld [vmem:[%s1224 + $0x20] sm:$0xf]
        %v1230 = vld [vmem:[%s1224 + $0x28] sm:$0xf]
        %v1231 = vld [vmem:[%s1224 + $0x30] sm:$0xf]
        %v1232 = vld [vmem:[%s1224 + $0x38] sm:$0xf]
        %v1233 = vld [vmem:[#allocation2] sm:$0xff]
        %v1234 = vld [vmem:[#allocation2 + $0x8] sm:$0xff]
        %v1235 = vld [vmem:[#allocation2 + $0x10] sm:$0xff]
        %v1236 = vld [vmem:[#allocation2 + $0x18] sm:$0xff]
        %v1237 = vld [vmem:[#allocation2 + $0x20] sm:$0xff]
        %v1238 = vld [vmem:[#allocation2 + $0x28] sm:$0xff]
        %v1239 = vld [vmem:[#allocation2 + $0x30] sm:$0xff]
        %v1240 = vld [vmem:[#allocation2 + $0x38] sm:$0xff]
        %s1241 = scalar_lea.vmem %s1, 192
        %v1242 = vld [vmem:[%s1241] sm:$0xf]
        %v1243 = vld [vmem:[%s1241 + $0x4] sm:$0xf]
        %v1244 = vld [vmem:[%s1241 + $0x8] sm:$0xf]
        %v1245 = vld [vmem:[%s1241 + $0xc] sm:$0xf]
        %v1246 = vld [vmem:[%s1241 + $0x10] sm:$0xf]
        %v1247 = vld [vmem:[%s1241 + $0x14] sm:$0xf]
        %v1248 = vld [vmem:[%s1241 + $0x18] sm:$0xf]
        %v1249 = vld [vmem:[%s1241 + $0x1c] sm:$0xf]
        %v1250 = vld [vmem:[%s1241 + $0x20] sm:$0xf]
        %v1251 = vld [vmem:[%s1241 + $0x24] sm:$0xf]
        %v1252 = vld [vmem:[%s1241 + $0x28] sm:$0xf]
        %v1253 = vld [vmem:[%s1241 + $0x2c] sm:$0xf]
        %v1254 = vld [vmem:[%s1241 + $0x30] sm:$0xf]
        %v1255 = vld [vmem:[%s1241 + $0x34] sm:$0xf]
        %v1256 = vld [vmem:[%s1241 + $0x38] sm:$0xf]
        %v1257 = vld [vmem:[%s1241 + $0x3c] sm:$0xf]
        %v1266 = vunpack.c.l.b16 %v1225
        %v1267 = vunpack.c.l.b16 %v1226
        %v1268 = vunpack.c.l.b16 %v1227
        %v1269 = vunpack.c.l.b16 %v1228
        %v1270 = vunpack.c.l.b16 %v1229
        %v1271 = vunpack.c.l.b16 %v1230
        %v1272 = vunpack.c.l.b16 %v1231
        %v1273 = vunpack.c.l.b16 %v1232
        %v1274 = vpack.c.b16 %v1267, %v1266
        %v1275 = vpack.c.b16 %v1269, %v1268
        %v1276 = vpack.c.b16 %v1271, %v1270
        %v1277 = vpack.c.b16 %v1273, %v1272
        %v1298 = vunpack.c.l.b16 %v1242
        %v1299 = vunpack.c.l.b16 %v1243
        %v1300 = vunpack.c.l.b16 %v1244
        %v1301 = vunpack.c.l.b16 %v1245
        %v1302 = vunpack.c.l.b16 %v1246
        %v1303 = vunpack.c.l.b16 %v1247
        %v1304 = vunpack.c.l.b16 %v1248
        %v1305 = vunpack.c.l.b16 %v1249
        %v1306 = vunpack.c.l.b16 %v1250
        %v1307 = vunpack.c.l.b16 %v1251
        %v1308 = vunpack.c.l.b16 %v1252
        %v1309 = vunpack.c.l.b16 %v1253
        %v1310 = vunpack.c.l.b16 %v1254
        %v1311 = vunpack.c.l.b16 %v1255
        %v1312 = vunpack.c.l.b16 %v1256
        %v1313 = vunpack.c.l.b16 %v1257
        %v1314 = vpack.c.b16 %v1299, %v1298
        %v1315 = vpack.c.b16 %v1301, %v1300
        %v1316 = vpack.c.b16 %v1303, %v1302
        %v1317 = vpack.c.b16 %v1305, %v1304
        %v1318 = vpack.c.b16 %v1307, %v1306
        %v1319 = vpack.c.b16 %v1309, %v1308
        %v1320 = vpack.c.b16 %v1311, %v1310
        %v1321 = vpack.c.b16 %v1313, %v1312
        %1330 = vmatprep.subr.bf16.mxu0 0
        %1331 = vmatpush1.bf16.msra.mxu0 %v1321
        %1332 = vmatprep.subr.bf16.mxu0 0
        %1333 = vmatpush1.bf16.msra.mxu0 %v1320
        %1334 = vmatprep.subr.bf16.mxu0 0
        %1335 = vmatpush1.bf16.msra.mxu0 %v1319
        %1336 = vmatprep.subr.bf16.mxu0 0
        %1337 = vmatpush1.bf16.msra.mxu0 %v1318
        %1338 = vmatprep.subr.bf16.mxu0 0
        %1339 = vmatpush1.bf16.msra.mxu0 %v1317
        %1340 = vmatprep.subr.bf16.mxu0 0
        %1341 = vmatpush1.bf16.msra.mxu0 %v1316
        %1342 = vmatprep.subr.bf16.mxu0 0
        %1343 = vmatpush1.bf16.msra.mxu0 %v1315
        %1344 = vmatprep.subr.bf16.mxu0 0
        %1345 = vmatpush1.bf16.msra.mxu0 %v1314
        %1346 = vmatprep.subr.bf16.mxu0 0
        %1347 = vmatpush2.bf16.msra.mxu0 0
        %1348 = vmatprep.subr.bf16.mxu0 0
        %1349 = vmatpush2.bf16.msra.mxu0 0
        %1350 = vmatprep.subr.bf16.mxu0 0
        %1351 = vmatpush2.bf16.msra.mxu0 0
        %1352 = vmatprep.subr.bf16.mxu0 0
        %1353 = vmatpush2.bf16.msra.mxu0 0
        %1354 = vmatprep.subr.bf16.mxu0 0
        %1355 = vmatpush2.bf16.msra.mxu0 0
        %1356 = vmatprep.subr.bf16.mxu0 0
        %1357 = vmatpush2.bf16.msra.mxu0 0
        %1358 = vmatprep.subr.bf16.mxu0 0
        %1359 = vmatpush2.bf16.msra.mxu0 0
        %1360 = vmatprep.subr.bf16.mxu0 0
        %1361 = vmatpush2.bf16.msra.mxu0 0
        %1362 = vmatprep.mubr.bf16.mxu0 0
        %1363 = vmatmul.mubr.bf16.gmra.mxu0 %v1274
        %v1364 = vpop.f32.mrf.mxu0
        %v1365 = vadd.f32 0.0, %v1364
        %v1366 = vpop.f32.mrf.mxu0
        %v1367 = vpop.f32.mrf.mxu0
        %v1368 = vadd.f32 0.0, %v1367
        %v1369 = vpop.f32.mrf.mxu0
        %1370 = vmatprep.mubr.bf16.mxu0 0
        %1371 = vmatmul.mubr.bf16.gmra.mxu0 %v1275
        %v1372 = vpop.f32.mrf.mxu0
        %v1373 = vadd.f32 0.0, %v1372
        %v1374 = vpop.f32.mrf.mxu0
        %v1375 = vpop.f32.mrf.mxu0
        %v1376 = vadd.f32 0.0, %v1375
        %v1377 = vpop.f32.mrf.mxu0
        %1378 = vmatprep.mubr.bf16.mxu0 0
        %1379 = vmatmul.mubr.bf16.gmra.mxu0 %v1276
        %v1380 = vpop.f32.mrf.mxu0
        %v1381 = vadd.f32 0.0, %v1380
        %v1382 = vpop.f32.mrf.mxu0
        %v1383 = vpop.f32.mrf.mxu0
        %v1384 = vadd.f32 0.0, %v1383
        %v1385 = vpop.f32.mrf.mxu0
        %1386 = vmatprep.mubr.bf16.mxu0 0
        %1387 = vmatmul.mubr.bf16.gmra.mxu0 %v1277
        %v1388 = vpop.f32.mrf.mxu0
        %v1389 = vadd.f32 0.0, %v1388
        %v1390 = vpop.f32.mrf.mxu0
        %v1391 = vpop.f32.mrf.mxu0
        %v1392 = vadd.f32 0.0, %v1391
        %v1393 = vpop.f32.mrf.mxu0
        %1394 = vdwg.mxu0
        %v1395 = vadd.f32 %v1233, %v1365
        %v1396 = vadd.f32 %v1234, %v1368
        %v1397 = vadd.f32 %v1235, %v1373
        %v1398 = vadd.f32 %v1236, %v1376
        %v1399 = vadd.f32 %v1237, %v1381
        %v1400 = vadd.f32 %v1238, %v1384
        %v1401 = vadd.f32 %v1239, %v1389
        %v1402 = vadd.f32 %v1240, %v1392
        %1403 = vst [vmem:[#allocation2] sm:$0xff] %v1395
        %1404 = vst [vmem:[#allocation2 + $0x8] sm:$0xff] %v1396
        %1405 = vst [vmem:[#allocation2 + $0x10] sm:$0xff] %v1397
        %1406 = vst [vmem:[#allocation2 + $0x18] sm:$0xff] %v1398
        %1407 = vst [vmem:[#allocation2 + $0x20] sm:$0xff] %v1399
        %1408 = vst [vmem:[#allocation2 + $0x28] sm:$0xff] %v1400
        %1409 = vst [vmem:[#allocation2 + $0x30] sm:$0xff] %v1401
        %1410 = vst [vmem:[#allocation2 + $0x38] sm:$0xff] %v1402
        %s1411 = scalar_lea.vmem %s508, 240 [#allocation3]
        %v1412 = vld [vmem:[%s1411] sm:$0xf]
        %v1413 = vld [vmem:[%s1411 + $0x8] sm:$0xf]
        %v1414 = vld [vmem:[%s1411 + $0x10] sm:$0xf]
        %v1415 = vld [vmem:[%s1411 + $0x18] sm:$0xf]
        %v1416 = vld [vmem:[%s1411 + $0x20] sm:$0xf]
        %v1417 = vld [vmem:[%s1411 + $0x28] sm:$0xf]
        %v1418 = vld [vmem:[%s1411 + $0x30] sm:$0xf]
        %v1419 = vld [vmem:[%s1411 + $0x38] sm:$0xf]
        %v1420 = vld [vmem:[#allocation2] sm:$0xff]
        %v1421 = vld [vmem:[#allocation2 + $0x8] sm:$0xff]
        %v1422 = vld [vmem:[#allocation2 + $0x10] sm:$0xff]
        %v1423 = vld [vmem:[#allocation2 + $0x18] sm:$0xff]
        %v1424 = vld [vmem:[#allocation2 + $0x20] sm:$0xff]
        %v1425 = vld [vmem:[#allocation2 + $0x28] sm:$0xff]
        %v1426 = vld [vmem:[#allocation2 + $0x30] sm:$0xff]
        %v1427 = vld [vmem:[#allocation2 + $0x38] sm:$0xff]
        %s1428 = scalar_lea.vmem %s1, 256
        %v1429 = vld [vmem:[%s1428] sm:$0xf]
        %v1430 = vld [vmem:[%s1428 + $0x4] sm:$0xf]
        %v1431 = vld [vmem:[%s1428 + $0x8] sm:$0xf]
        %v1432 = vld [vmem:[%s1428 + $0xc] sm:$0xf]
        %v1433 = vld [vmem:[%s1428 + $0x10] sm:$0xf]
        %v1434 = vld [vmem:[%s1428 + $0x14] sm:$0xf]
        %v1435 = vld [vmem:[%s1428 + $0x18] sm:$0xf]
        %v1436 = vld [vmem:[%s1428 + $0x1c] sm:$0xf]
        %v1437 = vld [vmem:[%s1428 + $0x20] sm:$0xf]
        %v1438 = vld [vmem:[%s1428 + $0x24] sm:$0xf]
        %v1439 = vld [vmem:[%s1428 + $0x28] sm:$0xf]
        %v1440 = vld [vmem:[%s1428 + $0x2c] sm:$0xf]
        %v1441 = vld [vmem:[%s1428 + $0x30] sm:$0xf]
        %v1442 = vld [vmem:[%s1428 + $0x34] sm:$0xf]
        %v1443 = vld [vmem:[%s1428 + $0x38] sm:$0xf]
        %v1444 = vld [vmem:[%s1428 + $0x3c] sm:$0xf]
        %v1453 = vunpack.c.l.b16 %v1412
        %v1454 = vunpack.c.l.b16 %v1413
        %v1455 = vunpack.c.l.b16 %v1414
        %v1456 = vunpack.c.l.b16 %v1415
        %v1457 = vunpack.c.l.b16 %v1416
        %v1458 = vunpack.c.l.b16 %v1417
        %v1459 = vunpack.c.l.b16 %v1418
        %v1460 = vunpack.c.l.b16 %v1419
        %v1461 = vpack.c.b16 %v1454, %v1453
        %v1462 = vpack.c.b16 %v1456, %v1455
        %v1463 = vpack.c.b16 %v1458, %v1457
        %v1464 = vpack.c.b16 %v1460, %v1459
        %v1485 = vunpack.c.l.b16 %v1429
        %v1486 = vunpack.c.l.b16 %v1430
        %v1487 = vunpack.c.l.b16 %v1431
        %v1488 = vunpack.c.l.b16 %v1432
        %v1489 = vunpack.c.l.b16 %v1433
        %v1490 = vunpack.c.l.b16 %v1434
        %v1491 = vunpack.c.l.b16 %v1435
        %v1492 = vunpack.c.l.b16 %v1436
        %v1493 = vunpack.c.l.b16 %v1437
        %v1494 = vunpack.c.l.b16 %v1438
        %v1495 = vunpack.c.l.b16 %v1439
        %v1496 = vunpack.c.l.b16 %v1440
        %v1497 = vunpack.c.l.b16 %v1441
        %v1498 = vunpack.c.l.b16 %v1442
        %v1499 = vunpack.c.l.b16 %v1443
        %v1500 = vunpack.c.l.b16 %v1444
        %v1501 = vpack.c.b16 %v1486, %v1485
        %v1502 = vpack.c.b16 %v1488, %v1487
        %v1503 = vpack.c.b16 %v1490, %v1489
        %v1504 = vpack.c.b16 %v1492, %v1491
        %v1505 = vpack.c.b16 %v1494, %v1493
        %v1506 = vpack.c.b16 %v1496, %v1495
        %v1507 = vpack.c.b16 %v1498, %v1497
        %v1508 = vpack.c.b16 %v1500, %v1499
        %1517 = vmatprep.subr.bf16.mxu0 0
        %1518 = vmatpush1.bf16.msra.mxu0 %v1508
        %1519 = vmatprep.subr.bf16.mxu0 0
        %1520 = vmatpush1.bf16.msra.mxu0 %v1507
        %1521 = vmatprep.subr.bf16.mxu0 0
        %1522 = vmatpush1.bf16.msra.mxu0 %v1506
        %1523 = vmatprep.subr.bf16.mxu0 0
        %1524 = vmatpush1.bf16.msra.mxu0 %v1505
        %1525 = vmatprep.subr.bf16.mxu0 0
        %1526 = vmatpush1.bf16.msra.mxu0 %v1504
        %1527 = vmatprep.subr.bf16.mxu0 0
        %1528 = vmatpush1.bf16.msra.mxu0 %v1503
        %1529 = vmatprep.subr.bf16.mxu0 0
        %1530 = vmatpush1.bf16.msra.mxu0 %v1502
        %1531 = vmatprep.subr.bf16.mxu0 0
        %1532 = vmatpush1.bf16.msra.mxu0 %v1501
        %1533 = vmatprep.subr.bf16.mxu0 0
        %1534 = vmatpush2.bf16.msra.mxu0 0
        %1535 = vmatprep.subr.bf16.mxu0 0
        %1536 = vmatpush2.bf16.msra.mxu0 0
        %1537 = vmatprep.subr.bf16.mxu0 0
        %1538 = vmatpush2.bf16.msra.mxu0 0
        %1539 = vmatprep.subr.bf16.mxu0 0
        %1540 = vmatpush2.bf16.msra.mxu0 0
        %1541 = vmatprep.subr.bf16.mxu0 0
        %1542 = vmatpush2.bf16.msra.mxu0 0
        %1543 = vmatprep.subr.bf16.mxu0 0
        %1544 = vmatpush2.bf16.msra.mxu0 0
        %1545 = vmatprep.subr.bf16.mxu0 0
        %1546 = vmatpush2.bf16.msra.mxu0 0
        %1547 = vmatprep.subr.bf16.mxu0 0
        %1548 = vmatpush2.bf16.msra.mxu0 0
        %1549 = vmatprep.mubr.bf16.mxu0 0
        %1550 = vmatmul.mubr.bf16.gmra.mxu0 %v1461
        %v1551 = vpop.f32.mrf.mxu0
        %v1552 = vadd.f32 0.0, %v1551
        %v1553 = vpop.f32.mrf.mxu0
        %v1554 = vpop.f32.mrf.mxu0
        %v1555 = vadd.f32 0.0, %v1554
        %v1556 = vpop.f32.mrf.mxu0
        %1557 = vmatprep.mubr.bf16.mxu0 0
        %1558 = vmatmul.mubr.bf16.gmra.mxu0 %v1462
        %v1559 = vpop.f32.mrf.mxu0
        %v1560 = vadd.f32 0.0, %v1559
        %v1561 = vpop.f32.mrf.mxu0
        %v1562 = vpop.f32.mrf.mxu0
        %v1563 = vadd.f32 0.0, %v1562
        %v1564 = vpop.f32.mrf.mxu0
        %1565 = vmatprep.mubr.bf16.mxu0 0
        %1566 = vmatmul.mubr.bf16.gmra.mxu0 %v1463
        %v1567 = vpop.f32.mrf.mxu0
        %v1568 = vadd.f32 0.0, %v1567
        %v1569 = vpop.f32.mrf.mxu0
        %v1570 = vpop.f32.mrf.mxu0
        %v1571 = vadd.f32 0.0, %v1570
        %v1572 = vpop.f32.mrf.mxu0
        %1573 = vmatprep.mubr.bf16.mxu0 0
        %1574 = vmatmul.mubr.bf16.gmra.mxu0 %v1464
        %v1575 = vpop.f32.mrf.mxu0
        %v1576 = vadd.f32 0.0, %v1575
        %v1577 = vpop.f32.mrf.mxu0
        %v1578 = vpop.f32.mrf.mxu0
        %v1579 = vadd.f32 0.0, %v1578
        %v1580 = vpop.f32.mrf.mxu0
        %1581 = vdwg.mxu0
        %v1582 = vadd.f32 %v1420, %v1552
        %v1583 = vadd.f32 %v1421, %v1555
        %v1584 = vadd.f32 %v1422, %v1560
        %v1585 = vadd.f32 %v1423, %v1563
        %v1586 = vadd.f32 %v1424, %v1568
        %v1587 = vadd.f32 %v1425, %v1571
        %v1588 = vadd.f32 %v1426, %v1576
        %v1589 = vadd.f32 %v1427, %v1579
        %1590 = vst [vmem:[#allocation2] sm:$0xff] %v1582
        %1591 = vst [vmem:[#allocation2 + $0x8] sm:$0xff] %v1583
        %1592 = vst [vmem:[#allocation2 + $0x10] sm:$0xff] %v1584
        %1593 = vst [vmem:[#allocation2 + $0x18] sm:$0xff] %v1585
        %1594 = vst [vmem:[#allocation2 + $0x20] sm:$0xff] %v1586
        %1595 = vst [vmem:[#allocation2 + $0x28] sm:$0xff] %v1587
        %1596 = vst [vmem:[#allocation2 + $0x30] sm:$0xff] %v1588
        %1597 = vst [vmem:[#allocation2 + $0x38] sm:$0xff] %v1589
        %v1598 = vld [vmem:[%s1224] sm:$0xf]
        %v1599 = vld [vmem:[%s1224 + $0x4] sm:$0x1]
        %v1600 = vld [vmem:[%s1224 + $0x8] sm:$0xf]
        %v1601 = vld [vmem:[%s1224 + $0xc] sm:$0x1]
        %v1602 = vld [vmem:[%s1224 + $0x10] sm:$0xf]
        %v1603 = vld [vmem:[%s1224 + $0x14] sm:$0x1]
        %v1604 = vld [vmem:[%s1224 + $0x18] sm:$0xf]
        %v1605 = vld [vmem:[%s1224 + $0x1c] sm:$0x1]
        %v1606 = vld [vmem:[%s1224 + $0x20] sm:$0xf]
        %v1607 = vld [vmem:[%s1224 + $0x24] sm:$0x1]
        %v1608 = vld [vmem:[%s1224 + $0x28] sm:$0xf]
        %v1609 = vld [vmem:[%s1224 + $0x2c] sm:$0x1]
        %v1610 = vld [vmem:[%s1224 + $0x30] sm:$0xf]
        %v1611 = vld [vmem:[%s1224 + $0x34] sm:$0x1]
        %v1612 = vld [vmem:[%s1224 + $0x38] sm:$0xf]
        %v1613 = vld [vmem:[%s1224 + $0x3c] sm:$0x1]
        %v1615 = vshrl.u32 %v1598, 16
        %v1617 = vrot.slane %v1615, 4
        %v1618 = vshll.u32 %v1598, 16
        %v1620 = vrot.slane %v1618, 5
        %v1621 = vor.u32 %v1617, %v1620
        %v1622 = vrot.slane %v1621, 4
        %v1624 = vshll.u32 %v1599, 16
        %v1626 = vrot.slane %v1624, 5
        %v1627 = vsel %vm941, %v1622, %v1626
        %v1629 = vshrl.u32 %v1600, 16
        %v1631 = vrot.slane %v1629, 4
        %v1632 = vshll.u32 %v1600, 16
        %v1634 = vrot.slane %v1632, 5
        %v1635 = vor.u32 %v1631, %v1634
        %v1636 = vrot.slane %v1635, 4
        %v1638 = vshll.u32 %v1601, 16
        %v1640 = vrot.slane %v1638, 5
        %v1641 = vsel %vm941, %v1636, %v1640
        %v1643 = vshrl.u32 %v1602, 16
        %v1645 = vrot.slane %v1643, 4
        %v1646 = vshll.u32 %v1602, 16
        %v1648 = vrot.slane %v1646, 5
        %v1649 = vor.u32 %v1645, %v1648
        %v1650 = vrot.slane %v1649, 4
        %v1652 = vshll.u32 %v1603, 16
        %v1654 = vrot.slane %v1652, 5
        %v1655 = vsel %vm941, %v1650, %v1654
        %v1657 = vshrl.u32 %v1604, 16
        %v1659 = vrot.slane %v1657, 4
        %v1660 = vshll.u32 %v1604, 16
        %v1662 = vrot.slane %v1660, 5
        %v1663 = vor.u32 %v1659, %v1662
        %v1664 = vrot.slane %v1663, 4
        %v1666 = vshll.u32 %v1605, 16
        %v1668 = vrot.slane %v1666, 5
        %v1669 = vsel %vm941, %v1664, %v1668
        %v1671 = vshrl.u32 %v1606, 16
        %v1673 = vrot.slane %v1671, 4
        %v1674 = vshll.u32 %v1606, 16
        %v1676 = vrot.slane %v1674, 5
        %v1677 = vor.u32 %v1673, %v1676
        %v1678 = vrot.slane %v1677, 4
        %v1680 = vshll.u32 %v1607, 16
        %v1682 = vrot.slane %v1680, 5
        %v1683 = vsel %vm941, %v1678, %v1682
        %v1685 = vshrl.u32 %v1608, 16
        %v1687 = vrot.slane %v1685, 4
        %v1688 = vshll.u32 %v1608, 16
        %v1690 = vrot.slane %v1688, 5
        %v1691 = vor.u32 %v1687, %v1690
        %v1692 = vrot.slane %v1691, 4
        %v1694 = vshll.u32 %v1609, 16
        %v1696 = vrot.slane %v1694, 5
        %v1697 = vsel %vm941, %v1692, %v1696
        %v1699 = vshrl.u32 %v1610, 16
        %v1701 = vrot.slane %v1699, 4
        %v1702 = vshll.u32 %v1610, 16
        %v1704 = vrot.slane %v1702, 5
        %v1705 = vor.u32 %v1701, %v1704
        %v1706 = vrot.slane %v1705, 4
        %v1708 = vshll.u32 %v1611, 16
        %v1710 = vrot.slane %v1708, 5
        %v1711 = vsel %vm941, %v1706, %v1710
        %v1713 = vshrl.u32 %v1612, 16
        %v1715 = vrot.slane %v1713, 4
        %v1716 = vshll.u32 %v1612, 16
        %v1718 = vrot.slane %v1716, 5
        %v1719 = vor.u32 %v1715, %v1718
        %v1720 = vrot.slane %v1719, 4
        %v1722 = vshll.u32 %v1613, 16
        %v1724 = vrot.slane %v1722, 5
        %v1725 = vsel %vm941, %v1720, %v1724
        %v1726 = vld [vmem:[#allocation2] sm:$0xff]
        %v1727 = vld [vmem:[#allocation2 + $0x8] sm:$0xff]
        %v1728 = vld [vmem:[#allocation2 + $0x10] sm:$0xff]
        %v1729 = vld [vmem:[#allocation2 + $0x18] sm:$0xff]
        %v1730 = vld [vmem:[#allocation2 + $0x20] sm:$0xff]
        %v1731 = vld [vmem:[#allocation2 + $0x28] sm:$0xff]
        %v1732 = vld [vmem:[#allocation2 + $0x30] sm:$0xff]
        %v1733 = vld [vmem:[#allocation2 + $0x38] sm:$0xff]
        %s1734 = scalar_lea.vmem %s1, 320
        %v1735 = vld [vmem:[%s1734] sm:$0xf]
        %v1736 = vld [vmem:[%s1734 + $0x4] sm:$0xf]
        %v1737 = vld [vmem:[%s1734 + $0x8] sm:$0xf]
        %v1738 = vld [vmem:[%s1734 + $0xc] sm:$0xf]
        %v1739 = vld [vmem:[%s1734 + $0x10] sm:$0xf]
        %v1740 = vld [vmem:[%s1734 + $0x14] sm:$0xf]
        %v1741 = vld [vmem:[%s1734 + $0x18] sm:$0xf]
        %v1742 = vld [vmem:[%s1734 + $0x1c] sm:$0xf]
        %v1743 = vld [vmem:[%s1734 + $0x20] sm:$0xf]
        %v1744 = vld [vmem:[%s1734 + $0x24] sm:$0xf]
        %v1745 = vld [vmem:[%s1734 + $0x28] sm:$0xf]
        %v1746 = vld [vmem:[%s1734 + $0x2c] sm:$0xf]
        %v1747 = vld [vmem:[%s1734 + $0x30] sm:$0xf]
        %v1748 = vld [vmem:[%s1734 + $0x34] sm:$0xf]
        %v1749 = vld [vmem:[%s1734 + $0x38] sm:$0xf]
        %v1750 = vld [vmem:[%s1734 + $0x3c] sm:$0xf]
        %v1751 = vunpack.c.l.b16 %v1627
        %v1752 = vunpack.c.l.b16 %v1641
        %v1753 = vunpack.c.l.b16 %v1655
        %v1754 = vunpack.c.l.b16 %v1669
        %v1755 = vunpack.c.l.b16 %v1683
        %v1756 = vunpack.c.l.b16 %v1697
        %v1757 = vunpack.c.l.b16 %v1711
        %v1758 = vunpack.c.l.b16 %v1725
        %v1759 = vpack.c.b16 %v1752, %v1751
        %v1760 = vpack.c.b16 %v1754, %v1753
        %v1761 = vpack.c.b16 %v1756, %v1755
        %v1762 = vpack.c.b16 %v1758, %v1757
        %v1783 = vunpack.c.l.b16 %v1735
        %v1784 = vunpack.c.l.b16 %v1736
        %v1785 = vunpack.c.l.b16 %v1737
        %v1786 = vunpack.c.l.b16 %v1738
        %v1787 = vunpack.c.l.b16 %v1739
        %v1788 = vunpack.c.l.b16 %v1740
        %v1789 = vunpack.c.l.b16 %v1741
        %v1790 = vunpack.c.l.b16 %v1742
        %v1791 = vunpack.c.l.b16 %v1743
        %v1792 = vunpack.c.l.b16 %v1744
        %v1793 = vunpack.c.l.b16 %v1745
        %v1794 = vunpack.c.l.b16 %v1746
        %v1795 = vunpack.c.l.b16 %v1747
        %v1796 = vunpack.c.l.b16 %v1748
        %v1797 = vunpack.c.l.b16 %v1749
        %v1798 = vunpack.c.l.b16 %v1750
        %v1799 = vpack.c.b16 %v1784, %v1783
        %v1800 = vpack.c.b16 %v1786, %v1785
        %v1801 = vpack.c.b16 %v1788, %v1787
        %v1802 = vpack.c.b16 %v1790, %v1789
        %v1803 = vpack.c.b16 %v1792, %v1791
        %v1804 = vpack.c.b16 %v1794, %v1793
        %v1805 = vpack.c.b16 %v1796, %v1795
        %v1806 = vpack.c.b16 %v1798, %v1797
        %1815 = vmatprep.subr.bf16.mxu0 0
        %1816 = vmatpush1.bf16.msra.mxu0 %v1806
        %1817 = vmatprep.subr.bf16.mxu0 0
        %1818 = vmatpush1.bf16.msra.mxu0 %v1805
        %1819 = vmatprep.subr.bf16.mxu0 0
        %1820 = vmatpush1.bf16.msra.mxu0 %v1804
        %1821 = vmatprep.subr.bf16.mxu0 0
        %1822 = vmatpush1.bf16.msra.mxu0 %v1803
        %1823 = vmatprep.subr.bf16.mxu0 0
        %1824 = vmatpush1.bf16.msra.mxu0 %v1802
        %1825 = vmatprep.subr.bf16.mxu0 0
        %1826 = vmatpush1.bf16.msra.mxu0 %v1801
        %1827 = vmatprep.subr.bf16.mxu0 0
        %1828 = vmatpush1.bf16.msra.mxu0 %v1800
        %1829 = vmatprep.subr.bf16.mxu0 0
        %1830 = vmatpush1.bf16.msra.mxu0 %v1799
        %1831 = vmatprep.subr.bf16.mxu0 0
        %1832 = vmatpush2.bf16.msra.mxu0 0
        %1833 = vmatprep.subr.bf16.mxu0 0
        %1834 = vmatpush2.bf16.msra.mxu0 0
        %1835 = vmatprep.subr.bf16.mxu0 0
        %1836 = vmatpush2.bf16.msra.mxu0 0
        %1837 = vmatprep.subr.bf16.mxu0 0
        %1838 = vmatpush2.bf16.msra.mxu0 0
        %1839 = vmatprep.subr.bf16.mxu0 0
        %1840 = vmatpush2.bf16.msra.mxu0 0
        %1841 = vmatprep.subr.bf16.mxu0 0
        %1842 = vmatpush2.bf16.msra.mxu0 0
        %1843 = vmatprep.subr.bf16.mxu0 0
        %1844 = vmatpush2.bf16.msra.mxu0 0
        %1845 = vmatprep.subr.bf16.mxu0 0
        %1846 = vmatpush2.bf16.msra.mxu0 0
        %1847 = vmatprep.mubr.bf16.mxu0 0
        %1848 = vmatmul.mubr.bf16.gmra.mxu0 %v1759
        %v1849 = vpop.f32.mrf.mxu0
        %v1850 = vadd.f32 0.0, %v1849
        %v1851 = vpop.f32.mrf.mxu0
        %v1852 = vpop.f32.mrf.mxu0
        %v1853 = vadd.f32 0.0, %v1852
        %v1854 = vpop.f32.mrf.mxu0
        %1855 = vmatprep.mubr.bf16.mxu0 0
        %1856 = vmatmul.mubr.bf16.gmra.mxu0 %v1760
        %v1857 = vpop.f32.mrf.mxu0
        %v1858 = vadd.f32 0.0, %v1857
        %v1859 = vpop.f32.mrf.mxu0
        %v1860 = vpop.f32.mrf.mxu0
        %v1861 = vadd.f32 0.0, %v1860
        %v1862 = vpop.f32.mrf.mxu0
        %1863 = vmatprep.mubr.bf16.mxu0 0
        %1864 = vmatmul.mubr.bf16.gmra.mxu0 %v1761
        %v1865 = vpop.f32.mrf.mxu0
        %v1866 = vadd.f32 0.0, %v1865
        %v1867 = vpop.f32.mrf.mxu0
        %v1868 = vpop.f32.mrf.mxu0
        %v1869 = vadd.f32 0.0, %v1868
        %v1870 = vpop.f32.mrf.mxu0
        %1871 = vmatprep.mubr.bf16.mxu0 0
        %1872 = vmatmul.mubr.bf16.gmra.mxu0 %v1762
        %v1873 = vpop.f32.mrf.mxu0
        %v1874 = vadd.f32 0.0, %v1873
        %v1875 = vpop.f32.mrf.mxu0
        %v1876 = vpop.f32.mrf.mxu0
        %v1877 = vadd.f32 0.0, %v1876
        %v1878 = vpop.f32.mrf.mxu0
        %1879 = vdwg.mxu0
        %v1880 = vadd.f32 %v1726, %v1850
        %v1881 = vadd.f32 %v1727, %v1853
        %v1882 = vadd.f32 %v1728, %v1858
        %v1883 = vadd.f32 %v1729, %v1861
        %v1884 = vadd.f32 %v1730, %v1866
        %v1885 = vadd.f32 %v1731, %v1869
        %v1886 = vadd.f32 %v1732, %v1874
        %v1887 = vadd.f32 %v1733, %v1877
        %1888 = vst [vmem:[#allocation2] sm:$0xff] %v1880
        %1889 = vst [vmem:[#allocation2 + $0x8] sm:$0xff] %v1881
        %1890 = vst [vmem:[#allocation2 + $0x10] sm:$0xff] %v1882
        %1891 = vst [vmem:[#allocation2 + $0x18] sm:$0xff] %v1883
        %1892 = vst [vmem:[#allocation2 + $0x20] sm:$0xff] %v1884
        %1893 = vst [vmem:[#allocation2 + $0x28] sm:$0xff] %v1885
        %1894 = vst [vmem:[#allocation2 + $0x30] sm:$0xff] %v1886
        %1895 = vst [vmem:[#allocation2 + $0x38] sm:$0xff] %v1887
        %s1896 = scalar_lea.vmem %s508, 8 [#allocation3]
        %v1897 = vld [vmem:[%s1896] sm:$0xf]
        %v1898 = vld [vmem:[%s1896 + $0x8] sm:$0xf]
        %v1899 = vld [vmem:[%s1896 + $0x10] sm:$0xf]
        %v1900 = vld [vmem:[%s1896 + $0x18] sm:$0xf]
        %v1901 = vld [vmem:[%s1896 + $0x20] sm:$0xf]
        %v1902 = vld [vmem:[%s1896 + $0x28] sm:$0xf]
        %v1903 = vld [vmem:[%s1896 + $0x30] sm:$0xf]
        %v1904 = vld [vmem:[%s1896 + $0x38] sm:$0xf]
        %v1905 = vld [vmem:[#allocation2] sm:$0xff]
        %v1906 = vld [vmem:[#allocation2 + $0x8] sm:$0xff]
        %v1907 = vld [vmem:[#allocation2 + $0x10] sm:$0xff]
        %v1908 = vld [vmem:[#allocation2 + $0x18] sm:$0xff]
        %v1909 = vld [vmem:[#allocation2 + $0x20] sm:$0xff]
        %v1910 = vld [vmem:[#allocation2 + $0x28] sm:$0xff]
        %v1911 = vld [vmem:[#allocation2 + $0x30] sm:$0xff]
        %v1912 = vld [vmem:[#allocation2 + $0x38] sm:$0xff]
        %s1913 = scalar_lea.vmem %s1, 384
        %v1914 = vld [vmem:[%s1913] sm:$0xf]
        %v1915 = vld [vmem:[%s1913 + $0x4] sm:$0xf]
        %v1916 = vld [vmem:[%s1913 + $0x8] sm:$0xf]
        %v1917 = vld [vmem:[%s1913 + $0xc] sm:$0xf]
        %v1918 = vld [vmem:[%s1913 + $0x10] sm:$0xf]
        %v1919 = vld [vmem:[%s1913 + $0x14] sm:$0xf]
        %v1920 = vld [vmem:[%s1913 + $0x18] sm:$0xf]
        %v1921 = vld [vmem:[%s1913 + $0x1c] sm:$0xf]
        %v1922 = vld [vmem:[%s1913 + $0x20] sm:$0xf]
        %v1923 = vld [vmem:[%s1913 + $0x24] sm:$0xf]
        %v1924 = vld [vmem:[%s1913 + $0x28] sm:$0xf]
        %v1925 = vld [vmem:[%s1913 + $0x2c] sm:$0xf]
        %v1926 = vld [vmem:[%s1913 + $0x30] sm:$0xf]
        %v1927 = vld [vmem:[%s1913 + $0x34] sm:$0xf]
        %v1928 = vld [vmem:[%s1913 + $0x38] sm:$0xf]
        %v1929 = vld [vmem:[%s1913 + $0x3c] sm:$0xf]
        %v1938 = vunpack.c.l.b16 %v1897
        %v1939 = vunpack.c.l.b16 %v1898
        %v1940 = vunpack.c.l.b16 %v1899
        %v1941 = vunpack.c.l.b16 %v1900
        %v1942 = vunpack.c.l.b16 %v1901
        %v1943 = vunpack.c.l.b16 %v1902
        %v1944 = vunpack.c.l.b16 %v1903
        %v1945 = vunpack.c.l.b16 %v1904
        %v1946 = vpack.c.b16 %v1939, %v1938
        %v1947 = vpack.c.b16 %v1941, %v1940
        %v1948 = vpack.c.b16 %v1943, %v1942
        %v1949 = vpack.c.b16 %v1945, %v1944
        %v1970 = vunpack.c.l.b16 %v1914
        %v1971 = vunpack.c.l.b16 %v1915
        %v1972 = vunpack.c.l.b16 %v1916
        %v1973 = vunpack.c.l.b16 %v1917
        %v1974 = vunpack.c.l.b16 %v1918
        %v1975 = vunpack.c.l.b16 %v1919
        %v1976 = vunpack.c.l.b16 %v1920
        %v1977 = vunpack.c.l.b16 %v1921
        %v1978 = vunpack.c.l.b16 %v1922
        %v1979 = vunpack.c.l.b16 %v1923
        %v1980 = vunpack.c.l.b16 %v1924
        %v1981 = vunpack.c.l.b16 %v1925
        %v1982 = vunpack.c.l.b16 %v1926
        %v1983 = vunpack.c.l.b16 %v1927
        %v1984 = vunpack.c.l.b16 %v1928
        %v1985 = vunpack.c.l.b16 %v1929
        %v1986 = vpack.c.b16 %v1971, %v1970
        %v1987 = vpack.c.b16 %v1973, %v1972
        %v1988 = vpack.c.b16 %v1975, %v1974
        %v1989 = vpack.c.b16 %v1977, %v1976
        %v1990 = vpack.c.b16 %v1979, %v1978
        %v1991 = vpack.c.b16 %v1981, %v1980
        %v1992 = vpack.c.b16 %v1983, %v1982
        %v1993 = vpack.c.b16 %v1985, %v1984
        %2002 = vmatprep.subr.bf16.mxu0 0
        %2003 = vmatpush1.bf16.msra.mxu0 %v1993
        %2004 = vmatprep.subr.bf16.mxu0 0
        %2005 = vmatpush1.bf16.msra.mxu0 %v1992
        %2006 = vmatprep.subr.bf16.mxu0 0
        %2007 = vmatpush1.bf16.msra.mxu0 %v1991
        %2008 = vmatprep.subr.bf16.mxu0 0
        %2009 = vmatpush1.bf16.msra.mxu0 %v1990
        %2010 = vmatprep.subr.bf16.mxu0 0
        %2011 = vmatpush1.bf16.msra.mxu0 %v1989
        %2012 = vmatprep.subr.bf16.mxu0 0
        %2013 = vmatpush1.bf16.msra.mxu0 %v1988
        %2014 = vmatprep.subr.bf16.mxu0 0
        %2015 = vmatpush1.bf16.msra.mxu0 %v1987
        %2016 = vmatprep.subr.bf16.mxu0 0
        %2017 = vmatpush1.bf16.msra.mxu0 %v1986
        %2018 = vmatprep.subr.bf16.mxu0 0
        %2019 = vmatpush2.bf16.msra.mxu0 0
        %2020 = vmatprep.subr.bf16.mxu0 0
        %2021 = vmatpush2.bf16.msra.mxu0 0
        %2022 = vmatprep.subr.bf16.mxu0 0
        %2023 = vmatpush2.bf16.msra.mxu0 0
        %2024 = vmatprep.subr.bf16.mxu0 0
        %2025 = vmatpush2.bf16.msra.mxu0 0
        %2026 = vmatprep.subr.bf16.mxu0 0
        %2027 = vmatpush2.bf16.msra.mxu0 0
        %2028 = vmatprep.subr.bf16.mxu0 0
        %2029 = vmatpush2.bf16.msra.mxu0 0
        %2030 = vmatprep.subr.bf16.mxu0 0
        %2031 = vmatpush2.bf16.msra.mxu0 0
        %2032 = vmatprep.subr.bf16.mxu0 0
        %2033 = vmatpush2.bf16.msra.mxu0 0
        %2034 = vmatprep.mubr.bf16.mxu0 0
        %2035 = vmatmul.mubr.bf16.gmra.mxu0 %v1946
        %v2036 = vpop.f32.mrf.mxu0
        %v2037 = vadd.f32 0.0, %v2036
        %v2038 = vpop.f32.mrf.mxu0
        %v2039 = vpop.f32.mrf.mxu0
        %v2040 = vadd.f32 0.0, %v2039
        %v2041 = vpop.f32.mrf.mxu0
        %2042 = vmatprep.mubr.bf16.mxu0 0
        %2043 = vmatmul.mubr.bf16.gmra.mxu0 %v1947
        %v2044 = vpop.f32.mrf.mxu0
        %v2045 = vadd.f32 0.0, %v2044
        %v2046 = vpop.f32.mrf.mxu0
        %v2047 = vpop.f32.mrf.mxu0
        %v2048 = vadd.f32 0.0, %v2047
        %v2049 = vpop.f32.mrf.mxu0
        %2050 = vmatprep.mubr.bf16.mxu0 0
        %2051 = vmatmul.mubr.bf16.gmra.mxu0 %v1948
        %v2052 = vpop.f32.mrf.mxu0
        %v2053 = vadd.f32 0.0, %v2052
        %v2054 = vpop.f32.mrf.mxu0
        %v2055 = vpop.f32.mrf.mxu0
        %v2056 = vadd.f32 0.0, %v2055
        %v2057 = vpop.f32.mrf.mxu0
        %2058 = vmatprep.mubr.bf16.mxu0 0
        %2059 = vmatmul.mubr.bf16.gmra.mxu0 %v1949
        %v2060 = vpop.f32.mrf.mxu0
        %v2061 = vadd.f32 0.0, %v2060
        %v2062 = vpop.f32.mrf.mxu0
        %v2063 = vpop.f32.mrf.mxu0
        %v2064 = vadd.f32 0.0, %v2063
        %v2065 = vpop.f32.mrf.mxu0
        %2066 = vdwg.mxu0
        %v2067 = vadd.f32 %v1905, %v2037
        %v2068 = vadd.f32 %v1906, %v2040
        %v2069 = vadd.f32 %v1907, %v2045
        %v2070 = vadd.f32 %v1908, %v2048
        %v2071 = vadd.f32 %v1909, %v2053
        %v2072 = vadd.f32 %v1910, %v2056
        %v2073 = vadd.f32 %v1911, %v2061
        %v2074 = vadd.f32 %v1912, %v2064
        %2075 = vst [vmem:[#allocation2] sm:$0xff] %v2067
        %2076 = vst [vmem:[#allocation2 + $0x8] sm:$0xff] %v2068
        %2077 = vst [vmem:[#allocation2 + $0x10] sm:$0xff] %v2069
        %2078 = vst [vmem:[#allocation2 + $0x18] sm:$0xff] %v2070
        %2079 = vst [vmem:[#allocation2 + $0x20] sm:$0xff] %v2071
        %2080 = vst [vmem:[#allocation2 + $0x28] sm:$0xff] %v2072
        %2081 = vst [vmem:[#allocation2 + $0x30] sm:$0xff] %v2073
        %2082 = vst [vmem:[#allocation2 + $0x38] sm:$0xff] %v2074
        %s2083 = scalar_lea.vmem %s508, 88 [#allocation3]
        %v2084 = vld [vmem:[%s2083] sm:$0xf]
        %v2085 = vld [vmem:[%s2083 + $0x8] sm:$0xf]
        %v2086 = vld [vmem:[%s2083 + $0x10] sm:$0xf]
        %v2087 = vld [vmem:[%s2083 + $0x18] sm:$0xf]
        %v2088 = vld [vmem:[%s2083 + $0x20] sm:$0xf]
        %v2089 = vld [vmem:[%s2083 + $0x28] sm:$0xf]
        %v2090 = vld [vmem:[%s2083 + $0x30] sm:$0xf]
        %v2091 = vld [vmem:[%s2083 + $0x38] sm:$0xf]
        %v2092 = vld [vmem:[#allocation2] sm:$0xff]
        %v2093 = vld [vmem:[#allocation2 + $0x8] sm:$0xff]
        %v2094 = vld [vmem:[#allocation2 + $0x10] sm:$0xff]
        %v2095 = vld [vmem:[#allocation2 + $0x18] sm:$0xff]
        %v2096 = vld [vmem:[#allocation2 + $0x20] sm:$0xff]
        %v2097 = vld [vmem:[#allocation2 + $0x28] sm:$0xff]
        %v2098 = vld [vmem:[#allocation2 + $0x30] sm:$0xff]
        %v2099 = vld [vmem:[#allocation2 + $0x38] sm:$0xff]
        %s2100 = scalar_lea.vmem %s1, 448
        %v2101 = vld [vmem:[%s2100] sm:$0xf]
        %v2102 = vld [vmem:[%s2100 + $0x4] sm:$0xf]
        %v2103 = vld [vmem:[%s2100 + $0x8] sm:$0xf]
        %v2104 = vld [vmem:[%s2100 + $0xc] sm:$0xf]
        %v2105 = vld [vmem:[%s2100 + $0x10] sm:$0xf]
        %v2106 = vld [vmem:[%s2100 + $0x14] sm:$0xf]
        %v2107 = vld [vmem:[%s2100 + $0x18] sm:$0xf]
        %v2108 = vld [vmem:[%s2100 + $0x1c] sm:$0xf]
        %v2109 = vld [vmem:[%s2100 + $0x20] sm:$0xf]
        %v2110 = vld [vmem:[%s2100 + $0x24] sm:$0xf]
        %v2111 = vld [vmem:[%s2100 + $0x28] sm:$0xf]
        %v2112 = vld [vmem:[%s2100 + $0x2c] sm:$0xf]
        %v2113 = vld [vmem:[%s2100 + $0x30] sm:$0xf]
        %v2114 = vld [vmem:[%s2100 + $0x34] sm:$0xf]
        %v2115 = vld [vmem:[%s2100 + $0x38] sm:$0xf]
        %v2116 = vld [vmem:[%s2100 + $0x3c] sm:$0xf]
        %v2125 = vunpack.c.l.b16 %v2084
        %v2126 = vunpack.c.l.b16 %v2085
        %v2127 = vunpack.c.l.b16 %v2086
        %v2128 = vunpack.c.l.b16 %v2087
        %v2129 = vunpack.c.l.b16 %v2088
        %v2130 = vunpack.c.l.b16 %v2089
        %v2131 = vunpack.c.l.b16 %v2090
        %v2132 = vunpack.c.l.b16 %v2091
        %v2133 = vpack.c.b16 %v2126, %v2125
        %v2134 = vpack.c.b16 %v2128, %v2127
        %v2135 = vpack.c.b16 %v2130, %v2129
        %v2136 = vpack.c.b16 %v2132, %v2131
        %v2157 = vunpack.c.l.b16 %v2101
        %v2158 = vunpack.c.l.b16 %v2102
        %v2159 = vunpack.c.l.b16 %v2103
        %v2160 = vunpack.c.l.b16 %v2104
        %v2161 = vunpack.c.l.b16 %v2105
        %v2162 = vunpack.c.l.b16 %v2106
        %v2163 = vunpack.c.l.b16 %v2107
        %v2164 = vunpack.c.l.b16 %v2108
        %v2165 = vunpack.c.l.b16 %v2109
        %v2166 = vunpack.c.l.b16 %v2110
        %v2167 = vunpack.c.l.b16 %v2111
        %v2168 = vunpack.c.l.b16 %v2112
        %v2169 = vunpack.c.l.b16 %v2113
        %v2170 = vunpack.c.l.b16 %v2114
        %v2171 = vunpack.c.l.b16 %v2115
        %v2172 = vunpack.c.l.b16 %v2116
        %v2173 = vpack.c.b16 %v2158, %v2157
        %v2174 = vpack.c.b16 %v2160, %v2159
        %v2175 = vpack.c.b16 %v2162, %v2161
        %v2176 = vpack.c.b16 %v2164, %v2163
        %v2177 = vpack.c.b16 %v2166, %v2165
        %v2178 = vpack.c.b16 %v2168, %v2167
        %v2179 = vpack.c.b16 %v2170, %v2169
        %v2180 = vpack.c.b16 %v2172, %v2171
        %2189 = vmatprep.subr.bf16.mxu0 0
        %2190 = vmatpush1.bf16.msra.mxu0 %v2180
        %2191 = vmatprep.subr.bf16.mxu0 0
        %2192 = vmatpush1.bf16.msra.mxu0 %v2179
        %2193 = vmatprep.subr.bf16.mxu0 0
        %2194 = vmatpush1.bf16.msra.mxu0 %v2178
        %2195 = vmatprep.subr.bf16.mxu0 0
        %2196 = vmatpush1.bf16.msra.mxu0 %v2177
        %2197 = vmatprep.subr.bf16.mxu0 0
        %2198 = vmatpush1.bf16.msra.mxu0 %v2176
        %2199 = vmatprep.subr.bf16.mxu0 0
        %2200 = vmatpush1.bf16.msra.mxu0 %v2175
        %2201 = vmatprep.subr.bf16.mxu0 0
        %2202 = vmatpush1.bf16.msra.mxu0 %v2174
        %2203 = vmatprep.subr.bf16.mxu0 0
        %2204 = vmatpush1.bf16.msra.mxu0 %v2173
        %2205 = vmatprep.subr.bf16.mxu0 0
        %2206 = vmatpush2.bf16.msra.mxu0 0
        %2207 = vmatprep.subr.bf16.mxu0 0
        %2208 = vmatpush2.bf16.msra.mxu0 0
        %2209 = vmatprep.subr.bf16.mxu0 0
        %2210 = vmatpush2.bf16.msra.mxu0 0
        %2211 = vmatprep.subr.bf16.mxu0 0
        %2212 = vmatpush2.bf16.msra.mxu0 0
        %2213 = vmatprep.subr.bf16.mxu0 0
        %2214 = vmatpush2.bf16.msra.mxu0 0
        %2215 = vmatprep.subr.bf16.mxu0 0
        %2216 = vmatpush2.bf16.msra.mxu0 0
        %2217 = vmatprep.subr.bf16.mxu0 0
        %2218 = vmatpush2.bf16.msra.mxu0 0
        %2219 = vmatprep.subr.bf16.mxu0 0
        %2220 = vmatpush2.bf16.msra.mxu0 0
        %2221 = vmatprep.mubr.bf16.mxu0 0
        %2222 = vmatmul.mubr.bf16.gmra.mxu0 %v2133
        %v2223 = vpop.f32.mrf.mxu0
        %v2224 = vadd.f32 0.0, %v2223
        %v2225 = vpop.f32.mrf.mxu0
        %v2226 = vpop.f32.mrf.mxu0
        %v2227 = vadd.f32 0.0, %v2226
        %v2228 = vpop.f32.mrf.mxu0
        %2229 = vmatprep.mubr.bf16.mxu0 0
        %2230 = vmatmul.mubr.bf16.gmra.mxu0 %v2134
        %v2231 = vpop.f32.mrf.mxu0
        %v2232 = vadd.f32 0.0, %v2231
        %v2233 = vpop.f32.mrf.mxu0
        %v2234 = vpop.f32.mrf.mxu0
        %v2235 = vadd.f32 0.0, %v2234
        %v2236 = vpop.f32.mrf.mxu0
        %2237 = vmatprep.mubr.bf16.mxu0 0
        %2238 = vmatmul.mubr.bf16.gmra.mxu0 %v2135
        %v2239 = vpop.f32.mrf.mxu0
        %v2240 = vadd.f32 0.0, %v2239
        %v2241 = vpop.f32.mrf.mxu0
        %v2242 = vpop.f32.mrf.mxu0
        %v2243 = vadd.f32 0.0, %v2242
        %v2244 = vpop.f32.mrf.mxu0
        %2245 = vmatprep.mubr.bf16.mxu0 0
        %2246 = vmatmul.mubr.bf16.gmra.mxu0 %v2136
        %v2247 = vpop.f32.mrf.mxu0
        %v2248 = vadd.f32 0.0, %v2247
        %v2249 = vpop.f32.mrf.mxu0
        %v2250 = vpop.f32.mrf.mxu0
        %v2251 = vadd.f32 0.0, %v2250
        %v2252 = vpop.f32.mrf.mxu0
        %2253 = vdwg.mxu0
        %v2254 = vadd.f32 %v2092, %v2224
        %v2255 = vadd.f32 %v2093, %v2227
        %v2256 = vadd.f32 %v2094, %v2232
        %v2257 = vadd.f32 %v2095, %v2235
        %v2258 = vadd.f32 %v2096, %v2240
        %v2259 = vadd.f32 %v2097, %v2243
        %v2260 = vadd.f32 %v2098, %v2248
        %v2261 = vadd.f32 %v2099, %v2251
        %2262 = vst [vmem:[#allocation2] sm:$0xff] %v2254
        %2263 = vst [vmem:[#allocation2 + $0x8] sm:$0xff] %v2255
        %2264 = vst [vmem:[#allocation2 + $0x10] sm:$0xff] %v2256
        %2265 = vst [vmem:[#allocation2 + $0x18] sm:$0xff] %v2257
        %2266 = vst [vmem:[#allocation2 + $0x20] sm:$0xff] %v2258
        %2267 = vst [vmem:[#allocation2 + $0x28] sm:$0xff] %v2259
        %2268 = vst [vmem:[#allocation2 + $0x30] sm:$0xff] %v2260
        %2269 = vst [vmem:[#allocation2 + $0x38] sm:$0xff] %v2261
        %v2270 = vld [vmem:[%s1896] sm:$0xf]
        %v2271 = vld [vmem:[%s1896 + $0x4] sm:$0x1]
        %v2272 = vld [vmem:[%s1896 + $0x8] sm:$0xf]
        %v2273 = vld [vmem:[%s1896 + $0xc] sm:$0x1]
        %v2274 = vld [vmem:[%s1896 + $0x10] sm:$0xf]
        %v2275 = vld [vmem:[%s1896 + $0x14] sm:$0x1]
        %v2276 = vld [vmem:[%s1896 + $0x18] sm:$0xf]
        %v2277 = vld [vmem:[%s1896 + $0x1c] sm:$0x1]
        %v2278 = vld [vmem:[%s1896 + $0x20] sm:$0xf]
        %v2279 = vld [vmem:[%s1896 + $0x24] sm:$0x1]
        %v2280 = vld [vmem:[%s1896 + $0x28] sm:$0xf]
        %v2281 = vld [vmem:[%s1896 + $0x2c] sm:$0x1]
        %v2282 = vld [vmem:[%s1896 + $0x30] sm:$0xf]
        %v2283 = vld [vmem:[%s1896 + $0x34] sm:$0x1]
        %v2284 = vld [vmem:[%s1896 + $0x38] sm:$0xf]
        %v2285 = vld [vmem:[%s1896 + $0x3c] sm:$0x1]
        %v2287 = vshrl.u32 %v2270, 16
        %v2289 = vrot.slane %v2287, 4
        %v2290 = vshll.u32 %v2270, 16
        %v2292 = vrot.slane %v2290, 5
        %v2293 = vor.u32 %v2289, %v2292
        %v2294 = vrot.slane %v2293, 4
        %v2296 = vshll.u32 %v2271, 16
        %v2298 = vrot.slane %v2296, 5
        %v2299 = vsel %vm941, %v2294, %v2298
        %v2301 = vshrl.u32 %v2272, 16
        %v2303 = vrot.slane %v2301, 4
        %v2304 = vshll.u32 %v2272, 16
        %v2306 = vrot.slane %v2304, 5
        %v2307 = vor.u32 %v2303, %v2306
        %v2308 = vrot.slane %v2307, 4
        %v2310 = vshll.u32 %v2273, 16
        %v2312 = vrot.slane %v2310, 5
        %v2313 = vsel %vm941, %v2308, %v2312
        %v2315 = vshrl.u32 %v2274, 16
        %v2317 = vrot.slane %v2315, 4
        %v2318 = vshll.u32 %v2274, 16
        %v2320 = vrot.slane %v2318, 5
        %v2321 = vor.u32 %v2317, %v2320
        %v2322 = vrot.slane %v2321, 4
        %v2324 = vshll.u32 %v2275, 16
        %v2326 = vrot.slane %v2324, 5
        %v2327 = vsel %vm941, %v2322, %v2326
        %v2329 = vshrl.u32 %v2276, 16
        %v2331 = vrot.slane %v2329, 4
        %v2332 = vshll.u32 %v2276, 16
        %v2334 = vrot.slane %v2332, 5
        %v2335 = vor.u32 %v2331, %v2334
        %v2336 = vrot.slane %v2335, 4
        %v2338 = vshll.u32 %v2277, 16
        %v2340 = vrot.slane %v2338, 5
        %v2341 = vsel %vm941, %v2336, %v2340
        %v2343 = vshrl.u32 %v2278, 16
        %v2345 = vrot.slane %v2343, 4
        %v2346 = vshll.u32 %v2278, 16
        %v2348 = vrot.slane %v2346, 5
        %v2349 = vor.u32 %v2345, %v2348
        %v2350 = vrot.slane %v2349, 4
        %v2352 = vshll.u32 %v2279, 16
        %v2354 = vrot.slane %v2352, 5
        %v2355 = vsel %vm941, %v2350, %v2354
        %v2357 = vshrl.u32 %v2280, 16
        %v2359 = vrot.slane %v2357, 4
        %v2360 = vshll.u32 %v2280, 16
        %v2362 = vrot.slane %v2360, 5
        %v2363 = vor.u32 %v2359, %v2362
        %v2364 = vrot.slane %v2363, 4
        %v2366 = vshll.u32 %v2281, 16
        %v2368 = vrot.slane %v2366, 5
        %v2369 = vsel %vm941, %v2364, %v2368
        %v2371 = vshrl.u32 %v2282, 16
        %v2373 = vrot.slane %v2371, 4
        %v2374 = vshll.u32 %v2282, 16
        %v2376 = vrot.slane %v2374, 5
        %v2377 = vor.u32 %v2373, %v2376
        %v2378 = vrot.slane %v2377, 4
        %v2380 = vshll.u32 %v2283, 16
        %v2382 = vrot.slane %v2380, 5
        %v2383 = vsel %vm941, %v2378, %v2382
        %v2385 = vshrl.u32 %v2284, 16
        %v2387 = vrot.slane %v2385, 4
        %v2388 = vshll.u32 %v2284, 16
        %v2390 = vrot.slane %v2388, 5
        %v2391 = vor.u32 %v2387, %v2390
        %v2392 = vrot.slane %v2391, 4
        %v2394 = vshll.u32 %v2285, 16
        %v2396 = vrot.slane %v2394, 5
        %v2397 = vsel %vm941, %v2392, %v2396
        %v2398 = vld [vmem:[#allocation2] sm:$0xff]
        %v2399 = vld [vmem:[#allocation2 + $0x8] sm:$0xff]
        %v2400 = vld [vmem:[#allocation2 + $0x10] sm:$0xff]
        %v2401 = vld [vmem:[#allocation2 + $0x18] sm:$0xff]
        %v2402 = vld [vmem:[#allocation2 + $0x20] sm:$0xff]
        %v2403 = vld [vmem:[#allocation2 + $0x28] sm:$0xff]
        %v2404 = vld [vmem:[#allocation2 + $0x30] sm:$0xff]
        %v2405 = vld [vmem:[#allocation2 + $0x38] sm:$0xff]
        %s2406 = scalar_lea.vmem %s1, 512
        %v2407 = vld [vmem:[%s2406] sm:$0xf]
        %v2408 = vld [vmem:[%s2406 + $0x4] sm:$0xf]
        %v2409 = vld [vmem:[%s2406 + $0x8] sm:$0xf]
        %v2410 = vld [vmem:[%s2406 + $0xc] sm:$0xf]
        %v2411 = vld [vmem:[%s2406 + $0x10] sm:$0xf]
        %v2412 = vld [vmem:[%s2406 + $0x14] sm:$0xf]
        %v2413 = vld [vmem:[%s2406 + $0x18] sm:$0xf]
        %v2414 = vld [vmem:[%s2406 + $0x1c] sm:$0xf]
        %v2415 = vld [vmem:[%s2406 + $0x20] sm:$0xf]
        %v2416 = vld [vmem:[%s2406 + $0x24] sm:$0xf]
        %v2417 = vld [vmem:[%s2406 + $0x28] sm:$0xf]
        %v2418 = vld [vmem:[%s2406 + $0x2c] sm:$0xf]
        %v2419 = vld [vmem:[%s2406 + $0x30] sm:$0xf]
        %v2420 = vld [vmem:[%s2406 + $0x34] sm:$0xf]
        %v2421 = vld [vmem:[%s2406 + $0x38] sm:$0xf]
        %v2422 = vld [vmem:[%s2406 + $0x3c] sm:$0xf]
        %v2423 = vunpack.c.l.b16 %v2299
        %v2424 = vunpack.c.l.b16 %v2313
        %v2425 = vunpack.c.l.b16 %v2327
        %v2426 = vunpack.c.l.b16 %v2341
        %v2427 = vunpack.c.l.b16 %v2355
        %v2428 = vunpack.c.l.b16 %v2369
        %v2429 = vunpack.c.l.b16 %v2383
        %v2430 = vunpack.c.l.b16 %v2397
        %v2431 = vpack.c.b16 %v2424, %v2423
        %v2432 = vpack.c.b16 %v2426, %v2425
        %v2433 = vpack.c.b16 %v2428, %v2427
        %v2434 = vpack.c.b16 %v2430, %v2429
        %v2455 = vunpack.c.l.b16 %v2407
        %v2456 = vunpack.c.l.b16 %v2408
        %v2457 = vunpack.c.l.b16 %v2409
        %v2458 = vunpack.c.l.b16 %v2410
        %v2459 = vunpack.c.l.b16 %v2411
        %v2460 = vunpack.c.l.b16 %v2412
        %v2461 = vunpack.c.l.b16 %v2413
        %v2462 = vunpack.c.l.b16 %v2414
        %v2463 = vunpack.c.l.b16 %v2415
        %v2464 = vunpack.c.l.b16 %v2416
        %v2465 = vunpack.c.l.b16 %v2417
        %v2466 = vunpack.c.l.b16 %v2418
        %v2467 = vunpack.c.l.b16 %v2419
        %v2468 = vunpack.c.l.b16 %v2420
        %v2469 = vunpack.c.l.b16 %v2421
        %v2470 = vunpack.c.l.b16 %v2422
        %v2471 = vpack.c.b16 %v2456, %v2455
        %v2472 = vpack.c.b16 %v2458, %v2457
        %v2473 = vpack.c.b16 %v2460, %v2459
        %v2474 = vpack.c.b16 %v2462, %v2461
        %v2475 = vpack.c.b16 %v2464, %v2463
        %v2476 = vpack.c.b16 %v2466, %v2465
        %v2477 = vpack.c.b16 %v2468, %v2467
        %v2478 = vpack.c.b16 %v2470, %v2469
        %2487 = vmatprep.subr.bf16.mxu0 0
        %2488 = vmatpush1.bf16.msra.mxu0 %v2478
        %2489 = vmatprep.subr.bf16.mxu0 0
        %2490 = vmatpush1.bf16.msra.mxu0 %v2477
        %2491 = vmatprep.subr.bf16.mxu0 0
        %2492 = vmatpush1.bf16.msra.mxu0 %v2476
        %2493 = vmatprep.subr.bf16.mxu0 0
        %2494 = vmatpush1.bf16.msra.mxu0 %v2475
        %2495 = vmatprep.subr.bf16.mxu0 0
        %2496 = vmatpush1.bf16.msra.mxu0 %v2474
        %2497 = vmatprep.subr.bf16.mxu0 0
        %2498 = vmatpush1.bf16.msra.mxu0 %v2473
        %2499 = vmatprep.subr.bf16.mxu0 0
        %2500 = vmatpush1.bf16.msra.mxu0 %v2472
        %2501 = vmatprep.subr.bf16.mxu0 0
        %2502 = vmatpush1.bf16.msra.mxu0 %v2471
        %2503 = vmatprep.subr.bf16.mxu0 0
        %2504 = vmatpush2.bf16.msra.mxu0 0
        %2505 = vmatprep.subr.bf16.mxu0 0
        %2506 = vmatpush2.bf16.msra.mxu0 0
        %2507 = vmatprep.subr.bf16.mxu0 0
        %2508 = vmatpush2.bf16.msra.mxu0 0
        %2509 = vmatprep.subr.bf16.mxu0 0
        %2510 = vmatpush2.bf16.msra.mxu0 0
        %2511 = vmatprep.subr.bf16.mxu0 0
        %2512 = vmatpush2.bf16.msra.mxu0 0
        %2513 = vmatprep.subr.bf16.mxu0 0
        %2514 = vmatpush2.bf16.msra.mxu0 0
        %2515 = vmatprep.subr.bf16.mxu0 0
        %2516 = vmatpush2.bf16.msra.mxu0 0
        %2517 = vmatprep.subr.bf16.mxu0 0
        %2518 = vmatpush2.bf16.msra.mxu0 0
        %2519 = vmatprep.mubr.bf16.mxu0 0
        %2520 = vmatmul.mubr.bf16.gmra.mxu0 %v2431
        %v2521 = vpop.f32.mrf.mxu0
        %v2522 = vadd.f32 0.0, %v2521
        %v2523 = vpop.f32.mrf.mxu0
        %v2524 = vpop.f32.mrf.mxu0
        %v2525 = vadd.f32 0.0, %v2524
        %v2526 = vpop.f32.mrf.mxu0
        %2527 = vmatprep.mubr.bf16.mxu0 0
        %2528 = vmatmul.mubr.bf16.gmra.mxu0 %v2432
        %v2529 = vpop.f32.mrf.mxu0
        %v2530 = vadd.f32 0.0, %v2529
        %v2531 = vpop.f32.mrf.mxu0
        %v2532 = vpop.f32.mrf.mxu0
        %v2533 = vadd.f32 0.0, %v2532
        %v2534 = vpop.f32.mrf.mxu0
        %2535 = vmatprep.mubr.bf16.mxu0 0
        %2536 = vmatmul.mubr.bf16.gmra.mxu0 %v2433
        %v2537 = vpop.f32.mrf.mxu0
        %v2538 = vadd.f32 0.0, %v2537
        %v2539 = vpop.f32.mrf.mxu0
        %v2540 = vpop.f32.mrf.mxu0
        %v2541 = vadd.f32 0.0, %v2540
        %v2542 = vpop.f32.mrf.mxu0
        %2543 = vmatprep.mubr.bf16.mxu0 0
        %2544 = vmatmul.mubr.bf16.gmra.mxu0 %v2434
        %v2545 = vpop.f32.mrf.mxu0
        %v2546 = vadd.f32 0.0, %v2545
        %v2547 = vpop.f32.mrf.mxu0
        %v2548 = vpop.f32.mrf.mxu0
        %v2549 = vadd.f32 0.0, %v2548
        %v2550 = vpop.f32.mrf.mxu0
        %2551 = vdwg.mxu0
        %v2552 = vadd.f32 %v2398, %v2522
        %v2553 = vadd.f32 %v2399, %v2525
        %v2554 = vadd.f32 %v2400, %v2530
        %v2555 = vadd.f32 %v2401, %v2533
        %v2556 = vadd.f32 %v2402, %v2538
        %v2557 = vadd.f32 %v2403, %v2541
        %v2558 = vadd.f32 %v2404, %v2546
        %v2559 = vadd.f32 %v2405, %v2549
        %2560 = vst [vmem:[#allocation2] sm:$0xff] %v2552
        %2561 = vst [vmem:[#allocation2 + $0x8] sm:$0xff] %v2553
        %2562 = vst [vmem:[#allocation2 + $0x10] sm:$0xff] %v2554
        %2563 = vst [vmem:[#allocation2 + $0x18] sm:$0xff] %v2555
        %2564 = vst [vmem:[#allocation2 + $0x20] sm:$0xff] %v2556
        %2565 = vst [vmem:[#allocation2 + $0x28] sm:$0xff] %v2557
        %2566 = vst [vmem:[#allocation2 + $0x30] sm:$0xff] %v2558
        %2567 = vst [vmem:[#allocation2 + $0x38] sm:$0xff] %v2559
        %v2568 = vld [vmem:[#allocation2] sm:$0xff]
        %v2569 = vld [vmem:[#allocation2 + $0x8] sm:$0xff]
        %v2570 = vld [vmem:[#allocation2 + $0x10] sm:$0xff]
        %v2571 = vld [vmem:[#allocation2 + $0x18] sm:$0xff]
        %v2572 = vld [vmem:[#allocation2 + $0x20] sm:$0xff]
        %v2573 = vld [vmem:[#allocation2 + $0x28] sm:$0xff]
        %v2574 = vld [vmem:[#allocation2 + $0x30] sm:$0xff]
        %v2575 = vld [vmem:[#allocation2 + $0x38] sm:$0xff]
        %2576 = vst [vmem:[%s537] sm:$0xff] %v2568
        %2577 = vst [vmem:[%s537 + $0x8] sm:$0xff] %v2569
        %2578 = vst [vmem:[%s537 + $0x10] sm:$0xff] %v2570
        %2579 = vst [vmem:[%s537 + $0x18] sm:$0xff] %v2571
        %2580 = vst [vmem:[%s537 + $0x20] sm:$0xff] %v2572
        %2581 = vst [vmem:[%s537 + $0x28] sm:$0xff] %v2573
        %2582 = vst [vmem:[%s537 + $0x30] sm:$0xff] %v2574
        %2583 = vst [vmem:[%s537 + $0x38] sm:$0xff] %v2575
        %v2584 = vadd.f32 %v2568, %v2569
        %v2585 = vadd.f32 %v2584, %v2570
        %v2586 = vadd.f32 %v2585, %v2571
        %v2587 = vadd.f32 %v2586, %v2572
        %v2588 = vadd.f32 %v2587, %v2573
        %v2589 = vadd.f32 %v2588, %v2574
        %v2590 = vadd.f32 %v2589, %v2575
        %v2591 = vrot.slane %v2590, 4
        %v2592 = vadd.f32 %v2590, %v2591
        %v2593 = vrot.slane %v2592, 2
        %v2594 = vadd.f32 %v2592, %v2593
        %v2595 = vrot.slane %v2594, 1
        %v2596 = vadd.f32 %v2594, %v2595
        %v2597 = vmul.f32 %v2568, %v2568
        %v2598 = vmul.f32 %v2569, %v2569
        %v2599 = vmul.f32 %v2570, %v2570
        %v2600 = vmul.f32 %v2571, %v2571
        %v2601 = vmul.f32 %v2572, %v2572
        %v2602 = vmul.f32 %v2573, %v2573
        %v2603 = vmul.f32 %v2574, %v2574
        %v2604 = vmul.f32 %v2575, %v2575
        %v2605 = vadd.f32 %v2597, %v2598
        %v2606 = vadd.f32 %v2605, %v2599
        %v2607 = vadd.f32 %v2606, %v2600
        %v2608 = vadd.f32 %v2607, %v2601
        %v2609 = vadd.f32 %v2608, %v2602
        %v2610 = vadd.f32 %v2609, %v2603
        %v2611 = vadd.f32 %v2610, %v2604
        %v2612 = vrot.slane %v2611, 4
        %v2613 = vadd.f32 %v2611, %v2612
        %v2614 = vrot.slane %v2613, 2
        %v2615 = vadd.f32 %v2613, %v2614
        %v2616 = vrot.slane %v2615, 1
        %v2617 = vadd.f32 %v2615, %v2616
        %vm2618 = vcmask 1040384
        %v2619 = vsel %vm2618, %v2596, %v2617
        %vm2620 = vcmask 1041408
        %v2621 = vsel %vm2620, %v2619, 0.0
        %vm2622 = vcmask 1042432
        %v2623 = vsel %vm2622, %v2621, 0.0
        %vm2624 = vcmask 1043456
        %v2625 = vsel %vm2624, %v2623, 0.0
        %vm2626 = vcmask 1044480
        %v2627 = vsel %vm2626, %v2625, 0.0
        %vm2628 = vcmask 1045504
        %v2629 = vsel %vm2628, %v2627, 0.0
        %vm2630 = vcmask 1046528
        %v2631 = vsel %vm2630, %v2629, 0.0
        %2632 = vst [vmem:[%s541] sm:$0xff] %v2631
        %p2633 = scmp.lt.s32.totalorder %s15, 1
        %s2634 = scalar_select %p2633, %s15, 1
        %s2635 = smul.addr %s2634, 8
        %s2636 = smul.addr %s2635, 8
        %s2637 = scalar_lea.vmem %s2, %s2636
        %p2638 = scmp.lt.s32.totalorder %s15, 1
        %s2639 = scalar_select %p2638, %s15, 1
        %s2640 = smul.addr %s2639, 8
        %s2641 = scalar_lea.vmem %s3, %s2640
        // Predicated region
        $region70: #{_lambda_.8} parent=64 // pred_check
          %p2642 = pneg %p80
        $region71: #{_lambda_.8} parent=64 // pred_check_branch
          %2644 = sbr.rel (%p2642) target = $region73
        $region72: #{_lambda_.8} parent=64 // pred_region
          _
        $region73: #{_lambda_.8} parent=64 // pred_fallthru
          _
        // Predicated region
        $region74: #{_lambda_.8} parent=64 // pred_check
          %p2645 = pneg %p106
        $region75: #{_lambda_.8} parent=64 // pred_check_branch
          %2647 = sbr.rel (%p2645) target = $region77
        $region76: #{_lambda_.8} parent=64 // pred_region
          _
        $region77: #{_lambda_.8} parent=64 // pred_fallthru
          _
      $region65: #{_lambda_.8} parent=5 // pred_fallthru
        _
      %p2648 = scmp.le.s32.totalorder 2, %s10
      // Predicated region
      $region78: #{_lambda_.8} parent=5 // pred_check
        %p2649 = pneg %p2648
      $region79: #{_lambda_.8} parent=5 // pred_check_branch
        %2651 = sbr.rel (%p2649) target = $region81
      $region80: #{_lambda_.8} parent=5 // pred_region
        %s2652 = ssub.s32 %s10, 2
        // Predicated region
        $region82: #{_lambda_.8} parent=80 // pred_check
          %p2653 = pneg %p86
        $region83: #{_lambda_.8} parent=80 // pred_check_branch
          %2655 = sbr.rel (%p2653) target = $region85
        $region84: #{_lambda_.8} parent=80 // pred_region
          %p2656 = scmp.lt.s32.totalorder %s16, 1
          %s2657 = scalar_select %p2656, %s16, 1
          %s2658 = smul.addr %s2657, 8
          %s2659 = smul.addr %s2658, 8
          %s2660 = scalar_lea.vmem %s2, %s2659
        $region85: #{_lambda_.8} parent=80 // pred_fallthru
          _
        // Predicated region
        $region86: #{_lambda_.8} parent=80 // pred_check
          %p2661 = pneg %p112
        $region87: #{_lambda_.8} parent=80 // pred_check_branch
          %2663 = sbr.rel (%p2661) target = $region89
        $region88: #{_lambda_.8} parent=80 // pred_region
          %p2664 = scmp.lt.s32.totalorder %s16, 1
          %s2665 = scalar_select %p2664, %s16, 1
          %s2666 = smul.addr %s2665, 8
          %s2667 = scalar_lea.vmem %s3, %s2666
        $region89: #{_lambda_.8} parent=80 // pred_fallthru
          _
      $region81: #{_lambda_.8} parent=5 // pred_fallthru
        _
    $region6: #{_lambda_.8} parent=1 // loop_footer
      %s14 = sadd.s32 1, %s10
    $region7: #{_lambda_.8} parent=1 // loop_footer_branch
      %9 = sbr.rel target = $region3
    $region8: #{_lambda_.8} parent=1 // loop_exit
      _

</llo_original>
